<compile_context>
chip_gen: v5e
topology: v5e:2x2
jax: 0.10.0
libtpu: 0.0.40
codegen_flags: <defaults>
</compile_context>

<pallas_src>
import functools

import jax
import jax.numpy as jnp
from jax.experimental import pallas as pl
from jax.experimental.pallas import tpu as pltpu


# ------------------------------------------------------------------
# Fused Pallas kernel: one grid step == one block of TB batch elements
# ------------------------------------------------------------------
def _block_kernel(x_ref,
                  ln1_g_ref, ln1_b_ref,
                  wqkv_ref, bqkv_ref,
                  wo_ref, bo_ref,
                  ln2_g_ref, ln2_b_ref,
                  wfc_ref, bfc_ref,
                  wproj_ref, bproj_ref,
                  o_ref, *, n_head):
    tb, seq, emb = x_ref.shape
    dh = emb // n_head
    n = tb * seq

    x = x_ref[...].astype(jnp.float32).reshape(n, emb)        # (N, E) fp32

    def ln(v, g_ref, b_ref):
        # fp32 LayerNorm over the last dim (eps = 1e-5, matches nn.LayerNorm).
        mu = jnp.mean(v, axis=-1, keepdims=True)
        var = jnp.mean(jnp.square(v - mu), axis=-1, keepdims=True)
        return (v - mu) * jax.lax.rsqrt(var + 1e-5) * g_ref[...] + b_ref[...]

    def matmul_t(v_bf, w_ref, b_ref):
        # y = v @ W.T + b with W stored (Dout, Din): contract on Din directly
        # (MXU consumes the transposed operand natively); bf16 in, fp32 accum.
        y = jax.lax.dot_general(v_bf, w_ref[...],
                                (((1,), (1,)), ((), ())),
                                preferred_element_type=jnp.float32)
        return y + b_ref[...]

    # ---- attention branch ---------------------------------------------------
    h1 = ln(x, ln1_g_ref, ln1_b_ref).astype(jnp.bfloat16)
    qkv = matmul_t(h1, wqkv_ref, bqkv_ref)                    # (N, 3E) fp32

    def heads(col0):
        # Columns [col0, col0+E) are head-major; regroup to (H*TB, L, dh)
        # (major-dim reshapes + leading-axis concat only; no 4-D transpose).
        parts = [qkv[:, col0 + hi * dh: col0 + (hi + 1) * dh].reshape(tb, seq, dh)
                 for hi in range(n_head)]
        return jnp.concatenate(parts, axis=0).astype(jnp.bfloat16)

    q = heads(0)               # 1/sqrt(dh) already folded into the q weights
    k = heads(emb)
    v = heads(2 * emb)

    s = jnp.einsum('gqd,gkd->gqk', q, k,
                   preferred_element_type=jnp.float32)        # (H*TB, L, L) fp32
    s = s - jnp.max(s, axis=-1, keepdims=True)
    p = jnp.exp(s)
    p = p / jnp.sum(p, axis=-1, keepdims=True)                # exact softmax, fp32
    o = jnp.einsum('gqk,gkd->gqd', p.astype(jnp.bfloat16), v,
                   preferred_element_type=jnp.float32)        # (H*TB, L, dh)
    o = o.reshape(n_head, n, dh).astype(jnp.bfloat16)         # (H, N, dh)

    # Out-projection: accumulate per-head matmuls against pre-split weight
    # slices (replaces the lane-dim concatenate of the previous version).
    attn = jnp.zeros((n, emb), jnp.float32)
    for hi in range(n_head):
        attn = attn + jax.lax.dot_general(o[hi], wo_ref[hi],
                                          (((1,), (1,)), ((), ())),
                                          preferred_element_type=jnp.float32)
    x1 = x + attn + bo_ref[...]                               # residual 1 (fp32)

    # ---- MLP branch -----------------------------------------------------------
    h2 = ln(x1, ln2_g_ref, ln2_b_ref).astype(jnp.bfloat16)
    hfc = matmul_t(h2, wfc_ref, bfc_ref)                      # (N, 4E) fp32
    hfc = hfc * jax.nn.sigmoid(1.702 * hfc)                   # QuickGELU, fp32 (EUP)
    x2 = x1 + matmul_t(hfc.astype(jnp.bfloat16), wproj_ref, bproj_ref)

    o_ref[...] = x2.reshape(tb, seq, emb).astype(o_ref.dtype)


# ------------------------------------------------------------------
# Wrapper
# ------------------------------------------------------------------
def _choose_block_batch(batch, seq):
    """Smallest divisor of `batch` whose block gives TB*L >= 128 MXU rows
    (keeps the grid as long as possible for v7x's two TensorCores); falls back
    to the whole batch for tiny problems."""
    divisors = [d for d in range(1, batch + 1) if batch % d == 0]
    for d in divisors:
        if d * seq >= 128:
            return d
    return divisors[-1]


def residual_attention_block(x, params, n_head, block_batch=None):
    """x: (L, B, E) sequence-first fp32 (PyTorch MultiheadAttention layout)."""
    L, B, E = x.shape
    assert E % n_head == 0
    dh = E // n_head
    TB = _choose_block_batch(B, L) if block_batch is None else block_batch
    assert B % TB == 0
    grid = (B // TB,)

    # TODO(synk): accept batch-major input at the model level; this boundary
    #             transpose is an extra HBM pass at production shapes.
    xb = jnp.transpose(x, (1, 0, 2))                          # (B, L, E)

    f32, bf16 = jnp.float32, jnp.bfloat16
    scale = dh ** -0.5

    def row(v):                                               # 1-D param -> (1, D) fp32 row
        return v.astype(f32).reshape(1, -1)

    # One-time parameter prep (plain XLA): fold the attention scale into the q
    # rows of the in-projection, pre-split the out-projection per head, cast
    # matmul weights to bf16 (biases / LN params stay fp32).
    wqkv = params['in_proj_w'].astype(f32).at[:E, :].multiply(scale).astype(bf16)
    bqkv = params['in_proj_b'].astype(f32).at[:E].multiply(scale).reshape(1, -1)
    wo_heads = jnp.transpose(params['out_proj_w'].astype(f32).reshape(E, n_head, dh),
                             (1, 0, 2)).astype(bf16)          # (H, E, dh)

    weights = [
        row(params['ln_1_g']), row(params['ln_1_b']),
        wqkv, bqkv,
        wo_heads, row(params['out_proj_b']),
        row(params['ln_2_g']), row(params['ln_2_b']),
        params['c_fc_w'].astype(bf16), row(params['c_fc_b']),
        params['c_proj_w'].astype(bf16), row(params['c_proj_b']),
    ]

    # -- cost / VMEM bookkeeping ------------------------------------------------
    flops = B * L * (2 * E * 3 * E + 2 * E * E + 2 * 2 * 4 * E * E) \
        + 4 * B * n_head * L * L * dh
    transcendentals = B * (n_head * L * L + L * 4 * E + 2 * L)
    weight_bytes = sum(int(w.size) * w.dtype.itemsize for w in weights)
    bytes_accessed = int(2 * x.size * 4 + weight_bytes)
    act_bytes = TB * L * (3 * E + 4 * E + 8 * E) * 4          # rough fp32 temporaries
    io_bytes = 2 * 2 * TB * L * E * 4                         # double-buffered x / out blocks
    vmem_limit = int(min(64 << 20, max(32 << 20, 2 * weight_bytes + act_bytes + io_bytes)))

    def build(single_buffer_weights):
        def w_spec(w):
            zeros = (0,) * w.ndim
            kw = dict(pipeline_mode=pl.Buffered(1)) if single_buffer_weights else {}
            # Full-array blocks with a constant index map -> weights stay
            # resident in VMEM across the batch grid (no per-step re-DMA).
            return pl.BlockSpec(w.shape, lambda b, _z=zeros: _z, **kw)

        in_specs = [pl.BlockSpec((TB, L, E), lambda b: (b, 0, 0))]
        in_specs += [w_spec(w) for w in weights]

        return pl.pallas_call(
            functools.partial(_block_kernel, n_head=n_head),
            out_shape=jax.ShapeDtypeStruct((B, L, E), x.dtype),
            grid_spec=pltpu.PrefetchScalarGridSpec(
                num_scalar_prefetch=0,
                grid=grid,
                in_specs=in_specs,
                out_specs=pl.BlockSpec((TB, L, E), lambda b: (b, 0, 0)),
            ),
            compiler_params=pltpu.CompilerParams(
                dimension_semantics=("parallel",),
                vmem_limit_bytes=vmem_limit,
            ),
            cost_estimate=pl.CostEstimate(
                flops=int(flops),
                transcendentals=int(transcendentals),
                bytes_accessed=bytes_accessed,
            ),
        )

    try:
        out = build(single_buffer_weights=True)(xb, *weights)
    except Exception:
        # Fallback for jax versions that reject pl.Buffered(1) on resident
        # weights; default double-buffering is semantically identical.
        out = build(single_buffer_weights=False)(xb, *weights)

    return jnp.transpose(out, (1, 0, 2))


# ------------------------------------------------------------------
# Pure-JAX fp32 reference (for a correctness sanity check)
# ------------------------------------------------------------------
def _reference(x, params, n_head):
    L, B, E = x.shape
    dh = E // n_head
    hp = jax.lax.Precision.HIGHEST

    def ln(v, g, b):
        v = v.astype(jnp.float32)
        mu = v.mean(-1, keepdims=True)
        var = ((v - mu) ** 2).mean(-1, keepdims=True)
        return (v - mu) * jax.lax.rsqrt(var + 1e-5) * g + b

    h = ln(x, params['ln_1_g'], params['ln_1_b'])
    qkv = jnp.einsum('lbe,fe->lbf', h, params['in_proj_w'], precision=hp) + params['in_proj_b']
    q, k, v = jnp.split(qkv, 3, axis=-1)
    q = q.reshape(L, B, n_head, dh) * (dh ** -0.5)
    k = k.reshape(L, B, n_head, dh)
    v = v.reshape(L, B, n_head, dh)
    s = jnp.einsum('qbhd,kbhd->bhqk', q, k, precision=hp)
    p = jax.nn.softmax(s, axis=-1)
    o = jnp.einsum('bhqk,kbhd->qbhd', p, v, precision=hp).reshape(L, B, E)
    attn = jnp.einsum('lbe,fe->lbf', o, params['out_proj_w'], precision=hp) + params['out_proj_b']
    x1 = x + attn
    h2 = ln(x1, params['ln_2_g'], params['ln_2_b'])
    hfc = jnp.einsum('lbe,fe->lbf', h2, params['c_fc_w'], precision=hp) + params['c_fc_b']
    hfc = hfc * jax.nn.sigmoid(1.702 * hfc)
    return x1 + jnp.einsum('lbf,ef->lbe', hfc, params['c_proj_w'], precision=hp) + params['c_proj_b']


# ------------------------------------------------------------------
# Deterministic synthetic parameters (PyTorch (Dout, Din) weight layout)
# ------------------------------------------------------------------
def init_params(key, d, scale=0.02):
    ks = jax.random.split(key, 8)
    return dict(
        ln_1_g=jnp.ones((d,), jnp.float32), ln_1_b=jnp.zeros((d,), jnp.float32),
        in_proj_w=jax.random.normal(ks[0], (3 * d, d), jnp.float32) * scale,
        in_proj_b=jax.random.normal(ks[1], (3 * d,), jnp.float32) * scale,
        out_proj_w=jax.random.normal(ks[2], (d, d), jnp.float32) * scale,
        out_proj_b=jax.random.normal(ks[3], (d,), jnp.float32) * scale,
        ln_2_g=jnp.ones((d,), jnp.float32), ln_2_b=jnp.zeros((d,), jnp.float32),
        c_fc_w=jax.random.normal(ks[4], (4 * d, d), jnp.float32) * scale,
        c_fc_b=jax.random.normal(ks[5], (4 * d,), jnp.float32) * scale,
        c_proj_w=jax.random.normal(ks[6], (d, 4 * d), jnp.float32) * scale,
        c_proj_b=jax.random.normal(ks[7], (d,), jnp.float32) * scale,
    )


# ------------------------------------------------------------------
# Main
# ------------------------------------------------------------------
if __name__ == "__main__":
    key = jax.random.PRNGKey(0)
    d_model, n_head = 128, 4        # lane-dense d_model (multiple of 128)
    seq_len, batch = 8, 2

    k_x, k_p = jax.random.split(key)
    x = jax.random.normal(k_x, (seq_len, batch, d_model), jnp.float32)
    params = init_params(k_p, d_model)

    out = residual_attention_block(x, params, n_head)
    jax.block_until_ready(out)

    ref = _reference(x, params, n_head)
    assert out.shape == (seq_len, batch, d_model)
    # bf16 matmul operands (fp32 accumulation) vs. fp32 reference -> loose-but-
    # deliberate tolerance; errors here are ~1e-3 absolute.
    assert jnp.allclose(out, ref, atol=2e-2, rtol=2e-2), "mismatch vs pure-JAX reference"

    print("KERNEL_OK")
</pallas_src>

<mosaic_0001>
module attributes {stable_mosaic.version = 11 : i64} {
  func.func @_block_kernel(%arg0: i32, %arg1: memref<2x8x128xf32, #tpu.memory_space<vmem>>, %arg2: memref<1x128xf32, #tpu.memory_space<vmem>>, %arg3: memref<1x128xf32, #tpu.memory_space<vmem>>, %arg4: memref<384x128xbf16, #tpu.memory_space<vmem>>, %arg5: memref<1x384xf32, #tpu.memory_space<vmem>>, %arg6: memref<4x128x32xbf16, #tpu.memory_space<vmem>>, %arg7: memref<1x128xf32, #tpu.memory_space<vmem>>, %arg8: memref<1x128xf32, #tpu.memory_space<vmem>>, %arg9: memref<1x128xf32, #tpu.memory_space<vmem>>, %arg10: memref<512x128xbf16, #tpu.memory_space<vmem>>, %arg11: memref<1x512xf32, #tpu.memory_space<vmem>>, %arg12: memref<128x512xbf16, #tpu.memory_space<vmem>>, %arg13: memref<1x128xf32, #tpu.memory_space<vmem>>, %arg14: memref<2x8x128xf32, #tpu.memory_space<vmem>>) attributes {dimension_semantics = [#tpu.dimension_semantics<parallel>], iteration_bounds = array<i64: 1>, scalar_prefetch = 0 : i64, scratch_operands = 0 : i64, tpu.core_type = #tpu.core_type<tc>, window_params = [{transform_indices = @transform_0, window_bounds = array<i64: 2, 8, 128>}, {pipeline_mode = #tpu.pipeline_mode<synchronous>, transform_indices = @transform_1, window_bounds = array<i64: 1, 128>}, {pipeline_mode = #tpu.pipeline_mode<synchronous>, transform_indices = @transform_2, window_bounds = array<i64: 1, 128>}, {pipeline_mode = #tpu.pipeline_mode<synchronous>, transform_indices = @transform_3, window_bounds = array<i64: 384, 128>}, {pipeline_mode = #tpu.pipeline_mode<synchronous>, transform_indices = @transform_4, window_bounds = array<i64: 1, 384>}, {pipeline_mode = #tpu.pipeline_mode<synchronous>, transform_indices = @transform_5, window_bounds = array<i64: 4, 128, 32>}, {pipeline_mode = #tpu.pipeline_mode<synchronous>, transform_indices = @transform_6, window_bounds = array<i64: 1, 128>}, {pipeline_mode = #tpu.pipeline_mode<synchronous>, transform_indices = @transform_7, window_bounds = array<i64: 1, 128>}, {pipeline_mode = #tpu.pipeline_mode<synchronous>, transform_indices = @transform_8, window_bounds = array<i64: 1, 128>}, {pipeline_mode = #tpu.pipeline_mode<synchronous>, transform_indices = @transform_9, window_bounds = array<i64: 512, 128>}, {pipeline_mode = #tpu.pipeline_mode<synchronous>, transform_indices = @transform_10, window_bounds = array<i64: 1, 512>}, {pipeline_mode = #tpu.pipeline_mode<synchronous>, transform_indices = @transform_11, window_bounds = array<i64: 128, 512>}, {pipeline_mode = #tpu.pipeline_mode<synchronous>, transform_indices = @transform_12, window_bounds = array<i64: 1, 128>}, {transform_indices = @transform_13, window_bounds = array<i64: 2, 8, 128>}]} {
    %c0 = arith.constant 0 : index
    %c0_0 = arith.constant 0 : index
    %c0_1 = arith.constant 0 : index
    %0 = vector.load %arg1[%c0, %c0_0, %c0_1] : memref<2x8x128xf32, #tpu.memory_space<vmem>>, vector<2x8x128xf32>
    %1 = vector.shape_cast %0 : vector<2x8x128xf32> to vector<16x128xf32>
    %cst = arith.constant dense<0.000000e+00> : vector<16xf32>
    %2 = vector.multi_reduction <add>, %1, %cst [1] : vector<16x128xf32> to vector<16xf32>
    %3 = vector.shape_cast %2 : vector<16xf32> to vector<16x1xf32>
    %cst_2 = arith.constant 1.280000e+02 : f32
    %4 = vector.broadcast %cst_2 : f32 to vector<16x1xf32>
    %5 = arith.divf %3, %4 : vector<16x1xf32>
    %6 = vector.broadcast %5 : vector<16x1xf32> to vector<16x128xf32>
    %7 = arith.subf %1, %6 : vector<16x128xf32>
    %8 = arith.mulf %7, %7 : vector<16x128xf32>
    %cst_3 = arith.constant dense<0.000000e+00> : vector<16xf32>
    %9 = vector.multi_reduction <add>, %8, %cst_3 [1] : vector<16x128xf32> to vector<16xf32>
    %10 = vector.shape_cast %9 : vector<16xf32> to vector<16x1xf32>
    %cst_4 = arith.constant 1.280000e+02 : f32
    %11 = vector.broadcast %cst_4 : f32 to vector<16x1xf32>
    %12 = arith.divf %10, %11 : vector<16x1xf32>
    %13 = vector.broadcast %5 : vector<16x1xf32> to vector<16x128xf32>
    %14 = arith.subf %1, %13 : vector<16x128xf32>
    %cst_5 = arith.constant 9.99999974E-6 : f32
    %15 = vector.broadcast %cst_5 : f32 to vector<16x1xf32>
    %16 = arith.addf %12, %15 : vector<16x1xf32>
    %17 = math.rsqrt %16 : vector<16x1xf32>
    %18 = vector.broadcast %17 : vector<16x1xf32> to vector<16x128xf32>
    %19 = arith.mulf %14, %18 : vector<16x128xf32>
    %c0_6 = arith.constant 0 : index
    %c0_7 = arith.constant 0 : index
    %20 = vector.load %arg2[%c0_6, %c0_7] : memref<1x128xf32, #tpu.memory_space<vmem>>, vector<1x128xf32>
    %21 = vector.broadcast %20 : vector<1x128xf32> to vector<16x128xf32>
    %22 = arith.mulf %19, %21 : vector<16x128xf32>
    %c0_8 = arith.constant 0 : index
    %c0_9 = arith.constant 0 : index
    %23 = vector.load %arg3[%c0_8, %c0_9] : memref<1x128xf32, #tpu.memory_space<vmem>>, vector<1x128xf32>
    %24 = vector.broadcast %23 : vector<1x128xf32> to vector<16x128xf32>
    %25 = arith.addf %22, %24 : vector<16x128xf32>
    %26 = arith.truncf %25 : vector<16x128xf32> to vector<16x128xbf16>
    %c0_10 = arith.constant 0 : index
    %c0_11 = arith.constant 0 : index
    %27 = vector.load %arg4[%c0_10, %c0_11] : memref<384x128xbf16, #tpu.memory_space<vmem>>, vector<384x128xbf16>
    %cst_12 = arith.constant dense<0.000000e+00> : vector<16x384xf32>
    %28 = tpu.matmul %26, %27, %cst_12 {dimension_numbers = #tpu.dot_dimension_numbers<[1], [1], [0], [0], [0, 0, 1, 0], [], []>} : vector<16x128xbf16>, vector<384x128xbf16>, vector<16x384xf32> -> vector<16x384xf32>
    %c0_13 = arith.constant 0 : index
    %c0_14 = arith.constant 0 : index
    %29 = vector.load %arg5[%c0_13, %c0_14] : memref<1x384xf32, #tpu.memory_space<vmem>>, vector<1x384xf32>
    %30 = vector.broadcast %29 : vector<1x384xf32> to vector<16x384xf32>
    %31 = arith.addf %28, %30 : vector<16x384xf32>
    %32 = vector.extract_strided_slice %31 {offsets = [0, 0], sizes = [16, 32], strides = [1, 1]} : vector<16x384xf32> to vector<16x32xf32>
    %33 = vector.shape_cast %32 : vector<16x32xf32> to vector<2x8x32xf32>
    %34 = vector.extract_strided_slice %31 {offsets = [0, 32], sizes = [16, 32], strides = [1, 1]} : vector<16x384xf32> to vector<16x32xf32>
    %35 = vector.shape_cast %34 : vector<16x32xf32> to vector<2x8x32xf32>
    %36 = vector.extract_strided_slice %31 {offsets = [0, 64], sizes = [16, 32], strides = [1, 1]} : vector<16x384xf32> to vector<16x32xf32>
    %37 = vector.shape_cast %36 : vector<16x32xf32> to vector<2x8x32xf32>
    %38 = vector.extract_strided_slice %31 {offsets = [0, 96], sizes = [16, 32], strides = [1, 1]} : vector<16x384xf32> to vector<16x32xf32>
    %39 = vector.shape_cast %38 : vector<16x32xf32> to vector<2x8x32xf32>
    %40 = tpu.concatenate %33, %35, %37, %39 in 0 : vector<2x8x32xf32>, vector<2x8x32xf32>, vector<2x8x32xf32>, vector<2x8x32xf32> -> vector<8x8x32xf32>
    %41 = arith.truncf %40 : vector<8x8x32xf32> to vector<8x8x32xbf16>
    %42 = vector.extract_strided_slice %31 {offsets = [0, 128], sizes = [16, 32], strides = [1, 1]} : vector<16x384xf32> to vector<16x32xf32>
    %43 = vector.shape_cast %42 : vector<16x32xf32> to vector<2x8x32xf32>
    %44 = vector.extract_strided_slice %31 {offsets = [0, 160], sizes = [16, 32], strides = [1, 1]} : vector<16x384xf32> to vector<16x32xf32>
    %45 = vector.shape_cast %44 : vector<16x32xf32> to vector<2x8x32xf32>
    %46 = vector.extract_strided_slice %31 {offsets = [0, 192], sizes = [16, 32], strides = [1, 1]} : vector<16x384xf32> to vector<16x32xf32>
    %47 = vector.shape_cast %46 : vector<16x32xf32> to vector<2x8x32xf32>
    %48 = vector.extract_strided_slice %31 {offsets = [0, 224], sizes = [16, 32], strides = [1, 1]} : vector<16x384xf32> to vector<16x32xf32>
    %49 = vector.shape_cast %48 : vector<16x32xf32> to vector<2x8x32xf32>
    %50 = tpu.concatenate %43, %45, %47, %49 in 0 : vector<2x8x32xf32>, vector<2x8x32xf32>, vector<2x8x32xf32>, vector<2x8x32xf32> -> vector<8x8x32xf32>
    %51 = arith.truncf %50 : vector<8x8x32xf32> to vector<8x8x32xbf16>
    %52 = vector.extract_strided_slice %31 {offsets = [0, 256], sizes = [16, 32], strides = [1, 1]} : vector<16x384xf32> to vector<16x32xf32>
    %53 = vector.shape_cast %52 : vector<16x32xf32> to vector<2x8x32xf32>
    %54 = vector.extract_strided_slice %31 {offsets = [0, 288], sizes = [16, 32], strides = [1, 1]} : vector<16x384xf32> to vector<16x32xf32>
    %55 = vector.shape_cast %54 : vector<16x32xf32> to vector<2x8x32xf32>
    %56 = vector.extract_strided_slice %31 {offsets = [0, 320], sizes = [16, 32], strides = [1, 1]} : vector<16x384xf32> to vector<16x32xf32>
    %57 = vector.shape_cast %56 : vector<16x32xf32> to vector<2x8x32xf32>
    %58 = vector.extract_strided_slice %31 {offsets = [0, 352], sizes = [16, 32], strides = [1, 1]} : vector<16x384xf32> to vector<16x32xf32>
    %59 = vector.shape_cast %58 : vector<16x32xf32> to vector<2x8x32xf32>
    %60 = tpu.concatenate %53, %55, %57, %59 in 0 : vector<2x8x32xf32>, vector<2x8x32xf32>, vector<2x8x32xf32>, vector<2x8x32xf32> -> vector<8x8x32xf32>
    %61 = arith.truncf %60 : vector<8x8x32xf32> to vector<8x8x32xbf16>
    "tpu.trace_start"() <{level = 10 : i32, message = "gqd,gkd->gqk"}> : () -> ()
    %cst_15 = arith.constant dense<0.000000e+00> : vector<8x8x8xf32>
    %62 = tpu.matmul %41, %51, %cst_15 {dimension_numbers = #tpu.dot_dimension_numbers<[2], [2], [1], [1], [0, 0, 0, 1, 1, 1], [0], [0]>} : vector<8x8x32xbf16>, vector<8x8x32xbf16>, vector<8x8x8xf32> -> vector<8x8x8xf32>
    "tpu.trace_stop"() : () -> ()
    %cst_16 = arith.constant dense<0xFF800000> : vector<8x8xf32>
    %63 = vector.multi_reduction <maximumf>, %62, %cst_16 [2] : vector<8x8x8xf32> to vector<8x8xf32>
    %64 = vector.shape_cast %63 : vector<8x8xf32> to vector<8x8x1xf32>
    %65 = vector.broadcast %64 : vector<8x8x1xf32> to vector<8x8x8xf32>
    %66 = arith.subf %62, %65 : vector<8x8x8xf32>
    %67 = math.exp %66 : vector<8x8x8xf32>
    %cst_17 = arith.constant dense<0.000000e+00> : vector<8x8xf32>
    %68 = vector.multi_reduction <add>, %67, %cst_17 [2] : vector<8x8x8xf32> to vector<8x8xf32>
    %69 = vector.shape_cast %68 : vector<8x8xf32> to vector<8x8x1xf32>
    %70 = vector.broadcast %69 : vector<8x8x1xf32> to vector<8x8x8xf32>
    %71 = arith.divf %67, %70 : vector<8x8x8xf32>
    %72 = arith.truncf %71 : vector<8x8x8xf32> to vector<8x8x8xbf16>
    "tpu.trace_start"() <{level = 10 : i32, message = "gqk,gkd->gqd"}> : () -> ()
    %cst_18 = arith.constant dense<0.000000e+00> : vector<8x8x32xf32>
    %73 = tpu.matmul %72, %61, %cst_18 {dimension_numbers = #tpu.dot_dimension_numbers<[2], [1], [1], [2], [0, 0, 0, 1, 1, 2], [0], [0]>} : vector<8x8x8xbf16>, vector<8x8x32xbf16>, vector<8x8x32xf32> -> vector<8x8x32xf32>
    "tpu.trace_stop"() : () -> ()
    %74 = vector.shape_cast %73 : vector<8x8x32xf32> to vector<4x16x32xf32>
    %75 = arith.truncf %74 : vector<4x16x32xf32> to vector<4x16x32xbf16>
    %cst_19 = arith.constant 0.000000e+00 : f32
    %76 = vector.broadcast %cst_19 : f32 to vector<16x128xf32>
    %77 = vector.extract_strided_slice %75 {offsets = [0, 0, 0], sizes = [1, 16, 32], strides = [1, 1, 1]} : vector<4x16x32xbf16> to vector<1x16x32xbf16>
    %78 = vector.shape_cast %77 : vector<1x16x32xbf16> to vector<16x32xbf16>
    %c0_20 = arith.constant 0 : index
    %c0_21 = arith.constant 0 : index
    %c0_22 = arith.constant 0 : index
    %79 = vector.load %arg6[%c0_20, %c0_21, %c0_22] : memref<4x128x32xbf16, #tpu.memory_space<vmem>>, vector<1x128x32xbf16>
    %80 = vector.shape_cast %79 : vector<1x128x32xbf16> to vector<128x32xbf16>
    %cst_23 = arith.constant dense<0.000000e+00> : vector<16x128xf32>
    %81 = tpu.matmul %78, %80, %cst_23 {dimension_numbers = #tpu.dot_dimension_numbers<[1], [1], [0], [0], [0, 0, 1, 0], [], []>} : vector<16x32xbf16>, vector<128x32xbf16>, vector<16x128xf32> -> vector<16x128xf32>
    %82 = arith.addf %76, %81 : vector<16x128xf32>
    %83 = vector.extract_strided_slice %75 {offsets = [1, 0, 0], sizes = [1, 16, 32], strides = [1, 1, 1]} : vector<4x16x32xbf16> to vector<1x16x32xbf16>
    %84 = vector.shape_cast %83 : vector<1x16x32xbf16> to vector<16x32xbf16>
    %c1 = arith.constant 1 : index
    %c0_24 = arith.constant 0 : index
    %c0_25 = arith.constant 0 : index
    %85 = vector.load %arg6[%c1, %c0_24, %c0_25] : memref<4x128x32xbf16, #tpu.memory_space<vmem>>, vector<1x128x32xbf16>
    %86 = vector.shape_cast %85 : vector<1x128x32xbf16> to vector<128x32xbf16>
    %cst_26 = arith.constant dense<0.000000e+00> : vector<16x128xf32>
    %87 = tpu.matmul %84, %86, %cst_26 {dimension_numbers = #tpu.dot_dimension_numbers<[1], [1], [0], [0], [0, 0, 1, 0], [], []>} : vector<16x32xbf16>, vector<128x32xbf16>, vector<16x128xf32> -> vector<16x128xf32>
    %88 = arith.addf %82, %87 : vector<16x128xf32>
    %89 = vector.extract_strided_slice %75 {offsets = [2, 0, 0], sizes = [1, 16, 32], strides = [1, 1, 1]} : vector<4x16x32xbf16> to vector<1x16x32xbf16>
    %90 = vector.shape_cast %89 : vector<1x16x32xbf16> to vector<16x32xbf16>
    %c2 = arith.constant 2 : index
    %c0_27 = arith.constant 0 : index
    %c0_28 = arith.constant 0 : index
    %91 = vector.load %arg6[%c2, %c0_27, %c0_28] : memref<4x128x32xbf16, #tpu.memory_space<vmem>>, vector<1x128x32xbf16>
    %92 = vector.shape_cast %91 : vector<1x128x32xbf16> to vector<128x32xbf16>
    %cst_29 = arith.constant dense<0.000000e+00> : vector<16x128xf32>
    %93 = tpu.matmul %90, %92, %cst_29 {dimension_numbers = #tpu.dot_dimension_numbers<[1], [1], [0], [0], [0, 0, 1, 0], [], []>} : vector<16x32xbf16>, vector<128x32xbf16>, vector<16x128xf32> -> vector<16x128xf32>
    %94 = arith.addf %88, %93 : vector<16x128xf32>
    %95 = vector.extract_strided_slice %75 {offsets = [3, 0, 0], sizes = [1, 16, 32], strides = [1, 1, 1]} : vector<4x16x32xbf16> to vector<1x16x32xbf16>
    %96 = vector.shape_cast %95 : vector<1x16x32xbf16> to vector<16x32xbf16>
    %c3 = arith.constant 3 : index
    %c0_30 = arith.constant 0 : index
    %c0_31 = arith.constant 0 : index
    %97 = vector.load %arg6[%c3, %c0_30, %c0_31] : memref<4x128x32xbf16, #tpu.memory_space<vmem>>, vector<1x128x32xbf16>
    %98 = vector.shape_cast %97 : vector<1x128x32xbf16> to vector<128x32xbf16>
    %cst_32 = arith.constant dense<0.000000e+00> : vector<16x128xf32>
    %99 = tpu.matmul %96, %98, %cst_32 {dimension_numbers = #tpu.dot_dimension_numbers<[1], [1], [0], [0], [0, 0, 1, 0], [], []>} : vector<16x32xbf16>, vector<128x32xbf16>, vector<16x128xf32> -> vector<16x128xf32>
    %100 = arith.addf %94, %99 : vector<16x128xf32>
    %101 = arith.addf %1, %100 : vector<16x128xf32>
    %c0_33 = arith.constant 0 : index
    %c0_34 = arith.constant 0 : index
    %102 = vector.load %arg7[%c0_33, %c0_34] : memref<1x128xf32, #tpu.memory_space<vmem>>, vector<1x128xf32>
    %103 = vector.broadcast %102 : vector<1x128xf32> to vector<16x128xf32>
    %104 = arith.addf %101, %103 : vector<16x128xf32>
    %cst_35 = arith.constant dense<0.000000e+00> : vector<16xf32>
    %105 = vector.multi_reduction <add>, %104, %cst_35 [1] : vector<16x128xf32> to vector<16xf32>
    %106 = vector.shape_cast %105 : vector<16xf32> to vector<16x1xf32>
    %cst_36 = arith.constant 1.280000e+02 : f32
    %107 = vector.broadcast %cst_36 : f32 to vector<16x1xf32>
    %108 = arith.divf %106, %107 : vector<16x1xf32>
    %109 = vector.broadcast %108 : vector<16x1xf32> to vector<16x128xf32>
    %110 = arith.subf %104, %109 : vector<16x128xf32>
    %111 = arith.mulf %110, %110 : vector<16x128xf32>
    %cst_37 = arith.constant dense<0.000000e+00> : vector<16xf32>
    %112 = vector.multi_reduction <add>, %111, %cst_37 [1] : vector<16x128xf32> to vector<16xf32>
    %113 = vector.shape_cast %112 : vector<16xf32> to vector<16x1xf32>
    %cst_38 = arith.constant 1.280000e+02 : f32
    %114 = vector.broadcast %cst_38 : f32 to vector<16x1xf32>
    %115 = arith.divf %113, %114 : vector<16x1xf32>
    %116 = vector.broadcast %108 : vector<16x1xf32> to vector<16x128xf32>
    %117 = arith.subf %104, %116 : vector<16x128xf32>
    %cst_39 = arith.constant 9.99999974E-6 : f32
    %118 = vector.broadcast %cst_39 : f32 to vector<16x1xf32>
    %119 = arith.addf %115, %118 : vector<16x1xf32>
    %120 = math.rsqrt %119 : vector<16x1xf32>
    %121 = vector.broadcast %120 : vector<16x1xf32> to vector<16x128xf32>
    %122 = arith.mulf %117, %121 : vector<16x128xf32>
    %c0_40 = arith.constant 0 : index
    %c0_41 = arith.constant 0 : index
    %123 = vector.load %arg8[%c0_40, %c0_41] : memref<1x128xf32, #tpu.memory_space<vmem>>, vector<1x128xf32>
    %124 = vector.broadcast %123 : vector<1x128xf32> to vector<16x128xf32>
    %125 = arith.mulf %122, %124 : vector<16x128xf32>
    %c0_42 = arith.constant 0 : index
    %c0_43 = arith.constant 0 : index
    %126 = vector.load %arg9[%c0_42, %c0_43] : memref<1x128xf32, #tpu.memory_space<vmem>>, vector<1x128xf32>
    %127 = vector.broadcast %126 : vector<1x128xf32> to vector<16x128xf32>
    %128 = arith.addf %125, %127 : vector<16x128xf32>
    %129 = arith.truncf %128 : vector<16x128xf32> to vector<16x128xbf16>
    %c0_44 = arith.constant 0 : index
    %c0_45 = arith.constant 0 : index
    %130 = vector.load %arg10[%c0_44, %c0_45] : memref<512x128xbf16, #tpu.memory_space<vmem>>, vector<512x128xbf16>
    %cst_46 = arith.constant dense<0.000000e+00> : vector<16x512xf32>
    %131 = tpu.matmul %129, %130, %cst_46 {dimension_numbers = #tpu.dot_dimension_numbers<[1], [1], [0], [0], [0, 0, 1, 0], [], []>} : vector<16x128xbf16>, vector<512x128xbf16>, vector<16x512xf32> -> vector<16x512xf32>
    %c0_47 = arith.constant 0 : index
    %c0_48 = arith.constant 0 : index
    %132 = vector.load %arg11[%c0_47, %c0_48] : memref<1x512xf32, #tpu.memory_space<vmem>>, vector<1x512xf32>
    %133 = vector.broadcast %132 : vector<1x512xf32> to vector<16x512xf32>
    %134 = arith.addf %131, %133 : vector<16x512xf32>
    %cst_49 = arith.constant 1.702000e+00 : f32
    %135 = vector.broadcast %cst_49 : f32 to vector<16x512xf32>
    %136 = arith.mulf %135, %134 : vector<16x512xf32>
    %137 = arith.negf %136 : vector<16x512xf32>
    %138 = math.exp %137 : vector<16x512xf32>
    %cst_50 = arith.constant 1.000000e+00 : f32
    %139 = vector.broadcast %cst_50 : f32 to vector<16x512xf32>
    %140 = arith.addf %139, %138 : vector<16x512xf32>
    %141 = arith.divf %139, %140 : vector<16x512xf32>
    %142 = arith.mulf %134, %141 : vector<16x512xf32>
    %143 = arith.truncf %142 : vector<16x512xf32> to vector<16x512xbf16>
    %c0_51 = arith.constant 0 : index
    %c0_52 = arith.constant 0 : index
    %144 = vector.load %arg12[%c0_51, %c0_52] : memref<128x512xbf16, #tpu.memory_space<vmem>>, vector<128x512xbf16>
    %cst_53 = arith.constant dense<0.000000e+00> : vector<16x128xf32>
    %145 = tpu.matmul %143, %144, %cst_53 {dimension_numbers = #tpu.dot_dimension_numbers<[1], [1], [0], [0], [0, 0, 1, 0], [], []>} : vector<16x512xbf16>, vector<128x512xbf16>, vector<16x128xf32> -> vector<16x128xf32>
    %c0_54 = arith.constant 0 : index
    %c0_55 = arith.constant 0 : index
    %146 = vector.load %arg13[%c0_54, %c0_55] : memref<1x128xf32, #tpu.memory_space<vmem>>, vector<1x128xf32>
    %147 = vector.broadcast %146 : vector<1x128xf32> to vector<16x128xf32>
    %148 = arith.addf %145, %147 : vector<16x128xf32>
    %149 = arith.addf %104, %148 : vector<16x128xf32>
    %150 = vector.shape_cast %149 : vector<16x128xf32> to vector<2x8x128xf32>
    %c0_56 = arith.constant 0 : index
    %c0_57 = arith.constant 0 : index
    %c0_58 = arith.constant 0 : index
    %151 = vector.load %arg14[%c0_56, %c0_57, %c0_58] : memref<2x8x128xf32, #tpu.memory_space<vmem>>, vector<2x8x128xf32>
    tpu.vector_store %arg14[%c0_56, %c0_57, %c0_58], %150 {strides = array<i32>} : memref<2x8x128xf32, #tpu.memory_space<vmem>>, vector<2x8x128xf32>,
    return
  }
  func.func @transform_0(%arg0: i32) -> (i32, i32, i32) {
    %c0_i32 = arith.constant 0 : i32
    %c0_i32_0 = arith.constant 0 : i32
    %c0_i32_1 = arith.constant 0 : i32
    return %arg0, %c0_i32, %c0_i32_0 : i32, i32, i32
  }
  func.func @transform_1(%arg0: i32) -> (i32, i32) {
    %c0_i32 = arith.constant 0 : i32
    %c0_i32_0 = arith.constant 0 : i32
    %c0_i32_1 = arith.constant 0 : i32
    return %c0_i32, %c0_i32_0 : i32, i32
  }
  func.func @transform_2(%arg0: i32) -> (i32, i32) {
    %c0_i32 = arith.constant 0 : i32
    %c0_i32_0 = arith.constant 0 : i32
    %c0_i32_1 = arith.constant 0 : i32
    return %c0_i32, %c0_i32_0 : i32, i32
  }
  func.func @transform_3(%arg0: i32) -> (i32, i32) {
    %c0_i32 = arith.constant 0 : i32
    %c0_i32_0 = arith.constant 0 : i32
    %c0_i32_1 = arith.constant 0 : i32
    return %c0_i32, %c0_i32_0 : i32, i32
  }
  func.func @transform_4(%arg0: i32) -> (i32, i32) {
    %c0_i32 = arith.constant 0 : i32
    %c0_i32_0 = arith.constant 0 : i32
    %c0_i32_1 = arith.constant 0 : i32
    return %c0_i32, %c0_i32_0 : i32, i32
  }
  func.func @transform_5(%arg0: i32) -> (i32, i32, i32) {
    %c0_i32 = arith.constant 0 : i32
    %c0_i32_0 = arith.constant 0 : i32
    %c0_i32_1 = arith.constant 0 : i32
    %c0_i32_2 = arith.constant 0 : i32
    return %c0_i32, %c0_i32_0, %c0_i32_1 : i32, i32, i32
  }
  func.func @transform_6(%arg0: i32) -> (i32, i32) {
    %c0_i32 = arith.constant 0 : i32
    %c0_i32_0 = arith.constant 0 : i32
    %c0_i32_1 = arith.constant 0 : i32
    return %c0_i32, %c0_i32_0 : i32, i32
  }
  func.func @transform_7(%arg0: i32) -> (i32, i32) {
    %c0_i32 = arith.constant 0 : i32
    %c0_i32_0 = arith.constant 0 : i32
    %c0_i32_1 = arith.constant 0 : i32
    return %c0_i32, %c0_i32_0 : i32, i32
  }
  func.func @transform_8(%arg0: i32) -> (i32, i32) {
    %c0_i32 = arith.constant 0 : i32
    %c0_i32_0 = arith.constant 0 : i32
    %c0_i32_1 = arith.constant 0 : i32
    return %c0_i32, %c0_i32_0 : i32, i32
  }
  func.func @transform_9(%arg0: i32) -> (i32, i32) {
    %c0_i32 = arith.constant 0 : i32
    %c0_i32_0 = arith.constant 0 : i32
    %c0_i32_1 = arith.constant 0 : i32
    return %c0_i32, %c0_i32_0 : i32, i32
  }
  func.func @transform_10(%arg0: i32) -> (i32, i32) {
    %c0_i32 = arith.constant 0 : i32
    %c0_i32_0 = arith.constant 0 : i32
    %c0_i32_1 = arith.constant 0 : i32
    return %c0_i32, %c0_i32_0 : i32, i32
  }
  func.func @transform_11(%arg0: i32) -> (i32, i32) {
    %c0_i32 = arith.constant 0 : i32
    %c0_i32_0 = arith.constant 0 : i32
    %c0_i32_1 = arith.constant 0 : i32
    return %c0_i32, %c0_i32_0 : i32, i32
  }
  func.func @transform_12(%arg0: i32) -> (i32, i32) {
    %c0_i32 = arith.constant 0 : i32
    %c0_i32_0 = arith.constant 0 : i32
    %c0_i32_1 = arith.constant 0 : i32
    return %c0_i32, %c0_i32_0 : i32, i32
  }
  func.func @transform_13(%arg0: i32) -> (i32, i32, i32) {
    %c0_i32 = arith.constant 0 : i32
    %c0_i32_0 = arith.constant 0 : i32
    %c0_i32_1 = arith.constant 0 : i32
    return %arg0, %c0_i32, %c0_i32_0 : i32, i32, i32
  }
}

module attributes {stable_mosaic.version = 11 : i64} {
  func.func @_block_kernel(%arg0: i32, %arg1: memref<2x8x128xf32, #tpu.memory_space<vmem>>, %arg2: memref<1x128xf32, #tpu.memory_space<vmem>>, %arg3: memref<1x128xf32, #tpu.memory_space<vmem>>, %arg4: memref<384x128xbf16, #tpu.memory_space<vmem>>, %arg5: memref<1x384xf32, #tpu.memory_space<vmem>>, %arg6: memref<4x128x32xbf16, #tpu.memory_space<vmem>>, %arg7: memref<1x128xf32, #tpu.memory_space<vmem>>, %arg8: memref<1x128xf32, #tpu.memory_space<vmem>>, %arg9: memref<1x128xf32, #tpu.memory_space<vmem>>, %arg10: memref<512x128xbf16, #tpu.memory_space<vmem>>, %arg11: memref<1x512xf32, #tpu.memory_space<vmem>>, %arg12: memref<128x512xbf16, #tpu.memory_space<vmem>>, %arg13: memref<1x128xf32, #tpu.memory_space<vmem>>, %arg14: memref<2x8x128xf32, #tpu.memory_space<vmem>>) attributes {dimension_semantics = [#tpu.dimension_semantics<parallel>], iteration_bounds = array<i64: 1>, scalar_prefetch = 0 : i64, scratch_operands = 0 : i64, tpu.core_type = #tpu.core_type<tc>, window_params = [{transform_indices = @transform_0, window_bounds = array<i64: 2, 8, 128>}, {pipeline_mode = #tpu.pipeline_mode<synchronous>, transform_indices = @transform_1, window_bounds = array<i64: 1, 128>}, {pipeline_mode = #tpu.pipeline_mode<synchronous>, transform_indices = @transform_2, window_bounds = array<i64: 1, 128>}, {pipeline_mode = #tpu.pipeline_mode<synchronous>, transform_indices = @transform_3, window_bounds = array<i64: 384, 128>}, {pipeline_mode = #tpu.pipeline_mode<synchronous>, transform_indices = @transform_4, window_bounds = array<i64: 1, 384>}, {pipeline_mode = #tpu.pipeline_mode<synchronous>, transform_indices = @transform_5, window_bounds = array<i64: 4, 128, 32>}, {pipeline_mode = #tpu.pipeline_mode<synchronous>, transform_indices = @transform_6, window_bounds = array<i64: 1, 128>}, {pipeline_mode = #tpu.pipeline_mode<synchronous>, transform_indices = @transform_7, window_bounds = array<i64: 1, 128>}, {pipeline_mode = #tpu.pipeline_mode<synchronous>, transform_indices = @transform_8, window_bounds = array<i64: 1, 128>}, {pipeline_mode = #tpu.pipeline_mode<synchronous>, transform_indices = @transform_9, window_bounds = array<i64: 512, 128>}, {pipeline_mode = #tpu.pipeline_mode<synchronous>, transform_indices = @transform_10, window_bounds = array<i64: 1, 512>}, {pipeline_mode = #tpu.pipeline_mode<synchronous>, transform_indices = @transform_11, window_bounds = array<i64: 128, 512>}, {pipeline_mode = #tpu.pipeline_mode<synchronous>, transform_indices = @transform_12, window_bounds = array<i64: 1, 128>}, {transform_indices = @transform_13, window_bounds = array<i64: 2, 8, 128>}]} {
    %c0 = arith.constant 0 : index
    %c0_0 = arith.constant 0 : index
    %c0_1 = arith.constant 0 : index
    %0 = vector.load %arg1[%c0, %c0_0, %c0_1] : memref<2x8x128xf32, #tpu.memory_space<vmem>>, vector<2x8x128xf32>
    %1 = vector.shape_cast %0 : vector<2x8x128xf32> to vector<16x128xf32>
    %cst = arith.constant dense<0.000000e+00> : vector<16xf32>
    %2 = vector.multi_reduction <add>, %1, %cst [1] : vector<16x128xf32> to vector<16xf32>
    %3 = vector.shape_cast %2 : vector<16xf32> to vector<16x1xf32>
    %cst_2 = arith.constant 1.280000e+02 : f32
    %4 = vector.broadcast %cst_2 : f32 to vector<16x1xf32>
    %5 = arith.divf %3, %4 : vector<16x1xf32>
    %6 = vector.broadcast %5 : vector<16x1xf32> to vector<16x128xf32>
    %7 = arith.subf %1, %6 : vector<16x128xf32>
    %8 = arith.mulf %7, %7 : vector<16x128xf32>
    %cst_3 = arith.constant dense<0.000000e+00> : vector<16xf32>
    %9 = vector.multi_reduction <add>, %8, %cst_3 [1] : vector<16x128xf32> to vector<16xf32>
    %10 = vector.shape_cast %9 : vector<16xf32> to vector<16x1xf32>
    %cst_4 = arith.constant 1.280000e+02 : f32
    %11 = vector.broadcast %cst_4 : f32 to vector<16x1xf32>
    %12 = arith.divf %10, %11 : vector<16x1xf32>
    %13 = vector.broadcast %5 : vector<16x1xf32> to vector<16x128xf32>
    %14 = arith.subf %1, %13 : vector<16x128xf32>
    %cst_5 = arith.constant 9.99999974E-6 : f32
    %15 = vector.broadcast %cst_5 : f32 to vector<16x1xf32>
    %16 = arith.addf %12, %15 : vector<16x1xf32>
    %17 = math.rsqrt %16 : vector<16x1xf32>
    %18 = vector.broadcast %17 : vector<16x1xf32> to vector<16x128xf32>
    %19 = arith.mulf %14, %18 : vector<16x128xf32>
    %c0_6 = arith.constant 0 : index
    %c0_7 = arith.constant 0 : index
    %20 = vector.load %arg2[%c0_6, %c0_7] : memref<1x128xf32, #tpu.memory_space<vmem>>, vector<1x128xf32>
    %21 = vector.broadcast %20 : vector<1x128xf32> to vector<16x128xf32>
    %22 = arith.mulf %19, %21 : vector<16x128xf32>
    %c0_8 = arith.constant 0 : index
    %c0_9 = arith.constant 0 : index
    %23 = vector.load %arg3[%c0_8, %c0_9] : memref<1x128xf32, #tpu.memory_space<vmem>>, vector<1x128xf32>
    %24 = vector.broadcast %23 : vector<1x128xf32> to vector<16x128xf32>
    %25 = arith.addf %22, %24 : vector<16x128xf32>
    %26 = arith.truncf %25 : vector<16x128xf32> to vector<16x128xbf16>
    %c0_10 = arith.constant 0 : index
    %c0_11 = arith.constant 0 : index
    %27 = vector.load %arg4[%c0_10, %c0_11] : memref<384x128xbf16, #tpu.memory_space<vmem>>, vector<384x128xbf16>
    %cst_12 = arith.constant dense<0.000000e+00> : vector<16x384xf32>
    %28 = tpu.matmul %26, %27, %cst_12 {dimension_numbers = #tpu.dot_dimension_numbers<[1], [1], [0], [0], [0, 0, 1, 0], [], []>} : vector<16x128xbf16>, vector<384x128xbf16>, vector<16x384xf32> -> vector<16x384xf32>
    %c0_13 = arith.constant 0 : index
    %c0_14 = arith.constant 0 : index
    %29 = vector.load %arg5[%c0_13, %c0_14] : memref<1x384xf32, #tpu.memory_space<vmem>>, vector<1x384xf32>
    %30 = vector.broadcast %29 : vector<1x384xf32> to vector<16x384xf32>
    %31 = arith.addf %28, %30 : vector<16x384xf32>
    %32 = vector.extract_strided_slice %31 {offsets = [0, 0], sizes = [16, 32], strides = [1, 1]} : vector<16x384xf32> to vector<16x32xf32>
    %33 = vector.shape_cast %32 : vector<16x32xf32> to vector<2x8x32xf32>
    %34 = vector.extract_strided_slice %31 {offsets = [0, 32], sizes = [16, 32], strides = [1, 1]} : vector<16x384xf32> to vector<16x32xf32>
    %35 = vector.shape_cast %34 : vector<16x32xf32> to vector<2x8x32xf32>
    %36 = vector.extract_strided_slice %31 {offsets = [0, 64], sizes = [16, 32], strides = [1, 1]} : vector<16x384xf32> to vector<16x32xf32>
    %37 = vector.shape_cast %36 : vector<16x32xf32> to vector<2x8x32xf32>
    %38 = vector.extract_strided_slice %31 {offsets = [0, 96], sizes = [16, 32], strides = [1, 1]} : vector<16x384xf32> to vector<16x32xf32>
    %39 = vector.shape_cast %38 : vector<16x32xf32> to vector<2x8x32xf32>
    %40 = tpu.concatenate %33, %35, %37, %39 in 0 : vector<2x8x32xf32>, vector<2x8x32xf32>, vector<2x8x32xf32>, vector<2x8x32xf32> -> vector<8x8x32xf32>
    %41 = arith.truncf %40 : vector<8x8x32xf32> to vector<8x8x32xbf16>
    %42 = vector.extract_strided_slice %31 {offsets = [0, 128], sizes = [16, 32], strides = [1, 1]} : vector<16x384xf32> to vector<16x32xf32>
    %43 = vector.shape_cast %42 : vector<16x32xf32> to vector<2x8x32xf32>
    %44 = vector.extract_strided_slice %31 {offsets = [0, 160], sizes = [16, 32], strides = [1, 1]} : vector<16x384xf32> to vector<16x32xf32>
    %45 = vector.shape_cast %44 : vector<16x32xf32> to vector<2x8x32xf32>
    %46 = vector.extract_strided_slice %31 {offsets = [0, 192], sizes = [16, 32], strides = [1, 1]} : vector<16x384xf32> to vector<16x32xf32>
    %47 = vector.shape_cast %46 : vector<16x32xf32> to vector<2x8x32xf32>
    %48 = vector.extract_strided_slice %31 {offsets = [0, 224], sizes = [16, 32], strides = [1, 1]} : vector<16x384xf32> to vector<16x32xf32>
    %49 = vector.shape_cast %48 : vector<16x32xf32> to vector<2x8x32xf32>
    %50 = tpu.concatenate %43, %45, %47, %49 in 0 : vector<2x8x32xf32>, vector<2x8x32xf32>, vector<2x8x32xf32>, vector<2x8x32xf32> -> vector<8x8x32xf32>
    %51 = arith.truncf %50 : vector<8x8x32xf32> to vector<8x8x32xbf16>
    %52 = vector.extract_strided_slice %31 {offsets = [0, 256], sizes = [16, 32], strides = [1, 1]} : vector<16x384xf32> to vector<16x32xf32>
    %53 = vector.shape_cast %52 : vector<16x32xf32> to vector<2x8x32xf32>
    %54 = vector.extract_strided_slice %31 {offsets = [0, 288], sizes = [16, 32], strides = [1, 1]} : vector<16x384xf32> to vector<16x32xf32>
    %55 = vector.shape_cast %54 : vector<16x32xf32> to vector<2x8x32xf32>
    %56 = vector.extract_strided_slice %31 {offsets = [0, 320], sizes = [16, 32], strides = [1, 1]} : vector<16x384xf32> to vector<16x32xf32>
    %57 = vector.shape_cast %56 : vector<16x32xf32> to vector<2x8x32xf32>
    %58 = vector.extract_strided_slice %31 {offsets = [0, 352], sizes = [16, 32], strides = [1, 1]} : vector<16x384xf32> to vector<16x32xf32>
    %59 = vector.shape_cast %58 : vector<16x32xf32> to vector<2x8x32xf32>
    %60 = tpu.concatenate %53, %55, %57, %59 in 0 : vector<2x8x32xf32>, vector<2x8x32xf32>, vector<2x8x32xf32>, vector<2x8x32xf32> -> vector<8x8x32xf32>
    %61 = arith.truncf %60 : vector<8x8x32xf32> to vector<8x8x32xbf16>
    "tpu.trace_start"() <{level = 10 : i32, message = "gqd,gkd->gqk"}> : () -> ()
    %cst_15 = arith.constant dense<0.000000e+00> : vector<8x8x8xf32>
    %62 = tpu.matmul %41, %51, %cst_15 {dimension_numbers = #tpu.dot_dimension_numbers<[2], [2], [1], [1], [0, 0, 0, 1, 1, 1], [0], [0]>} : vector<8x8x32xbf16>, vector<8x8x32xbf16>, vector<8x8x8xf32> -> vector<8x8x8xf32>
    "tpu.trace_stop"() : () -> ()
    %cst_16 = arith.constant dense<0xFF800000> : vector<8x8xf32>
    %63 = vector.multi_reduction <maximumf>, %62, %cst_16 [2] : vector<8x8x8xf32> to vector<8x8xf32>
    %64 = vector.shape_cast %63 : vector<8x8xf32> to vector<8x8x1xf32>
    %65 = vector.broadcast %64 : vector<8x8x1xf32> to vector<8x8x8xf32>
    %66 = arith.subf %62, %65 : vector<8x8x8xf32>
    %67 = math.exp %66 : vector<8x8x8xf32>
    %cst_17 = arith.constant dense<0.000000e+00> : vector<8x8xf32>
    %68 = vector.multi_reduction <add>, %67, %cst_17 [2] : vector<8x8x8xf32> to vector<8x8xf32>
    %69 = vector.shape_cast %68 : vector<8x8xf32> to vector<8x8x1xf32>
    %70 = vector.broadcast %69 : vector<8x8x1xf32> to vector<8x8x8xf32>
    %71 = arith.divf %67, %70 : vector<8x8x8xf32>
    %72 = arith.truncf %71 : vector<8x8x8xf32> to vector<8x8x8xbf16>
    "tpu.trace_start"() <{level = 10 : i32, message = "gqk,gkd->gqd"}> : () -> ()
    %cst_18 = arith.constant dense<0.000000e+00> : vector<8x8x32xf32>
    %73 = tpu.matmul %72, %61, %cst_18 {dimension_numbers = #tpu.dot_dimension_numbers<[2], [1], [1], [2], [0, 0, 0, 1, 1, 2], [0], [0]>} : vector<8x8x8xbf16>, vector<8x8x32xbf16>, vector<8x8x32xf32> -> vector<8x8x32xf32>
    "tpu.trace_stop"() : () -> ()
    %74 = vector.shape_cast %73 : vector<8x8x32xf32> to vector<4x16x32xf32>
    %75 = arith.truncf %74 : vector<4x16x32xf32> to vector<4x16x32xbf16>
    %cst_19 = arith.constant 0.000000e+00 : f32
    %76 = vector.broadcast %cst_19 : f32 to vector<16x128xf32>
    %77 = vector.extract_strided_slice %75 {offsets = [0, 0, 0], sizes = [1, 16, 32], strides = [1, 1, 1]} : vector<4x16x32xbf16> to vector<1x16x32xbf16>
    %78 = vector.shape_cast %77 : vector<1x16x32xbf16> to vector<16x32xbf16>
    %c0_20 = arith.constant 0 : index
    %c0_21 = arith.constant 0 : index
    %c0_22 = arith.constant 0 : index
    %79 = vector.load %arg6[%c0_20, %c0_21, %c0_22] : memref<4x128x32xbf16, #tpu.memory_space<vmem>>, vector<1x128x32xbf16>
    %80 = vector.shape_cast %79 : vector<1x128x32xbf16> to vector<128x32xbf16>
    %cst_23 = arith.constant dense<0.000000e+00> : vector<16x128xf32>
    %81 = tpu.matmul %78, %80, %cst_23 {dimension_numbers = #tpu.dot_dimension_numbers<[1], [1], [0], [0], [0, 0, 1, 0], [], []>} : vector<16x32xbf16>, vector<128x32xbf16>, vector<16x128xf32> -> vector<16x128xf32>
    %82 = arith.addf %76, %81 : vector<16x128xf32>
    %83 = vector.extract_strided_slice %75 {offsets = [1, 0, 0], sizes = [1, 16, 32], strides = [1, 1, 1]} : vector<4x16x32xbf16> to vector<1x16x32xbf16>
    %84 = vector.shape_cast %83 : vector<1x16x32xbf16> to vector<16x32xbf16>
    %c1 = arith.constant 1 : index
    %c0_24 = arith.constant 0 : index
    %c0_25 = arith.constant 0 : index
    %85 = vector.load %arg6[%c1, %c0_24, %c0_25] : memref<4x128x32xbf16, #tpu.memory_space<vmem>>, vector<1x128x32xbf16>
    %86 = vector.shape_cast %85 : vector<1x128x32xbf16> to vector<128x32xbf16>
    %cst_26 = arith.constant dense<0.000000e+00> : vector<16x128xf32>
    %87 = tpu.matmul %84, %86, %cst_26 {dimension_numbers = #tpu.dot_dimension_numbers<[1], [1], [0], [0], [0, 0, 1, 0], [], []>} : vector<16x32xbf16>, vector<128x32xbf16>, vector<16x128xf32> -> vector<16x128xf32>
    %88 = arith.addf %82, %87 : vector<16x128xf32>
    %89 = vector.extract_strided_slice %75 {offsets = [2, 0, 0], sizes = [1, 16, 32], strides = [1, 1, 1]} : vector<4x16x32xbf16> to vector<1x16x32xbf16>
    %90 = vector.shape_cast %89 : vector<1x16x32xbf16> to vector<16x32xbf16>
    %c2 = arith.constant 2 : index
    %c0_27 = arith.constant 0 : index
    %c0_28 = arith.constant 0 : index
    %91 = vector.load %arg6[%c2, %c0_27, %c0_28] : memref<4x128x32xbf16, #tpu.memory_space<vmem>>, vector<1x128x32xbf16>
    %92 = vector.shape_cast %91 : vector<1x128x32xbf16> to vector<128x32xbf16>
    %cst_29 = arith.constant dense<0.000000e+00> : vector<16x128xf32>
    %93 = tpu.matmul %90, %92, %cst_29 {dimension_numbers = #tpu.dot_dimension_numbers<[1], [1], [0], [0], [0, 0, 1, 0], [], []>} : vector<16x32xbf16>, vector<128x32xbf16>, vector<16x128xf32> -> vector<16x128xf32>
    %94 = arith.addf %88, %93 : vector<16x128xf32>
    %95 = vector.extract_strided_slice %75 {offsets = [3, 0, 0], sizes = [1, 16, 32], strides = [1, 1, 1]} : vector<4x16x32xbf16> to vector<1x16x32xbf16>
    %96 = vector.shape_cast %95 : vector<1x16x32xbf16> to vector<16x32xbf16>
    %c3 = arith.constant 3 : index
    %c0_30 = arith.constant 0 : index
    %c0_31 = arith.constant 0 : index
    %97 = vector.load %arg6[%c3, %c0_30, %c0_31] : memref<4x128x32xbf16, #tpu.memory_space<vmem>>, vector<1x128x32xbf16>
    %98 = vector.shape_cast %97 : vector<1x128x32xbf16> to vector<128x32xbf16>
    %cst_32 = arith.constant dense<0.000000e+00> : vector<16x128xf32>
    %99 = tpu.matmul %96, %98, %cst_32 {dimension_numbers = #tpu.dot_dimension_numbers<[1], [1], [0], [0], [0, 0, 1, 0], [], []>} : vector<16x32xbf16>, vector<128x32xbf16>, vector<16x128xf32> -> vector<16x128xf32>
    %100 = arith.addf %94, %99 : vector<16x128xf32>
    %101 = arith.addf %1, %100 : vector<16x128xf32>
    %c0_33 = arith.constant 0 : index
    %c0_34 = arith.constant 0 : index
    %102 = vector.load %arg7[%c0_33, %c0_34] : memref<1x128xf32, #tpu.memory_space<vmem>>, vector<1x128xf32>
    %103 = vector.broadcast %102 : vector<1x128xf32> to vector<16x128xf32>
    %104 = arith.addf %101, %103 : vector<16x128xf32>
    %cst_35 = arith.constant dense<0.000000e+00> : vector<16xf32>
    %105 = vector.multi_reduction <add>, %104, %cst_35 [1] : vector<16x128xf32> to vector<16xf32>
    %106 = vector.shape_cast %105 : vector<16xf32> to vector<16x1xf32>
    %cst_36 = arith.constant 1.280000e+02 : f32
    %107 = vector.broadcast %cst_36 : f32 to vector<16x1xf32>
    %108 = arith.divf %106, %107 : vector<16x1xf32>
    %109 = vector.broadcast %108 : vector<16x1xf32> to vector<16x128xf32>
    %110 = arith.subf %104, %109 : vector<16x128xf32>
    %111 = arith.mulf %110, %110 : vector<16x128xf32>
    %cst_37 = arith.constant dense<0.000000e+00> : vector<16xf32>
    %112 = vector.multi_reduction <add>, %111, %cst_37 [1] : vector<16x128xf32> to vector<16xf32>
    %113 = vector.shape_cast %112 : vector<16xf32> to vector<16x1xf32>
    %cst_38 = arith.constant 1.280000e+02 : f32
    %114 = vector.broadcast %cst_38 : f32 to vector<16x1xf32>
    %115 = arith.divf %113, %114 : vector<16x1xf32>
    %116 = vector.broadcast %108 : vector<16x1xf32> to vector<16x128xf32>
    %117 = arith.subf %104, %116 : vector<16x128xf32>
    %cst_39 = arith.constant 9.99999974E-6 : f32
    %118 = vector.broadcast %cst_39 : f32 to vector<16x1xf32>
    %119 = arith.addf %115, %118 : vector<16x1xf32>
    %120 = math.rsqrt %119 : vector<16x1xf32>
    %121 = vector.broadcast %120 : vector<16x1xf32> to vector<16x128xf32>
    %122 = arith.mulf %117, %121 : vector<16x128xf32>
    %c0_40 = arith.constant 0 : index
    %c0_41 = arith.constant 0 : index
    %123 = vector.load %arg8[%c0_40, %c0_41] : memref<1x128xf32, #tpu.memory_space<vmem>>, vector<1x128xf32>
    %124 = vector.broadcast %123 : vector<1x128xf32> to vector<16x128xf32>
    %125 = arith.mulf %122, %124 : vector<16x128xf32>
    %c0_42 = arith.constant 0 : index
    %c0_43 = arith.constant 0 : index
    %126 = vector.load %arg9[%c0_42, %c0_43] : memref<1x128xf32, #tpu.memory_space<vmem>>, vector<1x128xf32>
    %127 = vector.broadcast %126 : vector<1x128xf32> to vector<16x128xf32>
    %128 = arith.addf %125, %127 : vector<16x128xf32>
    %129 = arith.truncf %128 : vector<16x128xf32> to vector<16x128xbf16>
    %c0_44 = arith.constant 0 : index
    %c0_45 = arith.constant 0 : index
    %130 = vector.load %arg10[%c0_44, %c0_45] : memref<512x128xbf16, #tpu.memory_space<vmem>>, vector<512x128xbf16>
    %cst_46 = arith.constant dense<0.000000e+00> : vector<16x512xf32>
    %131 = tpu.matmul %129, %130, %cst_46 {dimension_numbers = #tpu.dot_dimension_numbers<[1], [1], [0], [0], [0, 0, 1, 0], [], []>} : vector<16x128xbf16>, vector<512x128xbf16>, vector<16x512xf32> -> vector<16x512xf32>
    %c0_47 = arith.constant 0 : index
    %c0_48 = arith.constant 0 : index
    %132 = vector.load %arg11[%c0_47, %c0_48] : memref<1x512xf32, #tpu.memory_space<vmem>>, vector<1x512xf32>
    %133 = vector.broadcast %132 : vector<1x512xf32> to vector<16x512xf32>
    %134 = arith.addf %131, %133 : vector<16x512xf32>
    %cst_49 = arith.constant 1.702000e+00 : f32
    %135 = vector.broadcast %cst_49 : f32 to vector<16x512xf32>
    %136 = arith.mulf %135, %134 : vector<16x512xf32>
    %137 = arith.negf %136 : vector<16x512xf32>
    %138 = math.exp %137 : vector<16x512xf32>
    %cst_50 = arith.constant 1.000000e+00 : f32
    %139 = vector.broadcast %cst_50 : f32 to vector<16x512xf32>
    %140 = arith.addf %139, %138 : vector<16x512xf32>
    %141 = arith.divf %139, %140 : vector<16x512xf32>
    %142 = arith.mulf %134, %141 : vector<16x512xf32>
    %143 = arith.truncf %142 : vector<16x512xf32> to vector<16x512xbf16>
    %c0_51 = arith.constant 0 : index
    %c0_52 = arith.constant 0 : index
    %144 = vector.load %arg12[%c0_51, %c0_52] : memref<128x512xbf16, #tpu.memory_space<vmem>>, vector<128x512xbf16>
    %cst_53 = arith.constant dense<0.000000e+00> : vector<16x128xf32>
    %145 = tpu.matmul %143, %144, %cst_53 {dimension_numbers = #tpu.dot_dimension_numbers<[1], [1], [0], [0], [0, 0, 1, 0], [], []>} : vector<16x512xbf16>, vector<128x512xbf16>, vector<16x128xf32> -> vector<16x128xf32>
    %c0_54 = arith.constant 0 : index
    %c0_55 = arith.constant 0 : index
    %146 = vector.load %arg13[%c0_54, %c0_55] : memref<1x128xf32, #tpu.memory_space<vmem>>, vector<1x128xf32>
    %147 = vector.broadcast %146 : vector<1x128xf32> to vector<16x128xf32>
    %148 = arith.addf %145, %147 : vector<16x128xf32>
    %149 = arith.addf %104, %148 : vector<16x128xf32>
    %150 = vector.shape_cast %149 : vector<16x128xf32> to vector<2x8x128xf32>
    %c0_56 = arith.constant 0 : index
    %c0_57 = arith.constant 0 : index
    %c0_58 = arith.constant 0 : index
    %151 = vector.load %arg14[%c0_56, %c0_57, %c0_58] : memref<2x8x128xf32, #tpu.memory_space<vmem>>, vector<2x8x128xf32>
    tpu.vector_store %arg14[%c0_56, %c0_57, %c0_58], %150 {strides = array<i32>} : memref<2x8x128xf32, #tpu.memory_space<vmem>>, vector<2x8x128xf32>,
    return
  }
  func.func @transform_0(%arg0: i32) -> (i32, i32, i32) {
    %c0_i32 = arith.constant 0 : i32
    %c0_i32_0 = arith.constant 0 : i32
    %c0_i32_1 = arith.constant 0 : i32
    return %arg0, %c0_i32, %c0_i32_0 : i32, i32, i32
  }
  func.func @transform_1(%arg0: i32) -> (i32, i32) {
    %c0_i32 = arith.constant 0 : i32
    %c0_i32_0 = arith.constant 0 : i32
    %c0_i32_1 = arith.constant 0 : i32
    return %c0_i32, %c0_i32_0 : i32, i32
  }
  func.func @transform_2(%arg0: i32) -> (i32, i32) {
    %c0_i32 = arith.constant 0 : i32
    %c0_i32_0 = arith.constant 0 : i32
    %c0_i32_1 = arith.constant 0 : i32
    return %c0_i32, %c0_i32_0 : i32, i32
  }
  func.func @transform_3(%arg0: i32) -> (i32, i32) {
    %c0_i32 = arith.constant 0 : i32
    %c0_i32_0 = arith.constant 0 : i32
    %c0_i32_1 = arith.constant 0 : i32
    return %c0_i32, %c0_i32_0 : i32, i32
  }
  func.func @transform_4(%arg0: i32) -> (i32, i32) {
    %c0_i32 = arith.constant 0 : i32
    %c0_i32_0 = arith.constant 0 : i32
    %c0_i32_1 = arith.constant 0 : i32
    return %c0_i32, %c0_i32_0 : i32, i32
  }
  func.func @transform_5(%arg0: i32) -> (i32, i32, i32) {
    %c0_i32 = arith.constant 0 : i32
    %c0_i32_0 = arith.constant 0 : i32
    %c0_i32_1 = arith.constant 0 : i32
    %c0_i32_2 = arith.constant 0 : i32
    return %c0_i32, %c0_i32_0, %c0_i32_1 : i32, i32, i32
  }
  func.func @transform_6(%arg0: i32) -> (i32, i32) {
    %c0_i32 = arith.constant 0 : i32
    %c0_i32_0 = arith.constant 0 : i32
    %c0_i32_1 = arith.constant 0 : i32
    return %c0_i32, %c0_i32_0 : i32, i32
  }
  func.func @transform_7(%arg0: i32) -> (i32, i32) {
    %c0_i32 = arith.constant 0 : i32
    %c0_i32_0 = arith.constant 0 : i32
    %c0_i32_1 = arith.constant 0 : i32
    return %c0_i32, %c0_i32_0 : i32, i32
  }
  func.func @transform_8(%arg0: i32) -> (i32, i32) {
    %c0_i32 = arith.constant 0 : i32
    %c0_i32_0 = arith.constant 0 : i32
    %c0_i32_1 = arith.constant 0 : i32
    return %c0_i32, %c0_i32_0 : i32, i32
  }
  func.func @transform_9(%arg0: i32) -> (i32, i32) {
    %c0_i32 = arith.constant 0 : i32
    %c0_i32_0 = arith.constant 0 : i32
    %c0_i32_1 = arith.constant 0 : i32
    return %c0_i32, %c0_i32_0 : i32, i32
  }
  func.func @transform_10(%arg0: i32) -> (i32, i32) {
    %c0_i32 = arith.constant 0 : i32
    %c0_i32_0 = arith.constant 0 : i32
    %c0_i32_1 = arith.constant 0 : i32
    return %c0_i32, %c0_i32_0 : i32, i32
  }
  func.func @transform_11(%arg0: i32) -> (i32, i32) {
    %c0_i32 = arith.constant 0 : i32
    %c0_i32_0 = arith.constant 0 : i32
    %c0_i32_1 = arith.constant 0 : i32
    return %c0_i32, %c0_i32_0 : i32, i32
  }
  func.func @transform_12(%arg0: i32) -> (i32, i32) {
    %c0_i32 = arith.constant 0 : i32
    %c0_i32_0 = arith.constant 0 : i32
    %c0_i32_1 = arith.constant 0 : i32
    return %c0_i32, %c0_i32_0 : i32, i32
  }
  func.func @transform_13(%arg0: i32) -> (i32, i32, i32) {
    %c0_i32 = arith.constant 0 : i32
    %c0_i32_0 = arith.constant 0 : i32
    %c0_i32_1 = arith.constant 0 : i32
    return %arg0, %c0_i32, %c0_i32_0 : i32, i32, i32
  }
}

</mosaic_0001>

<llo_original>
// kernel: tpu_custom_call.1
$region0: #{tpu_custom_call.1}
  #allocation0 [shape = 'u32[]', space=smem, size = 0x4, offset = 0x4, fixed_abs, tag = 'smem constant byte address 0x4 - core index']
  #allocation1 [shape = 'u32[72,128]{1,0:T(1,128)}', space=vmem, size = 0x9000, scoped, tag = 'internal scratch']
  %s0 = inlined_call_operand.vmem [shape: f32[2,8,128], index: 0, kind: input, shape index: {}]
  %s1 = inlined_call_operand.vmem [shape: f32[1,128], index: 1, kind: input, shape index: {}]
  %s2 = inlined_call_operand.vmem [shape: f32[1,128], index: 2, kind: input, shape index: {}]
  %s3 = inlined_call_operand.hbm [shape: bf16[384,128], index: 3, kind: input, shape index: {}]
  %s4 = inlined_call_operand.vmem [shape: f32[1,384], index: 4, kind: input, shape index: {}]
  %s5 = inlined_call_operand.vmem [shape: bf16[4,128,32], index: 5, kind: input, shape index: {}]
  %s6 = inlined_call_operand.vmem [shape: f32[1,128], index: 6, kind: input, shape index: {}]
  %s7 = inlined_call_operand.vmem [shape: f32[1,128], index: 7, kind: input, shape index: {}]
  %s8 = inlined_call_operand.vmem [shape: f32[1,128], index: 8, kind: input, shape index: {}]
  %s9 = inlined_call_operand.vmem [shape: bf16[512,128], index: 9, kind: input, shape index: {}]
  %s10 = inlined_call_operand.vmem [shape: f32[1,512], index: 10, kind: input, shape index: {}]
  %s11 = inlined_call_operand.hbm [shape: bf16[128,512], index: 11, kind: input, shape index: {}]
  %s12 = inlined_call_operand.vmem [shape: f32[1,128], index: 12, kind: input, shape index: {}]
  %s13 = inlined_call_operand.hbm [shape: f32[2,8,128], index: 13, kind: output, shape index: {}]
  %s14 = sld [smem:[#allocation0]]
  $region70: #{tpu_custom_call.1} parent=0
    _
  %s16 = ssub.s32 1, %s14
  %s17 = scalar_select 0, %s16, %s14
  $region1: #{tpu_custom_call.1} parent=0
    #allocation2 [shape = 'u8[98304]{0}', space=vmem, size = 0x18000, scoped, tag = 'input window, operand 3, single buffered']
    #allocation3 [shape = 's32[1]{0}', space=sflag, size = 0x4, scoped, tag = 'scoped memory for tpu_custom_call.1']
    #allocation4 [shape = 's32[1]{0}', space=sflag, size = 0x4, scoped, tag = 'scoped memory for tpu_custom_call.1']
    #allocation5 [shape = 'u8[131072]{0}', space=vmem, size = 0x20000, scoped, tag = 'input window, operand 11, single buffered']
    #allocation6 [shape = 's32[1]{0}', space=sflag, size = 0x4, scoped, tag = 'scoped memory for tpu_custom_call.1']
    #allocation7 [shape = 'u8[8192]{0}', space=vmem, size = 0x2000, scoped, tag = 'output window, operand 0, single buffered']
    %18 = vsyncpa [#allocation3], 0
    %19 = vsyncpa [#allocation6], 0
    %20 = vsyncpa [#allocation4], 0
    // Predicated region
    $region2: #{tpu_custom_call.1} parent=1 // pred_check
      _
    $region3: #{tpu_custom_call.1} parent=1 // pred_check_branch
      %22 = sbr.rel (0) target = $region5
    $region4: #{tpu_custom_call.1} parent=1 // pred_region
      _
    $region5: #{tpu_custom_call.1} parent=1 // pred_fallthru
      _
    // Predicated region
    $region6: #{tpu_custom_call.1} parent=1 // pred_check
      _
    $region7: #{tpu_custom_call.1} parent=1 // pred_check_branch
      %24 = sbr.rel (0) target = $region9
    $region8: #{tpu_custom_call.1} parent=1 // pred_region
      _
    $region9: #{tpu_custom_call.1} parent=1 // pred_fallthru
      _
    // Predicated region
    $region10: #{tpu_custom_call.1} parent=1 // pred_check
      _
    $region11: #{tpu_custom_call.1} parent=1 // pred_check_branch
      %26 = sbr.rel (0) target = $region13
    $region12: #{tpu_custom_call.1} parent=1 // pred_region
      _
    $region13: #{tpu_custom_call.1} parent=1 // pred_fallthru
      _
    // Predicated region
    $region14: #{tpu_custom_call.1} parent=1 // pred_check
      _
    $region15: #{tpu_custom_call.1} parent=1 // pred_check_branch
      %28 = sbr.rel (0) target = $region17
    $region16: #{tpu_custom_call.1} parent=1 // pred_region
      %30 = vsyncadd [#allocation3], 0
      %s31 = sshll.u32 %s3, 4
      %s32 = int_to_ptr.hbm [resolvable:$true] %s31
      %s33 = sshll.u32 [#allocation2], 4
      %s34 = int_to_ptr.vmem [resolvable:$true] %s33
      %39 = dma.hbm_to_vmem [thread:$0]  %s32, 3072, %s34, [#allocation3], 64, 64, 4
    $region17: #{tpu_custom_call.1} parent=1 // pred_fallthru
      _
    // Predicated region
    $region18: #{tpu_custom_call.1} parent=1 // pred_check
      _
    $region19: #{tpu_custom_call.1} parent=1 // pred_check_branch
      %41 = sbr.rel (0) target = $region21
    $region20: #{tpu_custom_call.1} parent=1 // pred_region
      _
    $region21: #{tpu_custom_call.1} parent=1 // pred_fallthru
      _
    // Predicated region
    $region22: #{tpu_custom_call.1} parent=1 // pred_check
      _
    $region23: #{tpu_custom_call.1} parent=1 // pred_check_branch
      %43 = sbr.rel (0) target = $region25
    $region24: #{tpu_custom_call.1} parent=1 // pred_region
      _
    $region25: #{tpu_custom_call.1} parent=1 // pred_fallthru
      _
    // Predicated region
    $region26: #{tpu_custom_call.1} parent=1 // pred_check
      _
    $region27: #{tpu_custom_call.1} parent=1 // pred_check_branch
      %45 = sbr.rel (0) target = $region29
    $region28: #{tpu_custom_call.1} parent=1 // pred_region
      _
    $region29: #{tpu_custom_call.1} parent=1 // pred_fallthru
      _
    // Predicated region
    $region30: #{tpu_custom_call.1} parent=1 // pred_check
      _
    $region31: #{tpu_custom_call.1} parent=1 // pred_check_branch
      %47 = sbr.rel (0) target = $region33
    $region32: #{tpu_custom_call.1} parent=1 // pred_region
      _
    $region33: #{tpu_custom_call.1} parent=1 // pred_fallthru
      _
    // Predicated region
    $region34: #{tpu_custom_call.1} parent=1 // pred_check
      _
    $region35: #{tpu_custom_call.1} parent=1 // pred_check_branch
      %49 = sbr.rel (0) target = $region37
    $region36: #{tpu_custom_call.1} parent=1 // pred_region
      _
    $region37: #{tpu_custom_call.1} parent=1 // pred_fallthru
      _
    // Predicated region
    $region38: #{tpu_custom_call.1} parent=1 // pred_check
      _
    $region39: #{tpu_custom_call.1} parent=1 // pred_check_branch
      %51 = sbr.rel (0) target = $region41
    $region40: #{tpu_custom_call.1} parent=1 // pred_region
      _
    $region41: #{tpu_custom_call.1} parent=1 // pred_fallthru
      _
    // Predicated region
    $region42: #{tpu_custom_call.1} parent=1 // pred_check
      _
    $region43: #{tpu_custom_call.1} parent=1 // pred_check_branch
      %53 = sbr.rel (0) target = $region45
    $region44: #{tpu_custom_call.1} parent=1 // pred_region
      _
    $region45: #{tpu_custom_call.1} parent=1 // pred_fallthru
      _
    // Predicated region
    $region46: #{tpu_custom_call.1} parent=1 // pred_check
      _
    $region47: #{tpu_custom_call.1} parent=1 // pred_check_branch
      %55 = sbr.rel (0) target = $region49
    $region48: #{tpu_custom_call.1} parent=1 // pred_region
      %57 = vsyncadd [#allocation6], 0
      %s58 = sshll.u32 %s11, 4
      %s59 = int_to_ptr.hbm [resolvable:$true] %s58
      %s60 = sshll.u32 [#allocation5], 4
      %s61 = int_to_ptr.vmem [resolvable:$true] %s60
      %66 = dma.hbm_to_vmem [thread:$0]  %s59, 4096, %s61, [#allocation6], 256, 256, 16
    $region49: #{tpu_custom_call.1} parent=1 // pred_fallthru
      _
    // Predicated region
    $region50: #{tpu_custom_call.1} parent=1 // pred_check
      _
    $region51: #{tpu_custom_call.1} parent=1 // pred_check_branch
      %68 = sbr.rel (0) target = $region53
    $region52: #{tpu_custom_call.1} parent=1 // pred_region
      _
    $region53: #{tpu_custom_call.1} parent=1 // pred_fallthru
      _
    // Predicated region
    $region54: #{tpu_custom_call.1} parent=1 // pred_check
      _
    $region55: #{tpu_custom_call.1} parent=1 // pred_check_branch
      %70 = sbr.rel (0) target = $region57
    $region56: #{tpu_custom_call.1} parent=1 // pred_region
      %72 = dma.done [#allocation3], 3072
    $region57: #{tpu_custom_call.1} parent=1 // pred_fallthru
      _
    // Predicated region
    $region58: #{tpu_custom_call.1} parent=1 // pred_check
      _
    $region59: #{tpu_custom_call.1} parent=1 // pred_check_branch
      %74 = sbr.rel (0) target = $region61
    $region60: #{tpu_custom_call.1} parent=1 // pred_region
      %76 = dma.done [#allocation6], 4096
    $region61: #{tpu_custom_call.1} parent=1 // pred_fallthru
      _
    %v78 = vld [vmem:[%s0] sm:$0xff]
    %v79 = vld [vmem:[%s0 + $0x8] sm:$0xff]
    %80 = vadd.xlane.f32.xlu0 %v78
    %v81 = vpop.xlane.xlu0 %80
    %82 = vadd.xlane.f32.xlu0 %v79
    %v83 = vpop.xlane.xlu0 %82
    %v84 = vrcp.pop 128.0
    %v85 = vmul.f32 128.0, %v84
    %v86 = vsub.f32 1.0, %v85
    %v87 = vmul.f32 %v84, %v86
    %v88 = vadd.f32 %v84, %v87
    %vm89 = vweird.f32 %v84
    %v90 = vsel %vm89, %v84, %v88
    %v91 = vmul.f32 %v81, %v90
    %v92 = vmul.f32 %v83, %v90
    %v93 = vsub.f32 %v78, %v91
    %v94 = vsub.f32 %v79, %v92
    %v95 = vmul.f32 %v93, %v93
    %v96 = vmul.f32 %v94, %v94
    %97 = vadd.xlane.f32.xlu0 %v95
    %v98 = vpop.xlane.xlu0 %97
    %99 = vadd.xlane.f32.xlu0 %v96
    %v100 = vpop.xlane.xlu0 %99
    %v101 = vmul.f32 %v98, %v90
    %v102 = vmul.f32 %v100, %v90
    %v103 = vadd.f32 %v101, 1e-05
    %v104 = vadd.f32 %v102, 1e-05
    %v105 = vrsqrt.pop %v103
    %v106 = vmul.f32 %v105, %v103
    %v107 = vmul.f32 %v106, %v105
    %v108 = vmul.f32 0.5, %v107
    %v109 = vsub.f32 1.5, %v108
    %v110 = vmul.f32 %v105, %v109
    %vm111 = vweird.f32 %v103
    %vm112 = vweird.f32 %v105
    %vm113 = vmor %vm111, %vm112
    %v114 = vsel %vm113, %v105, %v110
    %v115 = vrsqrt.pop %v104
    %v116 = vmul.f32 %v115, %v104
    %v117 = vmul.f32 %v116, %v115
    %v118 = vmul.f32 0.5, %v117
    %v119 = vsub.f32 1.5, %v118
    %v120 = vmul.f32 %v115, %v119
    %vm121 = vweird.f32 %v104
    %vm122 = vweird.f32 %v115
    %vm123 = vmor %vm121, %vm122
    %v124 = vsel %vm123, %v115, %v120
    %v125 = vmul.f32 %v93, %v114
    %v126 = vmul.f32 %v94, %v124
    %v127 = vld [vmem:[%s1] sm:$0x1]
    %v129 = vperm.slane %v127, 0
    %v131 = vmul.f32 %v125, %v129
    %v132 = vmul.f32 %v126, %v129
    %v133 = vld [vmem:[%s2] sm:$0x1]
    %v135 = vperm.slane %v133, 0
    %v137 = vadd.f32 %v131, %v135
    %v138 = vadd.f32 %v132, %v135
    %v139 = vpack.c.bf16 %v138, %v137
    %v140 = vld [vmem:[#allocation2] sm:$0xf]
    %v141 = vld [vmem:[#allocation2 + $0x4] sm:$0xf]
    %v142 = vld [vmem:[#allocation2 + $0x8] sm:$0xf]
    %v143 = vld [vmem:[#allocation2 + $0xc] sm:$0xf]
    %v144 = vld [vmem:[#allocation2 + $0x10] sm:$0xf]
    %v145 = vld [vmem:[#allocation2 + $0x14] sm:$0xf]
    %v146 = vld [vmem:[#allocation2 + $0x18] sm:$0xf]
    %v147 = vld [vmem:[#allocation2 + $0x1c] sm:$0xf]
    %v148 = vld [vmem:[#allocation2 + $0x20] sm:$0xf]
    %v149 = vld [vmem:[#allocation2 + $0x24] sm:$0xf]
    %v150 = vld [vmem:[#allocation2 + $0x28] sm:$0xf]
    %v151 = vld [vmem:[#allocation2 + $0x2c] sm:$0xf]
    %v152 = vld [vmem:[#allocation2 + $0x30] sm:$0xf]
    %v153 = vld [vmem:[#allocation2 + $0x34] sm:$0xf]
    %v154 = vld [vmem:[#allocation2 + $0x38] sm:$0xf]
    %v155 = vld [vmem:[#allocation2 + $0x3c] sm:$0xf]
    %v156 = vld [vmem:[#allocation2 + $0x40] sm:$0xf]
    %v157 = vld [vmem:[#allocation2 + $0x44] sm:$0xf]
    %v158 = vld [vmem:[#allocation2 + $0x48] sm:$0xf]
    %v159 = vld [vmem:[#allocation2 + $0x4c] sm:$0xf]
    %v160 = vld [vmem:[#allocation2 + $0x50] sm:$0xf]
    %v161 = vld [vmem:[#allocation2 + $0x54] sm:$0xf]
    %v162 = vld [vmem:[#allocation2 + $0x58] sm:$0xf]
    %v163 = vld [vmem:[#allocation2 + $0x5c] sm:$0xf]
    %v164 = vld [vmem:[#allocation2 + $0x60] sm:$0xf]
    %v165 = vld [vmem:[#allocation2 + $0x64] sm:$0xf]
    %v166 = vld [vmem:[#allocation2 + $0x68] sm:$0xf]
    %v167 = vld [vmem:[#allocation2 + $0x6c] sm:$0xf]
    %v168 = vld [vmem:[#allocation2 + $0x70] sm:$0xf]
    %v169 = vld [vmem:[#allocation2 + $0x74] sm:$0xf]
    %v170 = vld [vmem:[#allocation2 + $0x78] sm:$0xf]
    %v171 = vld [vmem:[#allocation2 + $0x7c] sm:$0xf]
    %v172 = vld [vmem:[#allocation2 + $0x80] sm:$0xf]
    %v173 = vld [vmem:[#allocation2 + $0x84] sm:$0xf]
    %v174 = vld [vmem:[#allocation2 + $0x88] sm:$0xf]
    %v175 = vld [vmem:[#allocation2 + $0x8c] sm:$0xf]
    %v176 = vld [vmem:[#allocation2 + $0x90] sm:$0xf]
    %v177 = vld [vmem:[#allocation2 + $0x94] sm:$0xf]
    %v178 = vld [vmem:[#allocation2 + $0x98] sm:$0xf]
    %v179 = vld [vmem:[#allocation2 + $0x9c] sm:$0xf]
    %v180 = vld [vmem:[#allocation2 + $0xa0] sm:$0xf]
    %v181 = vld [vmem:[#allocation2 + $0xa4] sm:$0xf]
    %v182 = vld [vmem:[#allocation2 + $0xa8] sm:$0xf]
    %v183 = vld [vmem:[#allocation2 + $0xac] sm:$0xf]
    %v184 = vld [vmem:[#allocation2 + $0xb0] sm:$0xf]
    %v185 = vld [vmem:[#allocation2 + $0xb4] sm:$0xf]
    %v186 = vld [vmem:[#allocation2 + $0xb8] sm:$0xf]
    %v187 = vld [vmem:[#allocation2 + $0xbc] sm:$0xf]
    %v188 = vld [vmem:[%s4] sm:$0x7]
    %v190 = vperm.slane %v188, 0
    %v191 = vperm.slane %v188, 1
    %v192 = vperm.slane %v188, 2
    %v244 = vunpack.c.l.b16 %v140
    %v245 = vunpack.c.l.b16 %v141
    %v246 = vunpack.c.l.b16 %v142
    %v247 = vunpack.c.l.b16 %v143
    %v248 = vunpack.c.l.b16 %v144
    %v249 = vunpack.c.l.b16 %v145
    %v250 = vunpack.c.l.b16 %v146
    %v251 = vunpack.c.l.b16 %v147
    %v252 = vunpack.c.l.b16 %v148
    %v253 = vunpack.c.l.b16 %v149
    %v254 = vunpack.c.l.b16 %v150
    %v255 = vunpack.c.l.b16 %v151
    %v256 = vunpack.c.l.b16 %v152
    %v257 = vunpack.c.l.b16 %v153
    %v258 = vunpack.c.l.b16 %v154
    %v259 = vunpack.c.l.b16 %v155
    %v260 = vunpack.c.l.b16 %v156
    %v261 = vunpack.c.l.b16 %v157
    %v262 = vunpack.c.l.b16 %v158
    %v263 = vunpack.c.l.b16 %v159
    %v264 = vunpack.c.l.b16 %v160
    %v265 = vunpack.c.l.b16 %v161
    %v266 = vunpack.c.l.b16 %v162
    %v267 = vunpack.c.l.b16 %v163
    %v268 = vunpack.c.l.b16 %v164
    %v269 = vunpack.c.l.b16 %v165
    %v270 = vunpack.c.l.b16 %v166
    %v271 = vunpack.c.l.b16 %v167
    %v272 = vunpack.c.l.b16 %v168
    %v273 = vunpack.c.l.b16 %v169
    %v274 = vunpack.c.l.b16 %v170
    %v275 = vunpack.c.l.b16 %v171
    %v276 = vunpack.c.l.b16 %v172
    %v277 = vunpack.c.l.b16 %v173
    %v278 = vunpack.c.l.b16 %v174
    %v279 = vunpack.c.l.b16 %v175
    %v280 = vunpack.c.l.b16 %v176
    %v281 = vunpack.c.l.b16 %v177
    %v282 = vunpack.c.l.b16 %v178
    %v283 = vunpack.c.l.b16 %v179
    %v284 = vunpack.c.l.b16 %v180
    %v285 = vunpack.c.l.b16 %v181
    %v286 = vunpack.c.l.b16 %v182
    %v287 = vunpack.c.l.b16 %v183
    %v288 = vunpack.c.l.b16 %v184
    %v289 = vunpack.c.l.b16 %v185
    %v290 = vunpack.c.l.b16 %v186
    %v291 = vunpack.c.l.b16 %v187
    %v292 = vpack.c.b16 %v245, %v244
    %v293 = vpack.c.b16 %v247, %v246
    %v294 = vpack.c.b16 %v249, %v248
    %v295 = vpack.c.b16 %v251, %v250
    %v296 = vpack.c.b16 %v253, %v252
    %v297 = vpack.c.b16 %v255, %v254
    %v298 = vpack.c.b16 %v257, %v256
    %v299 = vpack.c.b16 %v259, %v258
    %v300 = vpack.c.b16 %v261, %v260
    %v301 = vpack.c.b16 %v263, %v262
    %v302 = vpack.c.b16 %v265, %v264
    %v303 = vpack.c.b16 %v267, %v266
    %v304 = vpack.c.b16 %v269, %v268
    %v305 = vpack.c.b16 %v271, %v270
    %v306 = vpack.c.b16 %v273, %v272
    %v307 = vpack.c.b16 %v275, %v274
    %v308 = vpack.c.b16 %v277, %v276
    %v309 = vpack.c.b16 %v279, %v278
    %v310 = vpack.c.b16 %v281, %v280
    %v311 = vpack.c.b16 %v283, %v282
    %v312 = vpack.c.b16 %v285, %v284
    %v313 = vpack.c.b16 %v287, %v286
    %v314 = vpack.c.b16 %v289, %v288
    %v315 = vpack.c.b16 %v291, %v290
    %340 = vmatpush.bf16.xpose.msra.mxu0 %v299
    %341 = vmatpush.bf16.xpose.msra.mxu0 %v298
    %342 = vmatpush.bf16.xpose.msra.mxu0 %v297
    %343 = vmatpush.bf16.xpose.msra.mxu0 %v296
    %344 = vmatpush.bf16.xpose.msra.mxu0 %v295
    %345 = vmatpush.bf16.xpose.msra.mxu0 %v294
    %346 = vmatpush.bf16.xpose.msra.mxu0 %v293
    %347 = vmatpush.bf16.xpose.msra.mxu0 %v292
    %348 = vmatmul.bf16.gmra.mxu0 %v139
    %v349 = vpop.f32.mrf.mxu0
    %v350 = vadd.f32 %v190, %v349
    %v351 = vpop.f32.mrf.mxu0
    %v352 = vadd.f32 %v190, %v351
    %353 = vdwg.mxu0
    %354 = vmatpush.bf16.xpose.msra.mxu0 %v307
    %355 = vmatpush.bf16.xpose.msra.mxu0 %v306
    %356 = vmatpush.bf16.xpose.msra.mxu0 %v305
    %357 = vmatpush.bf16.xpose.msra.mxu0 %v304
    %358 = vmatpush.bf16.xpose.msra.mxu0 %v303
    %359 = vmatpush.bf16.xpose.msra.mxu0 %v302
    %360 = vmatpush.bf16.xpose.msra.mxu0 %v301
    %361 = vmatpush.bf16.xpose.msra.mxu0 %v300
    %362 = vmatmul.bf16.gmra.mxu0 %v139
    %v363 = vpop.f32.mrf.mxu0
    %v364 = vadd.f32 %v191, %v363
    %v365 = vpop.f32.mrf.mxu0
    %v366 = vadd.f32 %v191, %v365
    %367 = vdwg.mxu0
    %368 = vmatpush.bf16.xpose.msra.mxu0 %v315
    %369 = vmatpush.bf16.xpose.msra.mxu0 %v314
    %370 = vmatpush.bf16.xpose.msra.mxu0 %v313
    %371 = vmatpush.bf16.xpose.msra.mxu0 %v312
    %372 = vmatpush.bf16.xpose.msra.mxu0 %v311
    %373 = vmatpush.bf16.xpose.msra.mxu0 %v310
    %374 = vmatpush.bf16.xpose.msra.mxu0 %v309
    %375 = vmatpush.bf16.xpose.msra.mxu0 %v308
    %376 = vmatmul.bf16.gmra.mxu0 %v139
    %v377 = vpop.f32.mrf.mxu0
    %v378 = vadd.f32 %v192, %v377
    %v379 = vpop.f32.mrf.mxu0
    %v380 = vadd.f32 %v192, %v379
    %381 = vdwg.mxu0
    %384 = vrot.lane.b32.xlu0 %v350, 96
    %v385 = vpop.permute.xlu0 %384
    %386 = vrot.lane.b32.xlu0 %v352, 96
    %v387 = vpop.permute.xlu0 %386
    %390 = vrot.lane.b32.xlu0 %v350, 64
    %v391 = vpop.permute.xlu0 %390
    %392 = vrot.lane.b32.xlu0 %v352, 64
    %v393 = vpop.permute.xlu0 %392
    %396 = vrot.lane.b32.xlu0 %v350, 32
    %v397 = vpop.permute.xlu0 %396
    %398 = vrot.lane.b32.xlu0 %v352, 32
    %v399 = vpop.permute.xlu0 %398
    %v402 = vpack.c.bf16 %v350, %v350
    %v403 = vpack.c.bf16 %v352, %v352
    %v404 = vpack.c.bf16 %v385, %v385
    %v405 = vpack.c.bf16 %v387, %v387
    %v406 = vpack.c.bf16 %v391, %v391
    %v407 = vpack.c.bf16 %v393, %v393
    %v408 = vpack.c.bf16 %v397, %v397
    %v409 = vpack.c.bf16 %v399, %v399
    %412 = vrot.lane.b32.xlu0 %v364, 96
    %v413 = vpop.permute.xlu0 %412
    %414 = vrot.lane.b32.xlu0 %v366, 96
    %v415 = vpop.permute.xlu0 %414
    %418 = vrot.lane.b32.xlu0 %v364, 64
    %v419 = vpop.permute.xlu0 %418
    %420 = vrot.lane.b32.xlu0 %v366, 64
    %v421 = vpop.permute.xlu0 %420
    %424 = vrot.lane.b32.xlu0 %v364, 32
    %v425 = vpop.permute.xlu0 %424
    %426 = vrot.lane.b32.xlu0 %v366, 32
    %v427 = vpop.permute.xlu0 %426
    %v430 = vpack.c.bf16 %v364, %v364
    %v431 = vpack.c.bf16 %v366, %v366
    %v432 = vpack.c.bf16 %v413, %v413
    %v433 = vpack.c.bf16 %v415, %v415
    %v434 = vpack.c.bf16 %v419, %v419
    %v435 = vpack.c.bf16 %v421, %v421
    %v436 = vpack.c.bf16 %v425, %v425
    %v437 = vpack.c.bf16 %v427, %v427
    %440 = vrot.lane.b32.xlu0 %v378, 96
    %v441 = vpop.permute.xlu0 %440
    %442 = vrot.lane.b32.xlu0 %v380, 96
    %v443 = vpop.permute.xlu0 %442
    %446 = vrot.lane.b32.xlu0 %v378, 64
    %v447 = vpop.permute.xlu0 %446
    %448 = vrot.lane.b32.xlu0 %v380, 64
    %v449 = vpop.permute.xlu0 %448
    %452 = vrot.lane.b32.xlu0 %v378, 32
    %v453 = vpop.permute.xlu0 %452
    %454 = vrot.lane.b32.xlu0 %v380, 32
    %v455 = vpop.permute.xlu0 %454
    %v458 = vpack.c.bf16 %v378, %v378
    %v459 = vpack.c.bf16 %v380, %v380
    %v460 = vpack.c.bf16 %v441, %v441
    %v461 = vpack.c.bf16 %v443, %v443
    %v462 = vpack.c.bf16 %v447, %v447
    %v463 = vpack.c.bf16 %v449, %v449
    %v464 = vpack.c.bf16 %v453, %v453
    %v465 = vpack.c.bf16 %v455, %v455
    %vm466 = vcmask 261120
    %v468 = vsel %vm466, %v402, 0
    %v471 = vsel %vm466, %v430, 0
    %473 = vmatpush.bf16.xpose.msra.mxu0 0
    %474 = vmatpush.bf16.xpose.msra.mxu0 0
    %475 = vmatpush.bf16.xpose.msra.mxu0 0
    %476 = vmatpush.bf16.xpose.msra.mxu0 0
    %477 = vmatpush.bf16.xpose.msra.mxu0 0
    %478 = vmatpush.bf16.xpose.msra.mxu0 0
    %479 = vmatpush.bf16.xpose.msra.mxu0 0
    %480 = vmatpush.bf16.xpose.msra.mxu0 %v471
    %481 = vmatmul.bf16.gmra.mxu0 %v468
    %v482 = vpop.f32.mrf.mxu0
    %v483 = vadd.f32 0.0, %v482
    %v484 = vpop.f32.mrf.mxu0
    %485 = vdwg.mxu0
    %v487 = vsel %vm466, %v403, 0
    %v490 = vsel %vm466, %v431, 0
    %492 = vmatpush.bf16.xpose.msra.mxu0 0
    %493 = vmatpush.bf16.xpose.msra.mxu0 0
    %494 = vmatpush.bf16.xpose.msra.mxu0 0
    %495 = vmatpush.bf16.xpose.msra.mxu0 0
    %496 = vmatpush.bf16.xpose.msra.mxu0 0
    %497 = vmatpush.bf16.xpose.msra.mxu0 0
    %498 = vmatpush.bf16.xpose.msra.mxu0 0
    %499 = vmatpush.bf16.xpose.msra.mxu0 %v490
    %500 = vmatmul.bf16.gmra.mxu0 %v487
    %v501 = vpop.f32.mrf.mxu0
    %v502 = vadd.f32 0.0, %v501
    %v503 = vpop.f32.mrf.mxu0
    %504 = vdwg.mxu0
    %v506 = vsel %vm466, %v404, 0
    %v509 = vsel %vm466, %v432, 0
    %511 = vmatpush.bf16.xpose.msra.mxu0 0
    %512 = vmatpush.bf16.xpose.msra.mxu0 0
    %513 = vmatpush.bf16.xpose.msra.mxu0 0
    %514 = vmatpush.bf16.xpose.msra.mxu0 0
    %515 = vmatpush.bf16.xpose.msra.mxu0 0
    %516 = vmatpush.bf16.xpose.msra.mxu0 0
    %517 = vmatpush.bf16.xpose.msra.mxu0 0
    %518 = vmatpush.bf16.xpose.msra.mxu0 %v509
    %519 = vmatmul.bf16.gmra.mxu0 %v506
    %v520 = vpop.f32.mrf.mxu0
    %v521 = vadd.f32 0.0, %v520
    %v522 = vpop.f32.mrf.mxu0
    %523 = vdwg.mxu0
    %v525 = vsel %vm466, %v405, 0
    %v528 = vsel %vm466, %v433, 0
    %530 = vmatpush.bf16.xpose.msra.mxu0 0
    %531 = vmatpush.bf16.xpose.msra.mxu0 0
    %532 = vmatpush.bf16.xpose.msra.mxu0 0
    %533 = vmatpush.bf16.xpose.msra.mxu0 0
    %534 = vmatpush.bf16.xpose.msra.mxu0 0
    %535 = vmatpush.bf16.xpose.msra.mxu0 0
    %536 = vmatpush.bf16.xpose.msra.mxu0 0
    %537 = vmatpush.bf16.xpose.msra.mxu0 %v528
    %538 = vmatmul.bf16.gmra.mxu0 %v525
    %v539 = vpop.f32.mrf.mxu0
    %v540 = vadd.f32 0.0, %v539
    %v541 = vpop.f32.mrf.mxu0
    %542 = vdwg.mxu0
    %v544 = vsel %vm466, %v406, 0
    %v547 = vsel %vm466, %v434, 0
    %549 = vmatpush.bf16.xpose.msra.mxu0 0
    %550 = vmatpush.bf16.xpose.msra.mxu0 0
    %551 = vmatpush.bf16.xpose.msra.mxu0 0
    %552 = vmatpush.bf16.xpose.msra.mxu0 0
    %553 = vmatpush.bf16.xpose.msra.mxu0 0
    %554 = vmatpush.bf16.xpose.msra.mxu0 0
    %555 = vmatpush.bf16.xpose.msra.mxu0 0
    %556 = vmatpush.bf16.xpose.msra.mxu0 %v547
    %557 = vmatmul.bf16.gmra.mxu0 %v544
    %v558 = vpop.f32.mrf.mxu0
    %v559 = vadd.f32 0.0, %v558
    %v560 = vpop.f32.mrf.mxu0
    %561 = vdwg.mxu0
    %v563 = vsel %vm466, %v407, 0
    %v566 = vsel %vm466, %v435, 0
    %568 = vmatpush.bf16.xpose.msra.mxu0 0
    %569 = vmatpush.bf16.xpose.msra.mxu0 0
    %570 = vmatpush.bf16.xpose.msra.mxu0 0
    %571 = vmatpush.bf16.xpose.msra.mxu0 0
    %572 = vmatpush.bf16.xpose.msra.mxu0 0
    %573 = vmatpush.bf16.xpose.msra.mxu0 0
    %574 = vmatpush.bf16.xpose.msra.mxu0 0
    %575 = vmatpush.bf16.xpose.msra.mxu0 %v566
    %576 = vmatmul.bf16.gmra.mxu0 %v563
    %v577 = vpop.f32.mrf.mxu0
    %v578 = vadd.f32 0.0, %v577
    %v579 = vpop.f32.mrf.mxu0
    %580 = vdwg.mxu0
    %v582 = vsel %vm466, %v408, 0
    %v585 = vsel %vm466, %v436, 0
    %587 = vmatpush.bf16.xpose.msra.mxu0 0
    %588 = vmatpush.bf16.xpose.msra.mxu0 0
    %589 = vmatpush.bf16.xpose.msra.mxu0 0
    %590 = vmatpush.bf16.xpose.msra.mxu0 0
    %591 = vmatpush.bf16.xpose.msra.mxu0 0
    %592 = vmatpush.bf16.xpose.msra.mxu0 0
    %593 = vmatpush.bf16.xpose.msra.mxu0 0
    %594 = vmatpush.bf16.xpose.msra.mxu0 %v585
    %595 = vmatmul.bf16.gmra.mxu0 %v582
    %v596 = vpop.f32.mrf.mxu0
    %v597 = vadd.f32 0.0, %v596
    %v598 = vpop.f32.mrf.mxu0
    %599 = vdwg.mxu0
    %v601 = vsel %vm466, %v409, 0
    %v604 = vsel %vm466, %v437, 0
    %606 = vmatpush.bf16.xpose.msra.mxu0 0
    %607 = vmatpush.bf16.xpose.msra.mxu0 0
    %608 = vmatpush.bf16.xpose.msra.mxu0 0
    %609 = vmatpush.bf16.xpose.msra.mxu0 0
    %610 = vmatpush.bf16.xpose.msra.mxu0 0
    %611 = vmatpush.bf16.xpose.msra.mxu0 0
    %612 = vmatpush.bf16.xpose.msra.mxu0 0
    %613 = vmatpush.bf16.xpose.msra.mxu0 %v604
    %614 = vmatmul.bf16.gmra.mxu0 %v601
    %v615 = vpop.f32.mrf.mxu0
    %v616 = vadd.f32 0.0, %v615
    %v617 = vpop.f32.mrf.mxu0
    %618 = vdwg.mxu0
    %vm619 = vcmask 64512
    %v620 = vsel %vm619, %v483, -inf
    %621 = vmax.xlane.f32.xlu0 %v620
    %v622 = vpop.xlane.xlu0 %621
    %v623 = vsel %vm619, %v502, -inf
    %624 = vmax.xlane.f32.xlu0 %v623
    %v625 = vpop.xlane.xlu0 %624
    %v626 = vsel %vm619, %v521, -inf
    %627 = vmax.xlane.f32.xlu0 %v626
    %v628 = vpop.xlane.xlu0 %627
    %v629 = vsel %vm619, %v540, -inf
    %630 = vmax.xlane.f32.xlu0 %v629
    %v631 = vpop.xlane.xlu0 %630
    %v632 = vsel %vm619, %v559, -inf
    %633 = vmax.xlane.f32.xlu0 %v632
    %v634 = vpop.xlane.xlu0 %633
    %v635 = vsel %vm619, %v578, -inf
    %636 = vmax.xlane.f32.xlu0 %v635
    %v637 = vpop.xlane.xlu0 %636
    %v638 = vsel %vm619, %v597, -inf
    %639 = vmax.xlane.f32.xlu0 %v638
    %v640 = vpop.xlane.xlu0 %639
    %v641 = vsel %vm619, %v616, -inf
    %642 = vmax.xlane.f32.xlu0 %v641
    %v643 = vpop.xlane.xlu0 %642
    %v644 = vsub.f32 %v483, %v622
    %v645 = vsub.f32 %v502, %v625
    %v646 = vsub.f32 %v521, %v628
    %v647 = vsub.f32 %v540, %v631
    %v648 = vsub.f32 %v559, %v634
    %v649 = vsub.f32 %v578, %v637
    %v650 = vsub.f32 %v597, %v640
    %v651 = vsub.f32 %v616, %v643
    %v652 = vmul.f32 %v644, 1.442695
    %v653 = vpow.pop %v652
    %v654 = vmul.f32 %v645, 1.442695
    %v655 = vpow.pop %v654
    %v656 = vmul.f32 %v646, 1.442695
    %v657 = vpow.pop %v656
    %v658 = vmul.f32 %v647, 1.442695
    %v659 = vpow.pop %v658
    %v660 = vmul.f32 %v648, 1.442695
    %v661 = vpow.pop %v660
    %v662 = vmul.f32 %v649, 1.442695
    %v663 = vpow.pop %v662
    %v664 = vmul.f32 %v650, 1.442695
    %v665 = vpow.pop %v664
    %v666 = vmul.f32 %v651, 1.442695
    %v667 = vpow.pop %v666
    %v668 = vsel %vm619, %v653, 0.0
    %669 = vadd.xlane.f32.xlu0 %v668
    %v670 = vpop.xlane.xlu0 %669
    %v671 = vsel %vm619, %v655, 0.0
    %672 = vadd.xlane.f32.xlu0 %v671
    %v673 = vpop.xlane.xlu0 %672
    %v674 = vsel %vm619, %v657, 0.0
    %675 = vadd.xlane.f32.xlu0 %v674
    %v676 = vpop.xlane.xlu0 %675
    %v677 = vsel %vm619, %v659, 0.0
    %678 = vadd.xlane.f32.xlu0 %v677
    %v679 = vpop.xlane.xlu0 %678
    %v680 = vsel %vm619, %v661, 0.0
    %681 = vadd.xlane.f32.xlu0 %v680
    %v682 = vpop.xlane.xlu0 %681
    %v683 = vsel %vm619, %v663, 0.0
    %684 = vadd.xlane.f32.xlu0 %v683
    %v685 = vpop.xlane.xlu0 %684
    %v686 = vsel %vm619, %v665, 0.0
    %687 = vadd.xlane.f32.xlu0 %v686
    %v688 = vpop.xlane.xlu0 %687
    %v689 = vsel %vm619, %v667, 0.0
    %690 = vadd.xlane.f32.xlu0 %v689
    %v691 = vpop.xlane.xlu0 %690
    %v692 = vrcp.pop %v670
    %v693 = vmul.f32 %v670, %v692
    %v694 = vsub.f32 1.0, %v693
    %v695 = vmul.f32 %v692, %v694
    %v696 = vadd.f32 %v692, %v695
    %vm697 = vweird.f32 %v670
    %vm698 = vweird.f32 %v692
    %vm699 = vmor %vm697, %vm698
    %v700 = vsel %vm699, %v692, %v696
    %v701 = vand.u32 2147483647, %v670
    %vm702 = vcmp.eq.f32.partialorder %v701, 8.507059e+37
    %v703 = vand.u32 %v670, 2147483648
    %v704 = vor.u32 1.1754944e-38, %v703
    %v705 = vsel %vm702, %v704, %v700
    %v706 = vmul.f32 %v653, %v705
    %v707 = vrcp.pop %v673
    %v708 = vmul.f32 %v673, %v707
    %v709 = vsub.f32 1.0, %v708
    %v710 = vmul.f32 %v707, %v709
    %v711 = vadd.f32 %v707, %v710
    %vm712 = vweird.f32 %v673
    %vm713 = vweird.f32 %v707
    %vm714 = vmor %vm712, %vm713
    %v715 = vsel %vm714, %v707, %v711
    %v716 = vand.u32 2147483647, %v673
    %vm717 = vcmp.eq.f32.partialorder %v716, 8.507059e+37
    %v718 = vand.u32 %v673, 2147483648
    %v719 = vor.u32 1.1754944e-38, %v718
    %v720 = vsel %vm717, %v719, %v715
    %v721 = vmul.f32 %v655, %v720
    %v722 = vrcp.pop %v676
    %v723 = vmul.f32 %v676, %v722
    %v724 = vsub.f32 1.0, %v723
    %v725 = vmul.f32 %v722, %v724
    %v726 = vadd.f32 %v722, %v725
    %vm727 = vweird.f32 %v676
    %vm728 = vweird.f32 %v722
    %vm729 = vmor %vm727, %vm728
    %v730 = vsel %vm729, %v722, %v726
    %v731 = vand.u32 2147483647, %v676
    %vm732 = vcmp.eq.f32.partialorder %v731, 8.507059e+37
    %v733 = vand.u32 %v676, 2147483648
    %v734 = vor.u32 1.1754944e-38, %v733
    %v735 = vsel %vm732, %v734, %v730
    %v736 = vmul.f32 %v657, %v735
    %v737 = vrcp.pop %v679
    %v738 = vmul.f32 %v679, %v737
    %v739 = vsub.f32 1.0, %v738
    %v740 = vmul.f32 %v737, %v739
    %v741 = vadd.f32 %v737, %v740
    %vm742 = vweird.f32 %v679
    %vm743 = vweird.f32 %v737
    %vm744 = vmor %vm742, %vm743
    %v745 = vsel %vm744, %v737, %v741
    %v746 = vand.u32 2147483647, %v679
    %vm747 = vcmp.eq.f32.partialorder %v746, 8.507059e+37
    %v748 = vand.u32 %v679, 2147483648
    %v749 = vor.u32 1.1754944e-38, %v748
    %v750 = vsel %vm747, %v749, %v745
    %v751 = vmul.f32 %v659, %v750
    %v752 = vrcp.pop %v682
    %v753 = vmul.f32 %v682, %v752
    %v754 = vsub.f32 1.0, %v753
    %v755 = vmul.f32 %v752, %v754
    %v756 = vadd.f32 %v752, %v755
    %vm757 = vweird.f32 %v682
    %vm758 = vweird.f32 %v752
    %vm759 = vmor %vm757, %vm758
    %v760 = vsel %vm759, %v752, %v756
    %v761 = vand.u32 2147483647, %v682
    %vm762 = vcmp.eq.f32.partialorder %v761, 8.507059e+37
    %v763 = vand.u32 %v682, 2147483648
    %v764 = vor.u32 1.1754944e-38, %v763
    %v765 = vsel %vm762, %v764, %v760
    %v766 = vmul.f32 %v661, %v765
    %v767 = vrcp.pop %v685
    %v768 = vmul.f32 %v685, %v767
    %v769 = vsub.f32 1.0, %v768
    %v770 = vmul.f32 %v767, %v769
    %v771 = vadd.f32 %v767, %v770
    %vm772 = vweird.f32 %v685
    %vm773 = vweird.f32 %v767
    %vm774 = vmor %vm772, %vm773
    %v775 = vsel %vm774, %v767, %v771
    %v776 = vand.u32 2147483647, %v685
    %vm777 = vcmp.eq.f32.partialorder %v776, 8.507059e+37
    %v778 = vand.u32 %v685, 2147483648
    %v779 = vor.u32 1.1754944e-38, %v778
    %v780 = vsel %vm777, %v779, %v775
    %v781 = vmul.f32 %v663, %v780
    %v782 = vrcp.pop %v688
    %v783 = vmul.f32 %v688, %v782
    %v784 = vsub.f32 1.0, %v783
    %v785 = vmul.f32 %v782, %v784
    %v786 = vadd.f32 %v782, %v785
    %vm787 = vweird.f32 %v688
    %vm788 = vweird.f32 %v782
    %vm789 = vmor %vm787, %vm788
    %v790 = vsel %vm789, %v782, %v786
    %v791 = vand.u32 2147483647, %v688
    %vm792 = vcmp.eq.f32.partialorder %v791, 8.507059e+37
    %v793 = vand.u32 %v688, 2147483648
    %v794 = vor.u32 1.1754944e-38, %v793
    %v795 = vsel %vm792, %v794, %v790
    %v796 = vmul.f32 %v665, %v795
    %v797 = vrcp.pop %v691
    %v798 = vmul.f32 %v691, %v797
    %v799 = vsub.f32 1.0, %v798
    %v800 = vmul.f32 %v797, %v799
    %v801 = vadd.f32 %v797, %v800
    %vm802 = vweird.f32 %v691
    %vm803 = vweird.f32 %v797
    %vm804 = vmor %vm802, %vm803
    %v805 = vsel %vm804, %v797, %v801
    %v806 = vand.u32 2147483647, %v691
    %vm807 = vcmp.eq.f32.partialorder %v806, 8.507059e+37
    %v808 = vand.u32 %v691, 2147483648
    %v809 = vor.u32 1.1754944e-38, %v808
    %v810 = vsel %vm807, %v809, %v805
    %v811 = vmul.f32 %v667, %v810
    %v812 = vpack.c.bf16 %v706, %v706
    %v813 = vpack.c.bf16 %v721, %v721
    %v814 = vpack.c.bf16 %v736, %v736
    %v815 = vpack.c.bf16 %v751, %v751
    %v816 = vpack.c.bf16 %v766, %v766
    %v817 = vpack.c.bf16 %v781, %v781
    %v818 = vpack.c.bf16 %v796, %v796
    %v819 = vpack.c.bf16 %v811, %v811
    %v821 = vsel %vm619, %v812, 0
    %vm823 = vcmask 1043456
    %v825 = vsel %vm823, %v458, 0
    %827 = vmatpush.bf16.msra.mxu0 0
    %828 = vmatpush.bf16.msra.mxu0 0
    %829 = vmatpush.bf16.msra.mxu0 0
    %830 = vmatpush.bf16.msra.mxu0 0
    %831 = vmatpush.bf16.msra.mxu0 0
    %832 = vmatpush.bf16.msra.mxu0 0
    %833 = vmatpush.bf16.msra.mxu0 0
    %834 = vmatpush.bf16.msra.mxu0 %v825
    %835 = vmatmul.bf16.gmra.mxu0 %v821
    %v836 = vpop.f32.mrf.mxu0
    %v837 = vadd.f32 0.0, %v836
    %v838 = vpop.f32.mrf.mxu0
    %839 = vdwg.mxu0
    %v841 = vsel %vm619, %v813, 0
    %v844 = vsel %vm823, %v459, 0
    %846 = vmatpush.bf16.msra.mxu0 0
    %847 = vmatpush.bf16.msra.mxu0 0
    %848 = vmatpush.bf16.msra.mxu0 0
    %849 = vmatpush.bf16.msra.mxu0 0
    %850 = vmatpush.bf16.msra.mxu0 0
    %851 = vmatpush.bf16.msra.mxu0 0
    %852 = vmatpush.bf16.msra.mxu0 0
    %853 = vmatpush.bf16.msra.mxu0 %v844
    %854 = vmatmul.bf16.gmra.mxu0 %v841
    %v855 = vpop.f32.mrf.mxu0
    %v856 = vadd.f32 0.0, %v855
    %v857 = vpop.f32.mrf.mxu0
    %858 = vdwg.mxu0
    %v860 = vsel %vm619, %v814, 0
    %v863 = vsel %vm823, %v460, 0
    %865 = vmatpush.bf16.msra.mxu0 0
    %866 = vmatpush.bf16.msra.mxu0 0
    %867 = vmatpush.bf16.msra.mxu0 0
    %868 = vmatpush.bf16.msra.mxu0 0
    %869 = vmatpush.bf16.msra.mxu0 0
    %870 = vmatpush.bf16.msra.mxu0 0
    %871 = vmatpush.bf16.msra.mxu0 0
    %872 = vmatpush.bf16.msra.mxu0 %v863
    %873 = vmatmul.bf16.gmra.mxu0 %v860
    %v874 = vpop.f32.mrf.mxu0
    %v875 = vadd.f32 0.0, %v874
    %v876 = vpop.f32.mrf.mxu0
    %877 = vdwg.mxu0
    %v879 = vsel %vm619, %v815, 0
    %v882 = vsel %vm823, %v461, 0
    %884 = vmatpush.bf16.msra.mxu0 0
    %885 = vmatpush.bf16.msra.mxu0 0
    %886 = vmatpush.bf16.msra.mxu0 0
    %887 = vmatpush.bf16.msra.mxu0 0
    %888 = vmatpush.bf16.msra.mxu0 0
    %889 = vmatpush.bf16.msra.mxu0 0
    %890 = vmatpush.bf16.msra.mxu0 0
    %891 = vmatpush.bf16.msra.mxu0 %v882
    %892 = vmatmul.bf16.gmra.mxu0 %v879
    %v893 = vpop.f32.mrf.mxu0
    %v894 = vadd.f32 0.0, %v893
    %v895 = vpop.f32.mrf.mxu0
    %896 = vdwg.mxu0
    %v898 = vsel %vm619, %v816, 0
    %v901 = vsel %vm823, %v462, 0
    %903 = vmatpush.bf16.msra.mxu0 0
    %904 = vmatpush.bf16.msra.mxu0 0
    %905 = vmatpush.bf16.msra.mxu0 0
    %906 = vmatpush.bf16.msra.mxu0 0
    %907 = vmatpush.bf16.msra.mxu0 0
    %908 = vmatpush.bf16.msra.mxu0 0
    %909 = vmatpush.bf16.msra.mxu0 0
    %910 = vmatpush.bf16.msra.mxu0 %v901
    %911 = vmatmul.bf16.gmra.mxu0 %v898
    %v912 = vpop.f32.mrf.mxu0
    %v913 = vadd.f32 0.0, %v912
    %v914 = vpop.f32.mrf.mxu0
    %915 = vdwg.mxu0
    %v917 = vsel %vm619, %v817, 0
    %v920 = vsel %vm823, %v463, 0
    %922 = vmatpush.bf16.msra.mxu0 0
    %923 = vmatpush.bf16.msra.mxu0 0
    %924 = vmatpush.bf16.msra.mxu0 0
    %925 = vmatpush.bf16.msra.mxu0 0
    %926 = vmatpush.bf16.msra.mxu0 0
    %927 = vmatpush.bf16.msra.mxu0 0
    %928 = vmatpush.bf16.msra.mxu0 0
    %929 = vmatpush.bf16.msra.mxu0 %v920
    %930 = vmatmul.bf16.gmra.mxu0 %v917
    %v931 = vpop.f32.mrf.mxu0
    %v932 = vadd.f32 0.0, %v931
    %v933 = vpop.f32.mrf.mxu0
    %934 = vdwg.mxu0
    %v936 = vsel %vm619, %v818, 0
    %v939 = vsel %vm823, %v464, 0
    %941 = vmatpush.bf16.msra.mxu0 0
    %942 = vmatpush.bf16.msra.mxu0 0
    %943 = vmatpush.bf16.msra.mxu0 0
    %944 = vmatpush.bf16.msra.mxu0 0
    %945 = vmatpush.bf16.msra.mxu0 0
    %946 = vmatpush.bf16.msra.mxu0 0
    %947 = vmatpush.bf16.msra.mxu0 0
    %948 = vmatpush.bf16.msra.mxu0 %v939
    %949 = vmatmul.bf16.gmra.mxu0 %v936
    %v950 = vpop.f32.mrf.mxu0
    %v951 = vadd.f32 0.0, %v950
    %v952 = vpop.f32.mrf.mxu0
    %953 = vdwg.mxu0
    %v955 = vsel %vm619, %v819, 0
    %v958 = vsel %vm823, %v465, 0
    %960 = vmatpush.bf16.msra.mxu0 0
    %961 = vmatpush.bf16.msra.mxu0 0
    %962 = vmatpush.bf16.msra.mxu0 0
    %963 = vmatpush.bf16.msra.mxu0 0
    %964 = vmatpush.bf16.msra.mxu0 0
    %965 = vmatpush.bf16.msra.mxu0 0
    %966 = vmatpush.bf16.msra.mxu0 0
    %967 = vmatpush.bf16.msra.mxu0 %v958
    %968 = vmatmul.bf16.gmra.mxu0 %v955
    %v969 = vpop.f32.mrf.mxu0
    %v970 = vadd.f32 0.0, %v969
    %v971 = vpop.f32.mrf.mxu0
    %972 = vdwg.mxu0
    %v973 = vpack.c.bf16 %v837, %v837
    %v974 = vpack.c.bf16 %v856, %v856
    %v975 = vpack.c.bf16 %v875, %v875
    %v976 = vpack.c.bf16 %v894, %v894
    %v977 = vpack.c.bf16 %v913, %v913
    %v978 = vpack.c.bf16 %v932, %v932
    %v979 = vpack.c.bf16 %v951, %v951
    %v980 = vpack.c.bf16 %v970, %v970
    %v981 = vld [vmem:[%s5] sm:$0xf]
    %v982 = vld [vmem:[%s5 + $0x4] sm:$0xf]
    %v983 = vld [vmem:[%s5 + $0x8] sm:$0xf]
    %v984 = vld [vmem:[%s5 + $0xc] sm:$0xf]
    %v985 = vld [vmem:[%s5 + $0x10] sm:$0xf]
    %v986 = vld [vmem:[%s5 + $0x14] sm:$0xf]
    %v987 = vld [vmem:[%s5 + $0x18] sm:$0xf]
    %v988 = vld [vmem:[%s5 + $0x1c] sm:$0xf]
    %v989 = vld [vmem:[%s5 + $0x20] sm:$0xf]
    %v990 = vld [vmem:[%s5 + $0x24] sm:$0xf]
    %v991 = vld [vmem:[%s5 + $0x28] sm:$0xf]
    %v992 = vld [vmem:[%s5 + $0x2c] sm:$0xf]
    %v993 = vld [vmem:[%s5 + $0x30] sm:$0xf]
    %v994 = vld [vmem:[%s5 + $0x34] sm:$0xf]
    %v995 = vld [vmem:[%s5 + $0x38] sm:$0xf]
    %v996 = vld [vmem:[%s5 + $0x3c] sm:$0xf]
    %s997 = scalar_lea.vmem %s5, 64
    %v998 = vld [vmem:[%s997] sm:$0xf]
    %v999 = vld [vmem:[%s997 + $0x4] sm:$0xf]
    %v1000 = vld [vmem:[%s997 + $0x8] sm:$0xf]
    %v1001 = vld [vmem:[%s997 + $0xc] sm:$0xf]
    %v1002 = vld [vmem:[%s997 + $0x10] sm:$0xf]
    %v1003 = vld [vmem:[%s997 + $0x14] sm:$0xf]
    %v1004 = vld [vmem:[%s997 + $0x18] sm:$0xf]
    %v1005 = vld [vmem:[%s997 + $0x1c] sm:$0xf]
    %v1006 = vld [vmem:[%s997 + $0x20] sm:$0xf]
    %v1007 = vld [vmem:[%s997 + $0x24] sm:$0xf]
    %v1008 = vld [vmem:[%s997 + $0x28] sm:$0xf]
    %v1009 = vld [vmem:[%s997 + $0x2c] sm:$0xf]
    %v1010 = vld [vmem:[%s997 + $0x30] sm:$0xf]
    %v1011 = vld [vmem:[%s997 + $0x34] sm:$0xf]
    %v1012 = vld [vmem:[%s997 + $0x38] sm:$0xf]
    %v1013 = vld [vmem:[%s997 + $0x3c] sm:$0xf]
    %v1016 = vunpack.c.l.b16 %v975
    %v1017 = vunpack.c.l.b16 %v976
    %v1018 = vpack.c.b16 %v1017, %v1016
    %v1035 = vunpack.c.l.b16 %v998
    %v1036 = vunpack.c.l.b16 %v999
    %v1037 = vunpack.c.l.b16 %v1000
    %v1038 = vunpack.c.l.b16 %v1001
    %v1039 = vunpack.c.l.b16 %v1002
    %v1040 = vunpack.c.l.b16 %v1003
    %v1041 = vunpack.c.l.b16 %v1004
    %v1042 = vunpack.c.l.b16 %v1005
    %v1043 = vunpack.c.l.b16 %v1006
    %v1044 = vunpack.c.l.b16 %v1007
    %v1045 = vunpack.c.l.b16 %v1008
    %v1046 = vunpack.c.l.b16 %v1009
    %v1047 = vunpack.c.l.b16 %v1010
    %v1048 = vunpack.c.l.b16 %v1011
    %v1049 = vunpack.c.l.b16 %v1012
    %v1050 = vunpack.c.l.b16 %v1013
    %v1051 = vpack.c.b16 %v1036, %v1035
    %v1052 = vpack.c.b16 %v1038, %v1037
    %v1053 = vpack.c.b16 %v1040, %v1039
    %v1054 = vpack.c.b16 %v1042, %v1041
    %v1055 = vpack.c.b16 %v1044, %v1043
    %v1056 = vpack.c.b16 %v1046, %v1045
    %v1057 = vpack.c.b16 %v1048, %v1047
    %v1058 = vpack.c.b16 %v1050, %v1049
    %v1060 = vsel %vm466, %v1018, 0
    %v1063 = vsel %vm466, %v1051, 0
    %v1066 = vsel %vm466, %v1052, 0
    %v1069 = vsel %vm466, %v1053, 0
    %v1072 = vsel %vm466, %v1054, 0
    %v1075 = vsel %vm466, %v1055, 0
    %v1078 = vsel %vm466, %v1056, 0
    %v1081 = vsel %vm466, %v1057, 0
    %v1084 = vsel %vm466, %v1058, 0
    %1086 = vmatpush.bf16.xpose.msra.mxu0 %v1084
    %1087 = vmatpush.bf16.xpose.msra.mxu0 %v1081
    %1088 = vmatpush.bf16.xpose.msra.mxu0 %v1078
    %1089 = vmatpush.bf16.xpose.msra.mxu0 %v1075
    %1090 = vmatpush.bf16.xpose.msra.mxu0 %v1072
    %1091 = vmatpush.bf16.xpose.msra.mxu0 %v1069
    %1092 = vmatpush.bf16.xpose.msra.mxu0 %v1066
    %1093 = vmatpush.bf16.xpose.msra.mxu0 %v1063
    %1094 = vmatmul.bf16.gmra.mxu0 %v1060
    %v1095 = vpop.f32.mrf.mxu0
    %v1096 = vadd.f32 0.0, %v1095
    %v1097 = vpop.f32.mrf.mxu0
    %v1098 = vadd.f32 0.0, %v1097
    %1099 = vdwg.mxu0
    %v1102 = vunpack.c.l.b16 %v973
    %v1103 = vunpack.c.l.b16 %v974
    %v1104 = vpack.c.b16 %v1103, %v1102
    %v1121 = vunpack.c.l.b16 %v981
    %v1122 = vunpack.c.l.b16 %v982
    %v1123 = vunpack.c.l.b16 %v983
    %v1124 = vunpack.c.l.b16 %v984
    %v1125 = vunpack.c.l.b16 %v985
    %v1126 = vunpack.c.l.b16 %v986
    %v1127 = vunpack.c.l.b16 %v987
    %v1128 = vunpack.c.l.b16 %v988
    %v1129 = vunpack.c.l.b16 %v989
    %v1130 = vunpack.c.l.b16 %v990
    %v1131 = vunpack.c.l.b16 %v991
    %v1132 = vunpack.c.l.b16 %v992
    %v1133 = vunpack.c.l.b16 %v993
    %v1134 = vunpack.c.l.b16 %v994
    %v1135 = vunpack.c.l.b16 %v995
    %v1136 = vunpack.c.l.b16 %v996
    %v1137 = vpack.c.b16 %v1122, %v1121
    %v1138 = vpack.c.b16 %v1124, %v1123
    %v1139 = vpack.c.b16 %v1126, %v1125
    %v1140 = vpack.c.b16 %v1128, %v1127
    %v1141 = vpack.c.b16 %v1130, %v1129
    %v1142 = vpack.c.b16 %v1132, %v1131
    %v1143 = vpack.c.b16 %v1134, %v1133
    %v1144 = vpack.c.b16 %v1136, %v1135
    %v1146 = vsel %vm466, %v1104, 0
    %v1149 = vsel %vm466, %v1137, 0
    %v1152 = vsel %vm466, %v1138, 0
    %v1155 = vsel %vm466, %v1139, 0
    %v1158 = vsel %vm466, %v1140, 0
    %v1161 = vsel %vm466, %v1141, 0
    %v1164 = vsel %vm466, %v1142, 0
    %v1167 = vsel %vm466, %v1143, 0
    %v1170 = vsel %vm466, %v1144, 0
    %1172 = vmatpush.bf16.xpose.msra.mxu0 %v1170
    %1173 = vmatpush.bf16.xpose.msra.mxu0 %v1167
    %1174 = vmatpush.bf16.xpose.msra.mxu0 %v1164
    %1175 = vmatpush.bf16.xpose.msra.mxu0 %v1161
    %1176 = vmatpush.bf16.xpose.msra.mxu0 %v1158
    %1177 = vmatpush.bf16.xpose.msra.mxu0 %v1155
    %1178 = vmatpush.bf16.xpose.msra.mxu0 %v1152
    %1179 = vmatpush.bf16.xpose.msra.mxu0 %v1149
    %1180 = vmatmul.bf16.gmra.mxu0 %v1146
    %v1181 = vpop.f32.mrf.mxu0
    %v1182 = vadd.f32 %v1096, %v1181
    %v1183 = vpop.f32.mrf.mxu0
    %v1184 = vadd.f32 %v1098, %v1183
    %1185 = vdwg.mxu0
    %s1186 = scalar_lea.vmem %s5, 128
    %v1187 = vld [vmem:[%s1186] sm:$0xf]
    %v1188 = vld [vmem:[%s1186 + $0x4] sm:$0xf]
    %v1189 = vld [vmem:[%s1186 + $0x8] sm:$0xf]
    %v1190 = vld [vmem:[%s1186 + $0xc] sm:$0xf]
    %v1191 = vld [vmem:[%s1186 + $0x10] sm:$0xf]
    %v1192 = vld [vmem:[%s1186 + $0x14] sm:$0xf]
    %v1193 = vld [vmem:[%s1186 + $0x18] sm:$0xf]
    %v1194 = vld [vmem:[%s1186 + $0x1c] sm:$0xf]
    %v1195 = vld [vmem:[%s1186 + $0x20] sm:$0xf]
    %v1196 = vld [vmem:[%s1186 + $0x24] sm:$0xf]
    %v1197 = vld [vmem:[%s1186 + $0x28] sm:$0xf]
    %v1198 = vld [vmem:[%s1186 + $0x2c] sm:$0xf]
    %v1199 = vld [vmem:[%s1186 + $0x30] sm:$0xf]
    %v1200 = vld [vmem:[%s1186 + $0x34] sm:$0xf]
    %v1201 = vld [vmem:[%s1186 + $0x38] sm:$0xf]
    %v1202 = vld [vmem:[%s1186 + $0x3c] sm:$0xf]
    %v1205 = vunpack.c.l.b16 %v977
    %v1206 = vunpack.c.l.b16 %v978
    %v1207 = vpack.c.b16 %v1206, %v1205
    %v1224 = vunpack.c.l.b16 %v1187
    %v1225 = vunpack.c.l.b16 %v1188
    %v1226 = vunpack.c.l.b16 %v1189
    %v1227 = vunpack.c.l.b16 %v1190
    %v1228 = vunpack.c.l.b16 %v1191
    %v1229 = vunpack.c.l.b16 %v1192
    %v1230 = vunpack.c.l.b16 %v1193
    %v1231 = vunpack.c.l.b16 %v1194
    %v1232 = vunpack.c.l.b16 %v1195
    %v1233 = vunpack.c.l.b16 %v1196
    %v1234 = vunpack.c.l.b16 %v1197
    %v1235 = vunpack.c.l.b16 %v1198
    %v1236 = vunpack.c.l.b16 %v1199
    %v1237 = vunpack.c.l.b16 %v1200
    %v1238 = vunpack.c.l.b16 %v1201
    %v1239 = vunpack.c.l.b16 %v1202
    %v1240 = vpack.c.b16 %v1225, %v1224
    %v1241 = vpack.c.b16 %v1227, %v1226
    %v1242 = vpack.c.b16 %v1229, %v1228
    %v1243 = vpack.c.b16 %v1231, %v1230
    %v1244 = vpack.c.b16 %v1233, %v1232
    %v1245 = vpack.c.b16 %v1235, %v1234
    %v1246 = vpack.c.b16 %v1237, %v1236
    %v1247 = vpack.c.b16 %v1239, %v1238
    %v1249 = vsel %vm466, %v1207, 0
    %v1252 = vsel %vm466, %v1240, 0
    %v1255 = vsel %vm466, %v1241, 0
    %v1258 = vsel %vm466, %v1242, 0
    %v1261 = vsel %vm466, %v1243, 0
    %v1264 = vsel %vm466, %v1244, 0
    %v1267 = vsel %vm466, %v1245, 0
    %v1270 = vsel %vm466, %v1246, 0
    %v1273 = vsel %vm466, %v1247, 0
    %1275 = vmatpush.bf16.xpose.msra.mxu0 %v1273
    %1276 = vmatpush.bf16.xpose.msra.mxu0 %v1270
    %1277 = vmatpush.bf16.xpose.msra.mxu0 %v1267
    %1278 = vmatpush.bf16.xpose.msra.mxu0 %v1264
    %1279 = vmatpush.bf16.xpose.msra.mxu0 %v1261
    %1280 = vmatpush.bf16.xpose.msra.mxu0 %v1258
    %1281 = vmatpush.bf16.xpose.msra.mxu0 %v1255
    %1282 = vmatpush.bf16.xpose.msra.mxu0 %v1252
    %1283 = vmatmul.bf16.gmra.mxu0 %v1249
    %v1284 = vpop.f32.mrf.mxu0
    %v1285 = vadd.f32 0.0, %v1284
    %v1286 = vpop.f32.mrf.mxu0
    %v1287 = vadd.f32 0.0, %v1286
    %1288 = vdwg.mxu0
    %v1289 = vadd.f32 %v1182, %v1285
    %v1290 = vadd.f32 %v1184, %v1287
    %s1291 = scalar_lea.vmem %s5, 192
    %v1292 = vld [vmem:[%s1291] sm:$0xf]
    %v1293 = vld [vmem:[%s1291 + $0x4] sm:$0xf]
    %v1294 = vld [vmem:[%s1291 + $0x8] sm:$0xf]
    %v1295 = vld [vmem:[%s1291 + $0xc] sm:$0xf]
    %v1296 = vld [vmem:[%s1291 + $0x10] sm:$0xf]
    %v1297 = vld [vmem:[%s1291 + $0x14] sm:$0xf]
    %v1298 = vld [vmem:[%s1291 + $0x18] sm:$0xf]
    %v1299 = vld [vmem:[%s1291 + $0x1c] sm:$0xf]
    %v1300 = vld [vmem:[%s1291 + $0x20] sm:$0xf]
    %v1301 = vld [vmem:[%s1291 + $0x24] sm:$0xf]
    %v1302 = vld [vmem:[%s1291 + $0x28] sm:$0xf]
    %v1303 = vld [vmem:[%s1291 + $0x2c] sm:$0xf]
    %v1304 = vld [vmem:[%s1291 + $0x30] sm:$0xf]
    %v1305 = vld [vmem:[%s1291 + $0x34] sm:$0xf]
    %v1306 = vld [vmem:[%s1291 + $0x38] sm:$0xf]
    %v1307 = vld [vmem:[%s1291 + $0x3c] sm:$0xf]
    %v1310 = vunpack.c.l.b16 %v979
    %v1311 = vunpack.c.l.b16 %v980
    %v1312 = vpack.c.b16 %v1311, %v1310
    %v1329 = vunpack.c.l.b16 %v1292
    %v1330 = vunpack.c.l.b16 %v1293
    %v1331 = vunpack.c.l.b16 %v1294
    %v1332 = vunpack.c.l.b16 %v1295
    %v1333 = vunpack.c.l.b16 %v1296
    %v1334 = vunpack.c.l.b16 %v1297
    %v1335 = vunpack.c.l.b16 %v1298
    %v1336 = vunpack.c.l.b16 %v1299
    %v1337 = vunpack.c.l.b16 %v1300
    %v1338 = vunpack.c.l.b16 %v1301
    %v1339 = vunpack.c.l.b16 %v1302
    %v1340 = vunpack.c.l.b16 %v1303
    %v1341 = vunpack.c.l.b16 %v1304
    %v1342 = vunpack.c.l.b16 %v1305
    %v1343 = vunpack.c.l.b16 %v1306
    %v1344 = vunpack.c.l.b16 %v1307
    %v1345 = vpack.c.b16 %v1330, %v1329
    %v1346 = vpack.c.b16 %v1332, %v1331
    %v1347 = vpack.c.b16 %v1334, %v1333
    %v1348 = vpack.c.b16 %v1336, %v1335
    %v1349 = vpack.c.b16 %v1338, %v1337
    %v1350 = vpack.c.b16 %v1340, %v1339
    %v1351 = vpack.c.b16 %v1342, %v1341
    %v1352 = vpack.c.b16 %v1344, %v1343
    %v1354 = vsel %vm466, %v1312, 0
    %v1357 = vsel %vm466, %v1345, 0
    %v1360 = vsel %vm466, %v1346, 0
    %v1363 = vsel %vm466, %v1347, 0
    %v1366 = vsel %vm466, %v1348, 0
    %v1369 = vsel %vm466, %v1349, 0
    %v1372 = vsel %vm466, %v1350, 0
    %v1375 = vsel %vm466, %v1351, 0
    %v1378 = vsel %vm466, %v1352, 0
    %1380 = vmatpush.bf16.xpose.msra.mxu0 %v1378
    %1381 = vmatpush.bf16.xpose.msra.mxu0 %v1375
    %1382 = vmatpush.bf16.xpose.msra.mxu0 %v1372
    %1383 = vmatpush.bf16.xpose.msra.mxu0 %v1369
    %1384 = vmatpush.bf16.xpose.msra.mxu0 %v1366
    %1385 = vmatpush.bf16.xpose.msra.mxu0 %v1363
    %1386 = vmatpush.bf16.xpose.msra.mxu0 %v1360
    %1387 = vmatpush.bf16.xpose.msra.mxu0 %v1357
    %1388 = vmatmul.bf16.gmra.mxu0 %v1354
    %v1389 = vpop.f32.mrf.mxu0
    %v1390 = vadd.f32 0.0, %v1389
    %v1391 = vpop.f32.mrf.mxu0
    %v1392 = vadd.f32 0.0, %v1391
    %1393 = vdwg.mxu0
    %v1394 = vadd.f32 %v1289, %v1390
    %v1395 = vadd.f32 %v1290, %v1392
    %v1396 = vadd.f32 %v78, %v1394
    %v1397 = vadd.f32 %v79, %v1395
    %v1398 = vld [vmem:[%s6] sm:$0x1]
    %v1400 = vperm.slane %v1398, 0
    %v1402 = vadd.f32 %v1396, %v1400
    %v1403 = vadd.f32 %v1397, %v1400
    %1404 = vadd.xlane.f32.xlu0 %v1402
    %v1405 = vpop.xlane.xlu0 %1404
    %1406 = vadd.xlane.f32.xlu0 %v1403
    %v1407 = vpop.xlane.xlu0 %1406
    %v1408 = vmul.f32 %v1405, %v90
    %v1409 = vmul.f32 %v1407, %v90
    %v1410 = vsub.f32 %v1402, %v1408
    %v1411 = vsub.f32 %v1403, %v1409
    %v1412 = vmul.f32 %v1410, %v1410
    %v1413 = vmul.f32 %v1411, %v1411
    %1414 = vadd.xlane.f32.xlu0 %v1412
    %v1415 = vpop.xlane.xlu0 %1414
    %1416 = vadd.xlane.f32.xlu0 %v1413
    %v1417 = vpop.xlane.xlu0 %1416
    %v1418 = vmul.f32 %v1415, %v90
    %v1419 = vmul.f32 %v1417, %v90
    %v1420 = vadd.f32 %v1418, 1e-05
    %v1421 = vadd.f32 %v1419, 1e-05
    %v1422 = vrsqrt.pop %v1420
    %v1423 = vmul.f32 %v1422, %v1420
    %v1424 = vmul.f32 %v1423, %v1422
    %v1425 = vmul.f32 0.5, %v1424
    %v1426 = vsub.f32 1.5, %v1425
    %v1427 = vmul.f32 %v1422, %v1426
    %vm1428 = vweird.f32 %v1420
    %vm1429 = vweird.f32 %v1422
    %vm1430 = vmor %vm1428, %vm1429
    %v1431 = vsel %vm1430, %v1422, %v1427
    %v1432 = vrsqrt.pop %v1421
    %v1433 = vmul.f32 %v1432, %v1421
    %v1434 = vmul.f32 %v1433, %v1432
    %v1435 = vmul.f32 0.5, %v1434
    %v1436 = vsub.f32 1.5, %v1435
    %v1437 = vmul.f32 %v1432, %v1436
    %vm1438 = vweird.f32 %v1421
    %vm1439 = vweird.f32 %v1432
    %vm1440 = vmor %vm1438, %vm1439
    %v1441 = vsel %vm1440, %v1432, %v1437
    %v1442 = vmul.f32 %v1410, %v1431
    %v1443 = vmul.f32 %v1411, %v1441
    %v1444 = vld [vmem:[%s7] sm:$0x1]
    %v1446 = vperm.slane %v1444, 0
    %v1448 = vmul.f32 %v1442, %v1446
    %v1449 = vmul.f32 %v1443, %v1446
    %v1450 = vld [vmem:[%s8] sm:$0x1]
    %v1452 = vperm.slane %v1450, 0
    %v1454 = vadd.f32 %v1448, %v1452
    %v1455 = vadd.f32 %v1449, %v1452
    %v1456 = vpack.c.bf16 %v1455, %v1454
    %v1457 = vld [vmem:[%s9] sm:$0xf]
    %v1458 = vld [vmem:[%s9 + $0x4] sm:$0xf]
    %v1459 = vld [vmem:[%s9 + $0x8] sm:$0xf]
    %v1460 = vld [vmem:[%s9 + $0xc] sm:$0xf]
    %v1461 = vld [vmem:[%s9 + $0x10] sm:$0xf]
    %v1462 = vld [vmem:[%s9 + $0x14] sm:$0xf]
    %v1463 = vld [vmem:[%s9 + $0x18] sm:$0xf]
    %v1464 = vld [vmem:[%s9 + $0x1c] sm:$0xf]
    %v1465 = vld [vmem:[%s9 + $0x20] sm:$0xf]
    %v1466 = vld [vmem:[%s9 + $0x24] sm:$0xf]
    %v1467 = vld [vmem:[%s9 + $0x28] sm:$0xf]
    %v1468 = vld [vmem:[%s9 + $0x2c] sm:$0xf]
    %v1469 = vld [vmem:[%s9 + $0x30] sm:$0xf]
    %v1470 = vld [vmem:[%s9 + $0x34] sm:$0xf]
    %v1471 = vld [vmem:[%s9 + $0x38] sm:$0xf]
    %v1472 = vld [vmem:[%s9 + $0x3c] sm:$0xf]
    %v1473 = vld [vmem:[%s9 + $0x40] sm:$0xf]
    %v1474 = vld [vmem:[%s9 + $0x44] sm:$0xf]
    %v1475 = vld [vmem:[%s9 + $0x48] sm:$0xf]
    %v1476 = vld [vmem:[%s9 + $0x4c] sm:$0xf]
    %v1477 = vld [vmem:[%s9 + $0x50] sm:$0xf]
    %v1478 = vld [vmem:[%s9 + $0x54] sm:$0xf]
    %v1479 = vld [vmem:[%s9 + $0x58] sm:$0xf]
    %v1480 = vld [vmem:[%s9 + $0x5c] sm:$0xf]
    %v1481 = vld [vmem:[%s9 + $0x60] sm:$0xf]
    %v1482 = vld [vmem:[%s9 + $0x64] sm:$0xf]
    %v1483 = vld [vmem:[%s9 + $0x68] sm:$0xf]
    %v1484 = vld [vmem:[%s9 + $0x6c] sm:$0xf]
    %v1485 = vld [vmem:[%s9 + $0x70] sm:$0xf]
    %v1486 = vld [vmem:[%s9 + $0x74] sm:$0xf]
    %v1487 = vld [vmem:[%s9 + $0x78] sm:$0xf]
    %v1488 = vld [vmem:[%s9 + $0x7c] sm:$0xf]
    %v1489 = vld [vmem:[%s9 + $0x80] sm:$0xf]
    %v1490 = vld [vmem:[%s9 + $0x84] sm:$0xf]
    %v1491 = vld [vmem:[%s9 + $0x88] sm:$0xf]
    %v1492 = vld [vmem:[%s9 + $0x8c] sm:$0xf]
    %v1493 = vld [vmem:[%s9 + $0x90] sm:$0xf]
    %v1494 = vld [vmem:[%s9 + $0x94] sm:$0xf]
    %v1495 = vld [vmem:[%s9 + $0x98] sm:$0xf]
    %v1496 = vld [vmem:[%s9 + $0x9c] sm:$0xf]
    %v1497 = vld [vmem:[%s9 + $0xa0] sm:$0xf]
    %v1498 = vld [vmem:[%s9 + $0xa4] sm:$0xf]
    %v1499 = vld [vmem:[%s9 + $0xa8] sm:$0xf]
    %v1500 = vld [vmem:[%s9 + $0xac] sm:$0xf]
    %v1501 = vld [vmem:[%s9 + $0xb0] sm:$0xf]
    %v1502 = vld [vmem:[%s9 + $0xb4] sm:$0xf]
    %v1503 = vld [vmem:[%s9 + $0xb8] sm:$0xf]
    %v1504 = vld [vmem:[%s9 + $0xbc] sm:$0xf]
    %v1505 = vld [vmem:[%s9 + $0xc0] sm:$0xf]
    %v1506 = vld [vmem:[%s9 + $0xc4] sm:$0xf]
    %v1507 = vld [vmem:[%s9 + $0xc8] sm:$0xf]
    %v1508 = vld [vmem:[%s9 + $0xcc] sm:$0xf]
    %v1509 = vld [vmem:[%s9 + $0xd0] sm:$0xf]
    %v1510 = vld [vmem:[%s9 + $0xd4] sm:$0xf]
    %v1511 = vld [vmem:[%s9 + $0xd8] sm:$0xf]
    %v1512 = vld [vmem:[%s9 + $0xdc] sm:$0xf]
    %v1513 = vld [vmem:[%s9 + $0xe0] sm:$0xf]
    %v1514 = vld [vmem:[%s9 + $0xe4] sm:$0xf]
    %v1515 = vld [vmem:[%s9 + $0xe8] sm:$0xf]
    %v1516 = vld [vmem:[%s9 + $0xec] sm:$0xf]
    %v1517 = vld [vmem:[%s9 + $0xf0] sm:$0xf]
    %v1518 = vld [vmem:[%s9 + $0xf4] sm:$0xf]
    %v1519 = vld [vmem:[%s9 + $0xf8] sm:$0xf]
    %v1520 = vld [vmem:[%s9 + $0xfc] sm:$0xf]
    %v1521 = vld [vmem:[%s10] sm:$0xf]
    %v1523 = vperm.slane %v1521, 0
    %v1524 = vperm.slane %v1521, 1
    %v1525 = vperm.slane %v1521, 2
    %v1526 = vperm.slane %v1521, 3
    %v1595 = vunpack.c.l.b16 %v1457
    %v1596 = vunpack.c.l.b16 %v1458
    %v1597 = vunpack.c.l.b16 %v1459
    %v1598 = vunpack.c.l.b16 %v1460
    %v1599 = vunpack.c.l.b16 %v1461
    %v1600 = vunpack.c.l.b16 %v1462
    %v1601 = vunpack.c.l.b16 %v1463
    %v1602 = vunpack.c.l.b16 %v1464
    %v1603 = vunpack.c.l.b16 %v1465
    %v1604 = vunpack.c.l.b16 %v1466
    %v1605 = vunpack.c.l.b16 %v1467
    %v1606 = vunpack.c.l.b16 %v1468
    %v1607 = vunpack.c.l.b16 %v1469
    %v1608 = vunpack.c.l.b16 %v1470
    %v1609 = vunpack.c.l.b16 %v1471
    %v1610 = vunpack.c.l.b16 %v1472
    %v1611 = vunpack.c.l.b16 %v1473
    %v1612 = vunpack.c.l.b16 %v1474
    %v1613 = vunpack.c.l.b16 %v1475
    %v1614 = vunpack.c.l.b16 %v1476
    %v1615 = vunpack.c.l.b16 %v1477
    %v1616 = vunpack.c.l.b16 %v1478
    %v1617 = vunpack.c.l.b16 %v1479
    %v1618 = vunpack.c.l.b16 %v1480
    %v1619 = vunpack.c.l.b16 %v1481
    %v1620 = vunpack.c.l.b16 %v1482
    %v1621 = vunpack.c.l.b16 %v1483
    %v1622 = vunpack.c.l.b16 %v1484
    %v1623 = vunpack.c.l.b16 %v1485
    %v1624 = vunpack.c.l.b16 %v1486
    %v1625 = vunpack.c.l.b16 %v1487
    %v1626 = vunpack.c.l.b16 %v1488
    %v1627 = vunpack.c.l.b16 %v1489
    %v1628 = vunpack.c.l.b16 %v1490
    %v1629 = vunpack.c.l.b16 %v1491
    %v1630 = vunpack.c.l.b16 %v1492
    %v1631 = vunpack.c.l.b16 %v1493
    %v1632 = vunpack.c.l.b16 %v1494
    %v1633 = vunpack.c.l.b16 %v1495
    %v1634 = vunpack.c.l.b16 %v1496
    %v1635 = vunpack.c.l.b16 %v1497
    %v1636 = vunpack.c.l.b16 %v1498
    %v1637 = vunpack.c.l.b16 %v1499
    %v1638 = vunpack.c.l.b16 %v1500
    %v1639 = vunpack.c.l.b16 %v1501
    %v1640 = vunpack.c.l.b16 %v1502
    %v1641 = vunpack.c.l.b16 %v1503
    %v1642 = vunpack.c.l.b16 %v1504
    %v1643 = vunpack.c.l.b16 %v1505
    %v1644 = vunpack.c.l.b16 %v1506
    %v1645 = vunpack.c.l.b16 %v1507
    %v1646 = vunpack.c.l.b16 %v1508
    %v1647 = vunpack.c.l.b16 %v1509
    %v1648 = vunpack.c.l.b16 %v1510
    %v1649 = vunpack.c.l.b16 %v1511
    %v1650 = vunpack.c.l.b16 %v1512
    %v1651 = vunpack.c.l.b16 %v1513
    %v1652 = vunpack.c.l.b16 %v1514
    %v1653 = vunpack.c.l.b16 %v1515
    %v1654 = vunpack.c.l.b16 %v1516
    %v1655 = vunpack.c.l.b16 %v1517
    %v1656 = vunpack.c.l.b16 %v1518
    %v1657 = vunpack.c.l.b16 %v1519
    %v1658 = vunpack.c.l.b16 %v1520
    %v1659 = vpack.c.b16 %v1596, %v1595
    %v1660 = vpack.c.b16 %v1598, %v1597
    %v1661 = vpack.c.b16 %v1600, %v1599
    %v1662 = vpack.c.b16 %v1602, %v1601
    %v1663 = vpack.c.b16 %v1604, %v1603
    %v1664 = vpack.c.b16 %v1606, %v1605
    %v1665 = vpack.c.b16 %v1608, %v1607
    %v1666 = vpack.c.b16 %v1610, %v1609
    %v1667 = vpack.c.b16 %v1612, %v1611
    %v1668 = vpack.c.b16 %v1614, %v1613
    %v1669 = vpack.c.b16 %v1616, %v1615
    %v1670 = vpack.c.b16 %v1618, %v1617
    %v1671 = vpack.c.b16 %v1620, %v1619
    %v1672 = vpack.c.b16 %v1622, %v1621
    %v1673 = vpack.c.b16 %v1624, %v1623
    %v1674 = vpack.c.b16 %v1626, %v1625
    %v1675 = vpack.c.b16 %v1628, %v1627
    %v1676 = vpack.c.b16 %v1630, %v1629
    %v1677 = vpack.c.b16 %v1632, %v1631
    %v1678 = vpack.c.b16 %v1634, %v1633
    %v1679 = vpack.c.b16 %v1636, %v1635
    %v1680 = vpack.c.b16 %v1638, %v1637
    %v1681 = vpack.c.b16 %v1640, %v1639
    %v1682 = vpack.c.b16 %v1642, %v1641
    %v1683 = vpack.c.b16 %v1644, %v1643
    %v1684 = vpack.c.b16 %v1646, %v1645
    %v1685 = vpack.c.b16 %v1648, %v1647
    %v1686 = vpack.c.b16 %v1650, %v1649
    %v1687 = vpack.c.b16 %v1652, %v1651
    %v1688 = vpack.c.b16 %v1654, %v1653
    %v1689 = vpack.c.b16 %v1656, %v1655
    %v1690 = vpack.c.b16 %v1658, %v1657
    %1723 = vmatpush.bf16.xpose.msra.mxu0 %v1666
    %1724 = vmatpush.bf16.xpose.msra.mxu0 %v1665
    %1725 = vmatpush.bf16.xpose.msra.mxu0 %v1664
    %1726 = vmatpush.bf16.xpose.msra.mxu0 %v1663
    %1727 = vmatpush.bf16.xpose.msra.mxu0 %v1662
    %1728 = vmatpush.bf16.xpose.msra.mxu0 %v1661
    %1729 = vmatpush.bf16.xpose.msra.mxu0 %v1660
    %1730 = vmatpush.bf16.xpose.msra.mxu0 %v1659
    %1731 = vmatmul.bf16.gmra.mxu0 %v1456
    %v1732 = vpop.f32.mrf.mxu0
    %v1733 = vadd.f32 %v1523, %v1732
    %v1734 = vpop.f32.mrf.mxu0
    %v1735 = vadd.f32 %v1523, %v1734
    %1736 = vdwg.mxu0
    %1737 = vmatpush.bf16.xpose.msra.mxu0 %v1674
    %1738 = vmatpush.bf16.xpose.msra.mxu0 %v1673
    %1739 = vmatpush.bf16.xpose.msra.mxu0 %v1672
    %1740 = vmatpush.bf16.xpose.msra.mxu0 %v1671
    %1741 = vmatpush.bf16.xpose.msra.mxu0 %v1670
    %1742 = vmatpush.bf16.xpose.msra.mxu0 %v1669
    %1743 = vmatpush.bf16.xpose.msra.mxu0 %v1668
    %1744 = vmatpush.bf16.xpose.msra.mxu0 %v1667
    %1745 = vmatmul.bf16.gmra.mxu0 %v1456
    %v1746 = vpop.f32.mrf.mxu0
    %v1747 = vadd.f32 %v1524, %v1746
    %v1748 = vpop.f32.mrf.mxu0
    %v1749 = vadd.f32 %v1524, %v1748
    %1750 = vdwg.mxu0
    %1751 = vmatpush.bf16.xpose.msra.mxu0 %v1682
    %1752 = vmatpush.bf16.xpose.msra.mxu0 %v1681
    %1753 = vmatpush.bf16.xpose.msra.mxu0 %v1680
    %1754 = vmatpush.bf16.xpose.msra.mxu0 %v1679
    %1755 = vmatpush.bf16.xpose.msra.mxu0 %v1678
    %1756 = vmatpush.bf16.xpose.msra.mxu0 %v1677
    %1757 = vmatpush.bf16.xpose.msra.mxu0 %v1676
    %1758 = vmatpush.bf16.xpose.msra.mxu0 %v1675
    %1759 = vmatmul.bf16.gmra.mxu0 %v1456
    %v1760 = vpop.f32.mrf.mxu0
    %v1761 = vadd.f32 %v1525, %v1760
    %v1762 = vpop.f32.mrf.mxu0
    %v1763 = vadd.f32 %v1525, %v1762
    %1764 = vdwg.mxu0
    %1765 = vmatpush.bf16.xpose.msra.mxu0 %v1690
    %1766 = vmatpush.bf16.xpose.msra.mxu0 %v1689
    %1767 = vmatpush.bf16.xpose.msra.mxu0 %v1688
    %1768 = vmatpush.bf16.xpose.msra.mxu0 %v1687
    %1769 = vmatpush.bf16.xpose.msra.mxu0 %v1686
    %1770 = vmatpush.bf16.xpose.msra.mxu0 %v1685
    %1771 = vmatpush.bf16.xpose.msra.mxu0 %v1684
    %1772 = vmatpush.bf16.xpose.msra.mxu0 %v1683
    %1773 = vmatmul.bf16.gmra.mxu0 %v1456
    %v1774 = vpop.f32.mrf.mxu0
    %v1775 = vadd.f32 %v1526, %v1774
    %v1776 = vpop.f32.mrf.mxu0
    %v1777 = vadd.f32 %v1526, %v1776
    %1778 = vdwg.mxu0
    %v1779 = vmul.f32 %v1733, 1.702
    %v1780 = vmul.f32 %v1747, 1.702
    %v1781 = vmul.f32 %v1761, 1.702
    %v1782 = vmul.f32 %v1775, 1.702
    %v1783 = vmul.f32 %v1735, 1.702
    %v1784 = vmul.f32 %v1749, 1.702
    %v1785 = vmul.f32 %v1763, 1.702
    %v1786 = vmul.f32 %v1777, 1.702
    %v1787 = vxor.u32 %v1779, 2147483648
    %v1788 = vxor.u32 %v1780, 2147483648
    %v1789 = vxor.u32 %v1781, 2147483648
    %v1790 = vxor.u32 %v1782, 2147483648
    %v1791 = vxor.u32 %v1783, 2147483648
    %v1792 = vxor.u32 %v1784, 2147483648
    %v1793 = vxor.u32 %v1785, 2147483648
    %v1794 = vxor.u32 %v1786, 2147483648
    %v1795 = vmul.f32 %v1787, 1.442695
    %v1796 = vpow.pop %v1795
    %v1797 = vmul.f32 %v1788, 1.442695
    %v1798 = vpow.pop %v1797
    %v1799 = vmul.f32 %v1789, 1.442695
    %v1800 = vpow.pop %v1799
    %v1801 = vmul.f32 %v1790, 1.442695
    %v1802 = vpow.pop %v1801
    %v1803 = vmul.f32 %v1791, 1.442695
    %v1804 = vpow.pop %v1803
    %v1805 = vmul.f32 %v1792, 1.442695
    %v1806 = vpow.pop %v1805
    %v1807 = vmul.f32 %v1793, 1.442695
    %v1808 = vpow.pop %v1807
    %v1809 = vmul.f32 %v1794, 1.442695
    %v1810 = vpow.pop %v1809
    %v1811 = vadd.f32 %v1796, 1.0
    %v1812 = vadd.f32 %v1798, 1.0
    %v1813 = vadd.f32 %v1800, 1.0
    %v1814 = vadd.f32 %v1802, 1.0
    %v1815 = vadd.f32 %v1804, 1.0
    %v1816 = vadd.f32 %v1806, 1.0
    %v1817 = vadd.f32 %v1808, 1.0
    %v1818 = vadd.f32 %v1810, 1.0
    %v1819 = vrcp.pop %v1811
    %v1820 = vmul.f32 %v1811, %v1819
    %v1821 = vsub.f32 1.0, %v1820
    %v1822 = vmul.f32 %v1819, %v1821
    %v1823 = vadd.f32 %v1819, %v1822
    %vm1824 = vweird.f32 %v1811
    %vm1825 = vweird.f32 %v1819
    %vm1826 = vmor %vm1824, %vm1825
    %v1827 = vsel %vm1826, %v1819, %v1823
    %v1828 = vand.u32 2147483647, %v1811
    %vm1829 = vcmp.eq.f32.partialorder %v1828, 8.507059e+37
    %v1830 = vand.u32 %v1811, 2147483648
    %v1831 = vor.u32 1.1754944e-38, %v1830
    %v1832 = vsel %vm1829, %v1831, %v1827
    %v1833 = vmul.f32 1.0, %v1832
    %v1834 = vrcp.pop %v1812
    %v1835 = vmul.f32 %v1812, %v1834
    %v1836 = vsub.f32 1.0, %v1835
    %v1837 = vmul.f32 %v1834, %v1836
    %v1838 = vadd.f32 %v1834, %v1837
    %vm1839 = vweird.f32 %v1812
    %vm1840 = vweird.f32 %v1834
    %vm1841 = vmor %vm1839, %vm1840
    %v1842 = vsel %vm1841, %v1834, %v1838
    %v1843 = vand.u32 2147483647, %v1812
    %vm1844 = vcmp.eq.f32.partialorder %v1843, 8.507059e+37
    %v1845 = vand.u32 %v1812, 2147483648
    %v1846 = vor.u32 1.1754944e-38, %v1845
    %v1847 = vsel %vm1844, %v1846, %v1842
    %v1848 = vmul.f32 1.0, %v1847
    %v1849 = vrcp.pop %v1813
    %v1850 = vmul.f32 %v1813, %v1849
    %v1851 = vsub.f32 1.0, %v1850
    %v1852 = vmul.f32 %v1849, %v1851
    %v1853 = vadd.f32 %v1849, %v1852
    %vm1854 = vweird.f32 %v1813
    %vm1855 = vweird.f32 %v1849
    %vm1856 = vmor %vm1854, %vm1855
    %v1857 = vsel %vm1856, %v1849, %v1853
    %v1858 = vand.u32 2147483647, %v1813
    %vm1859 = vcmp.eq.f32.partialorder %v1858, 8.507059e+37
    %v1860 = vand.u32 %v1813, 2147483648
    %v1861 = vor.u32 1.1754944e-38, %v1860
    %v1862 = vsel %vm1859, %v1861, %v1857
    %v1863 = vmul.f32 1.0, %v1862
    %v1864 = vrcp.pop %v1814
    %v1865 = vmul.f32 %v1814, %v1864
    %v1866 = vsub.f32 1.0, %v1865
    %v1867 = vmul.f32 %v1864, %v1866
    %v1868 = vadd.f32 %v1864, %v1867
    %vm1869 = vweird.f32 %v1814
    %vm1870 = vweird.f32 %v1864
    %vm1871 = vmor %vm1869, %vm1870
    %v1872 = vsel %vm1871, %v1864, %v1868
    %v1873 = vand.u32 2147483647, %v1814
    %vm1874 = vcmp.eq.f32.partialorder %v1873, 8.507059e+37
    %v1875 = vand.u32 %v1814, 2147483648
    %v1876 = vor.u32 1.1754944e-38, %v1875
    %v1877 = vsel %vm1874, %v1876, %v1872
    %v1878 = vmul.f32 1.0, %v1877
    %v1879 = vrcp.pop %v1815
    %v1880 = vmul.f32 %v1815, %v1879
    %v1881 = vsub.f32 1.0, %v1880
    %v1882 = vmul.f32 %v1879, %v1881
    %v1883 = vadd.f32 %v1879, %v1882
    %vm1884 = vweird.f32 %v1815
    %vm1885 = vweird.f32 %v1879
    %vm1886 = vmor %vm1884, %vm1885
    %v1887 = vsel %vm1886, %v1879, %v1883
    %v1888 = vand.u32 2147483647, %v1815
    %vm1889 = vcmp.eq.f32.partialorder %v1888, 8.507059e+37
    %v1890 = vand.u32 %v1815, 2147483648
    %v1891 = vor.u32 1.1754944e-38, %v1890
    %v1892 = vsel %vm1889, %v1891, %v1887
    %v1893 = vmul.f32 1.0, %v1892
    %v1894 = vrcp.pop %v1816
    %v1895 = vmul.f32 %v1816, %v1894
    %v1896 = vsub.f32 1.0, %v1895
    %v1897 = vmul.f32 %v1894, %v1896
    %v1898 = vadd.f32 %v1894, %v1897
    %vm1899 = vweird.f32 %v1816
    %vm1900 = vweird.f32 %v1894
    %vm1901 = vmor %vm1899, %vm1900
    %v1902 = vsel %vm1901, %v1894, %v1898
    %v1903 = vand.u32 2147483647, %v1816
    %vm1904 = vcmp.eq.f32.partialorder %v1903, 8.507059e+37
    %v1905 = vand.u32 %v1816, 2147483648
    %v1906 = vor.u32 1.1754944e-38, %v1905
    %v1907 = vsel %vm1904, %v1906, %v1902
    %v1908 = vmul.f32 1.0, %v1907
    %v1909 = vrcp.pop %v1817
    %v1910 = vmul.f32 %v1817, %v1909
    %v1911 = vsub.f32 1.0, %v1910
    %v1912 = vmul.f32 %v1909, %v1911
    %v1913 = vadd.f32 %v1909, %v1912
    %vm1914 = vweird.f32 %v1817
    %vm1915 = vweird.f32 %v1909
    %vm1916 = vmor %vm1914, %vm1915
    %v1917 = vsel %vm1916, %v1909, %v1913
    %v1918 = vand.u32 2147483647, %v1817
    %vm1919 = vcmp.eq.f32.partialorder %v1918, 8.507059e+37
    %v1920 = vand.u32 %v1817, 2147483648
    %v1921 = vor.u32 1.1754944e-38, %v1920
    %v1922 = vsel %vm1919, %v1921, %v1917
    %v1923 = vmul.f32 1.0, %v1922
    %v1924 = vrcp.pop %v1818
    %v1925 = vmul.f32 %v1818, %v1924
    %v1926 = vsub.f32 1.0, %v1925
    %v1927 = vmul.f32 %v1924, %v1926
    %v1928 = vadd.f32 %v1924, %v1927
    %vm1929 = vweird.f32 %v1818
    %vm1930 = vweird.f32 %v1924
    %vm1931 = vmor %vm1929, %vm1930
    %v1932 = vsel %vm1931, %v1924, %v1928
    %v1933 = vand.u32 2147483647, %v1818
    %vm1934 = vcmp.eq.f32.partialorder %v1933, 8.507059e+37
    %v1935 = vand.u32 %v1818, 2147483648
    %v1936 = vor.u32 1.1754944e-38, %v1935
    %v1937 = vsel %vm1934, %v1936, %v1932
    %v1938 = vmul.f32 1.0, %v1937
    %v1939 = vmul.f32 %v1733, %v1833
    %v1940 = vmul.f32 %v1747, %v1848
    %v1941 = vmul.f32 %v1761, %v1863
    %v1942 = vmul.f32 %v1775, %v1878
    %v1943 = vmul.f32 %v1735, %v1893
    %v1944 = vmul.f32 %v1749, %v1908
    %v1945 = vmul.f32 %v1763, %v1923
    %v1946 = vmul.f32 %v1777, %v1938
    %v1947 = vpack.c.bf16 %v1943, %v1939
    %v1948 = vpack.c.bf16 %v1944, %v1940
    %v1949 = vpack.c.bf16 %v1945, %v1941
    %v1950 = vpack.c.bf16 %v1946, %v1942
    %v1951 = vld [vmem:[#allocation5] sm:$0xff]
    %v1952 = vld [vmem:[#allocation5 + $0x8] sm:$0xff]
    %v1953 = vld [vmem:[#allocation5 + $0x10] sm:$0xff]
    %v1954 = vld [vmem:[#allocation5 + $0x18] sm:$0xff]
    %v1955 = vld [vmem:[#allocation5 + $0x20] sm:$0xff]
    %v1956 = vld [vmem:[#allocation5 + $0x28] sm:$0xff]
    %v1957 = vld [vmem:[#allocation5 + $0x30] sm:$0xff]
    %v1958 = vld [vmem:[#allocation5 + $0x38] sm:$0xff]
    %v1959 = vld [vmem:[#allocation5 + $0x40] sm:$0xff]
    %v1960 = vld [vmem:[#allocation5 + $0x48] sm:$0xff]
    %v1961 = vld [vmem:[#allocation5 + $0x50] sm:$0xff]
    %v1962 = vld [vmem:[#allocation5 + $0x58] sm:$0xff]
    %v1963 = vld [vmem:[#allocation5 + $0x60] sm:$0xff]
    %v1964 = vld [vmem:[#allocation5 + $0x68] sm:$0xff]
    %v1965 = vld [vmem:[#allocation5 + $0x70] sm:$0xff]
    %v1966 = vld [vmem:[#allocation5 + $0x78] sm:$0xff]
    %v1967 = vld [vmem:[#allocation5 + $0x80] sm:$0xff]
    %v1968 = vld [vmem:[#allocation5 + $0x88] sm:$0xff]
    %v1969 = vld [vmem:[#allocation5 + $0x90] sm:$0xff]
    %v1970 = vld [vmem:[#allocation5 + $0x98] sm:$0xff]
    %v1971 = vld [vmem:[#allocation5 + $0xa0] sm:$0xff]
    %v1972 = vld [vmem:[#allocation5 + $0xa8] sm:$0xff]
    %v1973 = vld [vmem:[#allocation5 + $0xb0] sm:$0xff]
    %v1974 = vld [vmem:[#allocation5 + $0xb8] sm:$0xff]
    %v1975 = vld [vmem:[#allocation5 + $0xc0] sm:$0xff]
    %v1976 = vld [vmem:[#allocation5 + $0xc8] sm:$0xff]
    %v1977 = vld [vmem:[#allocation5 + $0xd0] sm:$0xff]
    %v1978 = vld [vmem:[#allocation5 + $0xd8] sm:$0xff]
    %v1979 = vld [vmem:[#allocation5 + $0xe0] sm:$0xff]
    %v1980 = vld [vmem:[#allocation5 + $0xe8] sm:$0xff]
    %v1981 = vld [vmem:[#allocation5 + $0xf0] sm:$0xff]
    %v1982 = vld [vmem:[#allocation5 + $0xf8] sm:$0xff]
    %v1983 = vld [vmem:[%s12] sm:$0x1]
    %v1985 = vperm.slane %v1983, 0
    %v2019 = vunpack.c.l.b16 %v1951
    %v2020 = vunpack.c.h.b16 %v1951
    %v2021 = vunpack.c.l.b16 %v1952
    %v2022 = vunpack.c.h.b16 %v1952
    %v2023 = vunpack.c.l.b16 %v1953
    %v2024 = vunpack.c.h.b16 %v1953
    %v2025 = vunpack.c.l.b16 %v1954
    %v2026 = vunpack.c.h.b16 %v1954
    %v2027 = vunpack.c.l.b16 %v1955
    %v2028 = vunpack.c.h.b16 %v1955
    %v2029 = vunpack.c.l.b16 %v1956
    %v2030 = vunpack.c.h.b16 %v1956
    %v2031 = vunpack.c.l.b16 %v1957
    %v2032 = vunpack.c.h.b16 %v1957
    %v2033 = vunpack.c.l.b16 %v1958
    %v2034 = vunpack.c.h.b16 %v1958
    %v2035 = vunpack.c.l.b16 %v1959
    %v2036 = vunpack.c.h.b16 %v1959
    %v2037 = vunpack.c.l.b16 %v1960
    %v2038 = vunpack.c.h.b16 %v1960
    %v2039 = vunpack.c.l.b16 %v1961
    %v2040 = vunpack.c.h.b16 %v1961
    %v2041 = vunpack.c.l.b16 %v1962
    %v2042 = vunpack.c.h.b16 %v1962
    %v2043 = vunpack.c.l.b16 %v1963
    %v2044 = vunpack.c.h.b16 %v1963
    %v2045 = vunpack.c.l.b16 %v1964
    %v2046 = vunpack.c.h.b16 %v1964
    %v2047 = vunpack.c.l.b16 %v1965
    %v2048 = vunpack.c.h.b16 %v1965
    %v2049 = vunpack.c.l.b16 %v1966
    %v2050 = vunpack.c.h.b16 %v1966
    %v2051 = vunpack.c.l.b16 %v1967
    %v2052 = vunpack.c.h.b16 %v1967
    %v2053 = vunpack.c.l.b16 %v1968
    %v2054 = vunpack.c.h.b16 %v1968
    %v2055 = vunpack.c.l.b16 %v1969
    %v2056 = vunpack.c.h.b16 %v1969
    %v2057 = vunpack.c.l.b16 %v1970
    %v2058 = vunpack.c.h.b16 %v1970
    %v2059 = vunpack.c.l.b16 %v1971
    %v2060 = vunpack.c.h.b16 %v1971
    %v2061 = vunpack.c.l.b16 %v1972
    %v2062 = vunpack.c.h.b16 %v1972
    %v2063 = vunpack.c.l.b16 %v1973
    %v2064 = vunpack.c.h.b16 %v1973
    %v2065 = vunpack.c.l.b16 %v1974
    %v2066 = vunpack.c.h.b16 %v1974
    %v2067 = vunpack.c.l.b16 %v1975
    %v2068 = vunpack.c.h.b16 %v1975
    %v2069 = vunpack.c.l.b16 %v1976
    %v2070 = vunpack.c.h.b16 %v1976
    %v2071 = vunpack.c.l.b16 %v1977
    %v2072 = vunpack.c.h.b16 %v1977
    %v2073 = vunpack.c.l.b16 %v1978
    %v2074 = vunpack.c.h.b16 %v1978
    %v2075 = vunpack.c.l.b16 %v1979
    %v2076 = vunpack.c.h.b16 %v1979
    %v2077 = vunpack.c.l.b16 %v1980
    %v2078 = vunpack.c.h.b16 %v1980
    %v2079 = vunpack.c.l.b16 %v1981
    %v2080 = vunpack.c.h.b16 %v1981
    %v2081 = vunpack.c.l.b16 %v1982
    %v2082 = vunpack.c.h.b16 %v1982
    %v2083 = vpack.c.b16 %v2023, %v2019
    %v2084 = vpack.c.b16 %v2024, %v2020
    %v2085 = vpack.c.b16 %v2025, %v2021
    %v2086 = vpack.c.b16 %v2026, %v2022
    %v2087 = vpack.c.b16 %v2031, %v2027
    %v2088 = vpack.c.b16 %v2032, %v2028
    %v2089 = vpack.c.b16 %v2033, %v2029
    %v2090 = vpack.c.b16 %v2034, %v2030
    %v2091 = vpack.c.b16 %v2039, %v2035
    %v2092 = vpack.c.b16 %v2040, %v2036
    %v2093 = vpack.c.b16 %v2041, %v2037
    %v2094 = vpack.c.b16 %v2042, %v2038
    %v2095 = vpack.c.b16 %v2047, %v2043
    %v2096 = vpack.c.b16 %v2048, %v2044
    %v2097 = vpack.c.b16 %v2049, %v2045
    %v2098 = vpack.c.b16 %v2050, %v2046
    %v2099 = vpack.c.b16 %v2055, %v2051
    %v2100 = vpack.c.b16 %v2056, %v2052
    %v2101 = vpack.c.b16 %v2057, %v2053
    %v2102 = vpack.c.b16 %v2058, %v2054
    %v2103 = vpack.c.b16 %v2063, %v2059
    %v2104 = vpack.c.b16 %v2064, %v2060
    %v2105 = vpack.c.b16 %v2065, %v2061
    %v2106 = vpack.c.b16 %v2066, %v2062
    %v2107 = vpack.c.b16 %v2071, %v2067
    %v2108 = vpack.c.b16 %v2072, %v2068
    %v2109 = vpack.c.b16 %v2073, %v2069
    %v2110 = vpack.c.b16 %v2074, %v2070
    %v2111 = vpack.c.b16 %v2079, %v2075
    %v2112 = vpack.c.b16 %v2080, %v2076
    %v2113 = vpack.c.b16 %v2081, %v2077
    %v2114 = vpack.c.b16 %v2082, %v2078
    %2147 = vmatpush.bf16.xpose.msra.mxu0 %v2111
    %2148 = vmatpush.bf16.xpose.msra.mxu0 %v2107
    %2149 = vmatpush.bf16.xpose.msra.mxu0 %v2103
    %2150 = vmatpush.bf16.xpose.msra.mxu0 %v2099
    %2151 = vmatpush.bf16.xpose.msra.mxu0 %v2095
    %2152 = vmatpush.bf16.xpose.msra.mxu0 %v2091
    %2153 = vmatpush.bf16.xpose.msra.mxu0 %v2087
    %2154 = vmatpush.bf16.xpose.msra.mxu0 %v2083
    %2155 = vmatmul.bf16.gmra.mxu0 %v1947
    %v2156 = vpop.f32.mrf.mxu0
    %v2157 = vadd.f32 %v1985, %v2156
    %v2158 = vpop.f32.mrf.mxu0
    %v2159 = vadd.f32 %v1985, %v2158
    %2160 = vdwg.mxu0
    %2161 = vmatpush.bf16.xpose.msra.mxu0 %v2112
    %2162 = vmatpush.bf16.xpose.msra.mxu0 %v2108
    %2163 = vmatpush.bf16.xpose.msra.mxu0 %v2104
    %2164 = vmatpush.bf16.xpose.msra.mxu0 %v2100
    %2165 = vmatpush.bf16.xpose.msra.mxu0 %v2096
    %2166 = vmatpush.bf16.xpose.msra.mxu0 %v2092
    %2167 = vmatpush.bf16.xpose.msra.mxu0 %v2088
    %2168 = vmatpush.bf16.xpose.msra.mxu0 %v2084
    %2169 = vmatmul.bf16.gmra.mxu0 %v1948
    %v2170 = vpop.f32.mrf.mxu0
    %v2171 = vadd.f32 %v2157, %v2170
    %v2172 = vpop.f32.mrf.mxu0
    %v2173 = vadd.f32 %v2159, %v2172
    %2174 = vdwg.mxu0
    %2175 = vmatpush.bf16.xpose.msra.mxu0 %v2113
    %2176 = vmatpush.bf16.xpose.msra.mxu0 %v2109
    %2177 = vmatpush.bf16.xpose.msra.mxu0 %v2105
    %2178 = vmatpush.bf16.xpose.msra.mxu0 %v2101
    %2179 = vmatpush.bf16.xpose.msra.mxu0 %v2097
    %2180 = vmatpush.bf16.xpose.msra.mxu0 %v2093
    %2181 = vmatpush.bf16.xpose.msra.mxu0 %v2089
    %2182 = vmatpush.bf16.xpose.msra.mxu0 %v2085
    %2183 = vmatmul.bf16.gmra.mxu0 %v1949
    %v2184 = vpop.f32.mrf.mxu0
    %v2185 = vadd.f32 %v2171, %v2184
    %v2186 = vpop.f32.mrf.mxu0
    %v2187 = vadd.f32 %v2173, %v2186
    %2188 = vdwg.mxu0
    %2189 = vmatpush.bf16.xpose.msra.mxu0 %v2114
    %2190 = vmatpush.bf16.xpose.msra.mxu0 %v2110
    %2191 = vmatpush.bf16.xpose.msra.mxu0 %v2106
    %2192 = vmatpush.bf16.xpose.msra.mxu0 %v2102
    %2193 = vmatpush.bf16.xpose.msra.mxu0 %v2098
    %2194 = vmatpush.bf16.xpose.msra.mxu0 %v2094
    %2195 = vmatpush.bf16.xpose.msra.mxu0 %v2090
    %2196 = vmatpush.bf16.xpose.msra.mxu0 %v2086
    %2197 = vmatmul.bf16.gmra.mxu0 %v1950
    %v2198 = vpop.f32.mrf.mxu0
    %v2199 = vadd.f32 %v2185, %v2198
    %v2200 = vpop.f32.mrf.mxu0
    %v2201 = vadd.f32 %v2187, %v2200
    %2202 = vdwg.mxu0
    %v2203 = vadd.f32 %v1402, %v2199
    %v2204 = vadd.f32 %v1403, %v2201
    %2205 = vst [vmem:[#allocation7] sm:$0xff] %v2203
    %2206 = vst [vmem:[#allocation7 + $0x8] sm:$0xff] %v2204
    // Predicated region
    $region62: #{tpu_custom_call.1} parent=1 // pred_check
      _
    $region63: #{tpu_custom_call.1} parent=1 // pred_check_branch
      %2208 = sbr.rel (0) target = $region65
    $region64: #{tpu_custom_call.1} parent=1 // pred_region
      %2210 = vsyncadd [#allocation4], 0
      %s2211 = sshll.u32 [#allocation7], 4
      %s2212 = int_to_ptr.vmem [resolvable:$true] %s2211
      %s2213 = sshll.u32 %s13, 4
      %s2214 = int_to_ptr.hbm [resolvable:$true] %s2213
      %2219 = dma.vmem_to_hbm [thread:$0]  %s2212, 256, %s2214, [#allocation4], 128, 128, 8
    $region65: #{tpu_custom_call.1} parent=1 // pred_fallthru
      _
    // Predicated region
    $region66: #{tpu_custom_call.1} parent=1 // pred_check
      _
    $region67: #{tpu_custom_call.1} parent=1 // pred_check_branch
      %2221 = sbr.rel (0) target = $region69
    $region68: #{tpu_custom_call.1} parent=1 // pred_region
      %2223 = dma.done [#allocation4], 256
    $region69: #{tpu_custom_call.1} parent=1 // pred_fallthru
      _
    %2224 = vsyncpa [#allocation3], 1
    %2225 = vsyncpa [#allocation6], 1
    %2226 = vsyncpa [#allocation4], 1

// kernel: tpu_custom_call.1
$region0: #{tpu_custom_call.1}
  #allocation0 [shape = 'u32[]', space=smem, size = 0x4, offset = 0x4, fixed_abs, tag = 'smem constant byte address 0x4 - core index']
  #allocation1 [shape = 'u32[72,128]{1,0:T(1,128)}', space=vmem, size = 0x9000, scoped, tag = 'internal scratch']
  %s0 = inlined_call_operand.vmem [shape: f32[2,8,128], index: 0, kind: input, shape index: {}]
  %s1 = inlined_call_operand.vmem [shape: f32[1,128], index: 1, kind: input, shape index: {}]
  %s2 = inlined_call_operand.vmem [shape: f32[1,128], index: 2, kind: input, shape index: {}]
  %s3 = inlined_call_operand.hbm [shape: bf16[384,128], index: 3, kind: input, shape index: {}]
  %s4 = inlined_call_operand.vmem [shape: f32[1,384], index: 4, kind: input, shape index: {}]
  %s5 = inlined_call_operand.vmem [shape: bf16[4,128,32], index: 5, kind: input, shape index: {}]
  %s6 = inlined_call_operand.vmem [shape: f32[1,128], index: 6, kind: input, shape index: {}]
  %s7 = inlined_call_operand.vmem [shape: f32[1,128], index: 7, kind: input, shape index: {}]
  %s8 = inlined_call_operand.vmem [shape: f32[1,128], index: 8, kind: input, shape index: {}]
  %s9 = inlined_call_operand.vmem [shape: bf16[512,128], index: 9, kind: input, shape index: {}]
  %s10 = inlined_call_operand.vmem [shape: f32[1,512], index: 10, kind: input, shape index: {}]
  %s11 = inlined_call_operand.hbm [shape: bf16[128,512], index: 11, kind: input, shape index: {}]
  %s12 = inlined_call_operand.vmem [shape: f32[1,128], index: 12, kind: input, shape index: {}]
  %s13 = inlined_call_operand.hbm [shape: f32[2,8,128], index: 13, kind: output, shape index: {}]
  %s14 = sld [smem:[#allocation0]]
  $region70: #{tpu_custom_call.1} parent=0
    _
  %s16 = ssub.s32 1, %s14
  %s17 = scalar_select 0, %s16, %s14
  $region1: #{tpu_custom_call.1} parent=0
    #allocation2 [shape = 'u8[98304]{0}', space=vmem, size = 0x18000, scoped, tag = 'input window, operand 3, single buffered']
    #allocation3 [shape = 's32[1]{0}', space=sflag, size = 0x4, scoped, tag = 'scoped memory for tpu_custom_call.1']
    #allocation4 [shape = 's32[1]{0}', space=sflag, size = 0x4, scoped, tag = 'scoped memory for tpu_custom_call.1']
    #allocation5 [shape = 'u8[131072]{0}', space=vmem, size = 0x20000, scoped, tag = 'input window, operand 11, single buffered']
    #allocation6 [shape = 's32[1]{0}', space=sflag, size = 0x4, scoped, tag = 'scoped memory for tpu_custom_call.1']
    #allocation7 [shape = 'u8[8192]{0}', space=vmem, size = 0x2000, scoped, tag = 'output window, operand 0, single buffered']
    %18 = vsyncpa [#allocation3], 0
    %19 = vsyncpa [#allocation6], 0
    %20 = vsyncpa [#allocation4], 0
    // Predicated region
    $region2: #{tpu_custom_call.1} parent=1 // pred_check
      _
    $region3: #{tpu_custom_call.1} parent=1 // pred_check_branch
      %22 = sbr.rel (0) target = $region5
    $region4: #{tpu_custom_call.1} parent=1 // pred_region
      _
    $region5: #{tpu_custom_call.1} parent=1 // pred_fallthru
      _
    // Predicated region
    $region6: #{tpu_custom_call.1} parent=1 // pred_check
      _
    $region7: #{tpu_custom_call.1} parent=1 // pred_check_branch
      %24 = sbr.rel (0) target = $region9
    $region8: #{tpu_custom_call.1} parent=1 // pred_region
      _
    $region9: #{tpu_custom_call.1} parent=1 // pred_fallthru
      _
    // Predicated region
    $region10: #{tpu_custom_call.1} parent=1 // pred_check
      _
    $region11: #{tpu_custom_call.1} parent=1 // pred_check_branch
      %26 = sbr.rel (0) target = $region13
    $region12: #{tpu_custom_call.1} parent=1 // pred_region
      _
    $region13: #{tpu_custom_call.1} parent=1 // pred_fallthru
      _
    // Predicated region
    $region14: #{tpu_custom_call.1} parent=1 // pred_check
      _
    $region15: #{tpu_custom_call.1} parent=1 // pred_check_branch
      %28 = sbr.rel (0) target = $region17
    $region16: #{tpu_custom_call.1} parent=1 // pred_region
      %30 = vsyncadd [#allocation3], 0
      %s31 = sshll.u32 %s3, 4
      %s32 = int_to_ptr.hbm [resolvable:$true] %s31
      %s33 = sshll.u32 [#allocation2], 4
      %s34 = int_to_ptr.vmem [resolvable:$true] %s33
      %39 = dma.hbm_to_vmem [thread:$0]  %s32, 3072, %s34, [#allocation3], 64, 64, 4
    $region17: #{tpu_custom_call.1} parent=1 // pred_fallthru
      _
    // Predicated region
    $region18: #{tpu_custom_call.1} parent=1 // pred_check
      _
    $region19: #{tpu_custom_call.1} parent=1 // pred_check_branch
      %41 = sbr.rel (0) target = $region21
    $region20: #{tpu_custom_call.1} parent=1 // pred_region
      _
    $region21: #{tpu_custom_call.1} parent=1 // pred_fallthru
      _
    // Predicated region
    $region22: #{tpu_custom_call.1} parent=1 // pred_check
      _
    $region23: #{tpu_custom_call.1} parent=1 // pred_check_branch
      %43 = sbr.rel (0) target = $region25
    $region24: #{tpu_custom_call.1} parent=1 // pred_region
      _
    $region25: #{tpu_custom_call.1} parent=1 // pred_fallthru
      _
    // Predicated region
    $region26: #{tpu_custom_call.1} parent=1 // pred_check
      _
    $region27: #{tpu_custom_call.1} parent=1 // pred_check_branch
      %45 = sbr.rel (0) target = $region29
    $region28: #{tpu_custom_call.1} parent=1 // pred_region
      _
    $region29: #{tpu_custom_call.1} parent=1 // pred_fallthru
      _
    // Predicated region
    $region30: #{tpu_custom_call.1} parent=1 // pred_check
      _
    $region31: #{tpu_custom_call.1} parent=1 // pred_check_branch
      %47 = sbr.rel (0) target = $region33
    $region32: #{tpu_custom_call.1} parent=1 // pred_region
      _
    $region33: #{tpu_custom_call.1} parent=1 // pred_fallthru
      _
    // Predicated region
    $region34: #{tpu_custom_call.1} parent=1 // pred_check
      _
    $region35: #{tpu_custom_call.1} parent=1 // pred_check_branch
      %49 = sbr.rel (0) target = $region37
    $region36: #{tpu_custom_call.1} parent=1 // pred_region
      _
    $region37: #{tpu_custom_call.1} parent=1 // pred_fallthru
      _
    // Predicated region
    $region38: #{tpu_custom_call.1} parent=1 // pred_check
      _
    $region39: #{tpu_custom_call.1} parent=1 // pred_check_branch
      %51 = sbr.rel (0) target = $region41
    $region40: #{tpu_custom_call.1} parent=1 // pred_region
      _
    $region41: #{tpu_custom_call.1} parent=1 // pred_fallthru
      _
    // Predicated region
    $region42: #{tpu_custom_call.1} parent=1 // pred_check
      _
    $region43: #{tpu_custom_call.1} parent=1 // pred_check_branch
      %53 = sbr.rel (0) target = $region45
    $region44: #{tpu_custom_call.1} parent=1 // pred_region
      _
    $region45: #{tpu_custom_call.1} parent=1 // pred_fallthru
      _
    // Predicated region
    $region46: #{tpu_custom_call.1} parent=1 // pred_check
      _
    $region47: #{tpu_custom_call.1} parent=1 // pred_check_branch
      %55 = sbr.rel (0) target = $region49
    $region48: #{tpu_custom_call.1} parent=1 // pred_region
      %57 = vsyncadd [#allocation6], 0
      %s58 = sshll.u32 %s11, 4
      %s59 = int_to_ptr.hbm [resolvable:$true] %s58
      %s60 = sshll.u32 [#allocation5], 4
      %s61 = int_to_ptr.vmem [resolvable:$true] %s60
      %66 = dma.hbm_to_vmem [thread:$0]  %s59, 4096, %s61, [#allocation6], 256, 256, 16
    $region49: #{tpu_custom_call.1} parent=1 // pred_fallthru
      _
    // Predicated region
    $region50: #{tpu_custom_call.1} parent=1 // pred_check
      _
    $region51: #{tpu_custom_call.1} parent=1 // pred_check_branch
      %68 = sbr.rel (0) target = $region53
    $region52: #{tpu_custom_call.1} parent=1 // pred_region
      _
    $region53: #{tpu_custom_call.1} parent=1 // pred_fallthru
      _
    // Predicated region
    $region54: #{tpu_custom_call.1} parent=1 // pred_check
      _
    $region55: #{tpu_custom_call.1} parent=1 // pred_check_branch
      %70 = sbr.rel (0) target = $region57
    $region56: #{tpu_custom_call.1} parent=1 // pred_region
      %72 = dma.done [#allocation3], 3072
    $region57: #{tpu_custom_call.1} parent=1 // pred_fallthru
      _
    // Predicated region
    $region58: #{tpu_custom_call.1} parent=1 // pred_check
      _
    $region59: #{tpu_custom_call.1} parent=1 // pred_check_branch
      %74 = sbr.rel (0) target = $region61
    $region60: #{tpu_custom_call.1} parent=1 // pred_region
      %76 = dma.done [#allocation6], 4096
    $region61: #{tpu_custom_call.1} parent=1 // pred_fallthru
      _
    %v78 = vld [vmem:[%s0] sm:$0xff]
    %v79 = vld [vmem:[%s0 + $0x8] sm:$0xff]
    %80 = vadd.xlane.f32.xlu0 %v78
    %v81 = vpop.xlane.xlu0 %80
    %82 = vadd.xlane.f32.xlu0 %v79
    %v83 = vpop.xlane.xlu0 %82
    %v84 = vrcp.pop 128.0
    %v85 = vmul.f32 128.0, %v84
    %v86 = vsub.f32 1.0, %v85
    %v87 = vmul.f32 %v84, %v86
    %v88 = vadd.f32 %v84, %v87
    %vm89 = vweird.f32 %v84
    %v90 = vsel %vm89, %v84, %v88
    %v91 = vmul.f32 %v81, %v90
    %v92 = vmul.f32 %v83, %v90
    %v93 = vsub.f32 %v78, %v91
    %v94 = vsub.f32 %v79, %v92
    %v95 = vmul.f32 %v93, %v93
    %v96 = vmul.f32 %v94, %v94
    %97 = vadd.xlane.f32.xlu0 %v95
    %v98 = vpop.xlane.xlu0 %97
    %99 = vadd.xlane.f32.xlu0 %v96
    %v100 = vpop.xlane.xlu0 %99
    %v101 = vmul.f32 %v98, %v90
    %v102 = vmul.f32 %v100, %v90
    %v103 = vadd.f32 %v101, 1e-05
    %v104 = vadd.f32 %v102, 1e-05
    %v105 = vrsqrt.pop %v103
    %v106 = vmul.f32 %v105, %v103
    %v107 = vmul.f32 %v106, %v105
    %v108 = vmul.f32 0.5, %v107
    %v109 = vsub.f32 1.5, %v108
    %v110 = vmul.f32 %v105, %v109
    %vm111 = vweird.f32 %v103
    %vm112 = vweird.f32 %v105
    %vm113 = vmor %vm111, %vm112
    %v114 = vsel %vm113, %v105, %v110
    %v115 = vrsqrt.pop %v104
    %v116 = vmul.f32 %v115, %v104
    %v117 = vmul.f32 %v116, %v115
    %v118 = vmul.f32 0.5, %v117
    %v119 = vsub.f32 1.5, %v118
    %v120 = vmul.f32 %v115, %v119
    %vm121 = vweird.f32 %v104
    %vm122 = vweird.f32 %v115
    %vm123 = vmor %vm121, %vm122
    %v124 = vsel %vm123, %v115, %v120
    %v125 = vmul.f32 %v93, %v114
    %v126 = vmul.f32 %v94, %v124
    %v127 = vld [vmem:[%s1] sm:$0x1]
    %v129 = vperm.slane %v127, 0
    %v131 = vmul.f32 %v125, %v129
    %v132 = vmul.f32 %v126, %v129
    %v133 = vld [vmem:[%s2] sm:$0x1]
    %v135 = vperm.slane %v133, 0
    %v137 = vadd.f32 %v131, %v135
    %v138 = vadd.f32 %v132, %v135
    %v139 = vpack.c.bf16 %v138, %v137
    %v140 = vld [vmem:[#allocation2] sm:$0xf]
    %v141 = vld [vmem:[#allocation2 + $0x4] sm:$0xf]
    %v142 = vld [vmem:[#allocation2 + $0x8] sm:$0xf]
    %v143 = vld [vmem:[#allocation2 + $0xc] sm:$0xf]
    %v144 = vld [vmem:[#allocation2 + $0x10] sm:$0xf]
    %v145 = vld [vmem:[#allocation2 + $0x14] sm:$0xf]
    %v146 = vld [vmem:[#allocation2 + $0x18] sm:$0xf]
    %v147 = vld [vmem:[#allocation2 + $0x1c] sm:$0xf]
    %v148 = vld [vmem:[#allocation2 + $0x20] sm:$0xf]
    %v149 = vld [vmem:[#allocation2 + $0x24] sm:$0xf]
    %v150 = vld [vmem:[#allocation2 + $0x28] sm:$0xf]
    %v151 = vld [vmem:[#allocation2 + $0x2c] sm:$0xf]
    %v152 = vld [vmem:[#allocation2 + $0x30] sm:$0xf]
    %v153 = vld [vmem:[#allocation2 + $0x34] sm:$0xf]
    %v154 = vld [vmem:[#allocation2 + $0x38] sm:$0xf]
    %v155 = vld [vmem:[#allocation2 + $0x3c] sm:$0xf]
    %v156 = vld [vmem:[#allocation2 + $0x40] sm:$0xf]
    %v157 = vld [vmem:[#allocation2 + $0x44] sm:$0xf]
    %v158 = vld [vmem:[#allocation2 + $0x48] sm:$0xf]
    %v159 = vld [vmem:[#allocation2 + $0x4c] sm:$0xf]
    %v160 = vld [vmem:[#allocation2 + $0x50] sm:$0xf]
    %v161 = vld [vmem:[#allocation2 + $0x54] sm:$0xf]
    %v162 = vld [vmem:[#allocation2 + $0x58] sm:$0xf]
    %v163 = vld [vmem:[#allocation2 + $0x5c] sm:$0xf]
    %v164 = vld [vmem:[#allocation2 + $0x60] sm:$0xf]
    %v165 = vld [vmem:[#allocation2 + $0x64] sm:$0xf]
    %v166 = vld [vmem:[#allocation2 + $0x68] sm:$0xf]
    %v167 = vld [vmem:[#allocation2 + $0x6c] sm:$0xf]
    %v168 = vld [vmem:[#allocation2 + $0x70] sm:$0xf]
    %v169 = vld [vmem:[#allocation2 + $0x74] sm:$0xf]
    %v170 = vld [vmem:[#allocation2 + $0x78] sm:$0xf]
    %v171 = vld [vmem:[#allocation2 + $0x7c] sm:$0xf]
    %v172 = vld [vmem:[#allocation2 + $0x80] sm:$0xf]
    %v173 = vld [vmem:[#allocation2 + $0x84] sm:$0xf]
    %v174 = vld [vmem:[#allocation2 + $0x88] sm:$0xf]
    %v175 = vld [vmem:[#allocation2 + $0x8c] sm:$0xf]
    %v176 = vld [vmem:[#allocation2 + $0x90] sm:$0xf]
    %v177 = vld [vmem:[#allocation2 + $0x94] sm:$0xf]
    %v178 = vld [vmem:[#allocation2 + $0x98] sm:$0xf]
    %v179 = vld [vmem:[#allocation2 + $0x9c] sm:$0xf]
    %v180 = vld [vmem:[#allocation2 + $0xa0] sm:$0xf]
    %v181 = vld [vmem:[#allocation2 + $0xa4] sm:$0xf]
    %v182 = vld [vmem:[#allocation2 + $0xa8] sm:$0xf]
    %v183 = vld [vmem:[#allocation2 + $0xac] sm:$0xf]
    %v184 = vld [vmem:[#allocation2 + $0xb0] sm:$0xf]
    %v185 = vld [vmem:[#allocation2 + $0xb4] sm:$0xf]
    %v186 = vld [vmem:[#allocation2 + $0xb8] sm:$0xf]
    %v187 = vld [vmem:[#allocation2 + $0xbc] sm:$0xf]
    %v188 = vld [vmem:[%s4] sm:$0x7]
    %v190 = vperm.slane %v188, 0
    %v191 = vperm.slane %v188, 1
    %v192 = vperm.slane %v188, 2
    %v244 = vunpack.c.l.b16 %v140
    %v245 = vunpack.c.l.b16 %v141
    %v246 = vunpack.c.l.b16 %v142
    %v247 = vunpack.c.l.b16 %v143
    %v248 = vunpack.c.l.b16 %v144
    %v249 = vunpack.c.l.b16 %v145
    %v250 = vunpack.c.l.b16 %v146
    %v251 = vunpack.c.l.b16 %v147
    %v252 = vunpack.c.l.b16 %v148
    %v253 = vunpack.c.l.b16 %v149
    %v254 = vunpack.c.l.b16 %v150
    %v255 = vunpack.c.l.b16 %v151
    %v256 = vunpack.c.l.b16 %v152
    %v257 = vunpack.c.l.b16 %v153
    %v258 = vunpack.c.l.b16 %v154
    %v259 = vunpack.c.l.b16 %v155
    %v260 = vunpack.c.l.b16 %v156
    %v261 = vunpack.c.l.b16 %v157
    %v262 = vunpack.c.l.b16 %v158
    %v263 = vunpack.c.l.b16 %v159
    %v264 = vunpack.c.l.b16 %v160
    %v265 = vunpack.c.l.b16 %v161
    %v266 = vunpack.c.l.b16 %v162
    %v267 = vunpack.c.l.b16 %v163
    %v268 = vunpack.c.l.b16 %v164
    %v269 = vunpack.c.l.b16 %v165
    %v270 = vunpack.c.l.b16 %v166
    %v271 = vunpack.c.l.b16 %v167
    %v272 = vunpack.c.l.b16 %v168
    %v273 = vunpack.c.l.b16 %v169
    %v274 = vunpack.c.l.b16 %v170
    %v275 = vunpack.c.l.b16 %v171
    %v276 = vunpack.c.l.b16 %v172
    %v277 = vunpack.c.l.b16 %v173
    %v278 = vunpack.c.l.b16 %v174
    %v279 = vunpack.c.l.b16 %v175
    %v280 = vunpack.c.l.b16 %v176
    %v281 = vunpack.c.l.b16 %v177
    %v282 = vunpack.c.l.b16 %v178
    %v283 = vunpack.c.l.b16 %v179
    %v284 = vunpack.c.l.b16 %v180
    %v285 = vunpack.c.l.b16 %v181
    %v286 = vunpack.c.l.b16 %v182
    %v287 = vunpack.c.l.b16 %v183
    %v288 = vunpack.c.l.b16 %v184
    %v289 = vunpack.c.l.b16 %v185
    %v290 = vunpack.c.l.b16 %v186
    %v291 = vunpack.c.l.b16 %v187
    %v292 = vpack.c.b16 %v245, %v244
    %v293 = vpack.c.b16 %v247, %v246
    %v294 = vpack.c.b16 %v249, %v248
    %v295 = vpack.c.b16 %v251, %v250
    %v296 = vpack.c.b16 %v253, %v252
    %v297 = vpack.c.b16 %v255, %v254
    %v298 = vpack.c.b16 %v257, %v256
    %v299 = vpack.c.b16 %v259, %v258
    %v300 = vpack.c.b16 %v261, %v260
    %v301 = vpack.c.b16 %v263, %v262
    %v302 = vpack.c.b16 %v265, %v264
    %v303 = vpack.c.b16 %v267, %v266
    %v304 = vpack.c.b16 %v269, %v268
    %v305 = vpack.c.b16 %v271, %v270
    %v306 = vpack.c.b16 %v273, %v272
    %v307 = vpack.c.b16 %v275, %v274
    %v308 = vpack.c.b16 %v277, %v276
    %v309 = vpack.c.b16 %v279, %v278
    %v310 = vpack.c.b16 %v281, %v280
    %v311 = vpack.c.b16 %v283, %v282
    %v312 = vpack.c.b16 %v285, %v284
    %v313 = vpack.c.b16 %v287, %v286
    %v314 = vpack.c.b16 %v289, %v288
    %v315 = vpack.c.b16 %v291, %v290
    %340 = vmatpush.bf16.xpose.msra.mxu0 %v299
    %341 = vmatpush.bf16.xpose.msra.mxu0 %v298
    %342 = vmatpush.bf16.xpose.msra.mxu0 %v297
    %343 = vmatpush.bf16.xpose.msra.mxu0 %v296
    %344 = vmatpush.bf16.xpose.msra.mxu0 %v295
    %345 = vmatpush.bf16.xpose.msra.mxu0 %v294
    %346 = vmatpush.bf16.xpose.msra.mxu0 %v293
    %347 = vmatpush.bf16.xpose.msra.mxu0 %v292
    %348 = vmatmul.bf16.gmra.mxu0 %v139
    %v349 = vpop.f32.mrf.mxu0
    %v350 = vadd.f32 %v190, %v349
    %v351 = vpop.f32.mrf.mxu0
    %v352 = vadd.f32 %v190, %v351
    %353 = vdwg.mxu0
    %354 = vmatpush.bf16.xpose.msra.mxu0 %v307
    %355 = vmatpush.bf16.xpose.msra.mxu0 %v306
    %356 = vmatpush.bf16.xpose.msra.mxu0 %v305
    %357 = vmatpush.bf16.xpose.msra.mxu0 %v304
    %358 = vmatpush.bf16.xpose.msra.mxu0 %v303
    %359 = vmatpush.bf16.xpose.msra.mxu0 %v302
    %360 = vmatpush.bf16.xpose.msra.mxu0 %v301
    %361 = vmatpush.bf16.xpose.msra.mxu0 %v300
    %362 = vmatmul.bf16.gmra.mxu0 %v139
    %v363 = vpop.f32.mrf.mxu0
    %v364 = vadd.f32 %v191, %v363
    %v365 = vpop.f32.mrf.mxu0
    %v366 = vadd.f32 %v191, %v365
    %367 = vdwg.mxu0
    %368 = vmatpush.bf16.xpose.msra.mxu0 %v315
    %369 = vmatpush.bf16.xpose.msra.mxu0 %v314
    %370 = vmatpush.bf16.xpose.msra.mxu0 %v313
    %371 = vmatpush.bf16.xpose.msra.mxu0 %v312
    %372 = vmatpush.bf16.xpose.msra.mxu0 %v311
    %373 = vmatpush.bf16.xpose.msra.mxu0 %v310
    %374 = vmatpush.bf16.xpose.msra.mxu0 %v309
    %375 = vmatpush.bf16.xpose.msra.mxu0 %v308
    %376 = vmatmul.bf16.gmra.mxu0 %v139
    %v377 = vpop.f32.mrf.mxu0
    %v378 = vadd.f32 %v192, %v377
    %v379 = vpop.f32.mrf.mxu0
    %v380 = vadd.f32 %v192, %v379
    %381 = vdwg.mxu0
    %384 = vrot.lane.b32.xlu0 %v350, 96
    %v385 = vpop.permute.xlu0 %384
    %386 = vrot.lane.b32.xlu0 %v352, 96
    %v387 = vpop.permute.xlu0 %386
    %390 = vrot.lane.b32.xlu0 %v350, 64
    %v391 = vpop.permute.xlu0 %390
    %392 = vrot.lane.b32.xlu0 %v352, 64
    %v393 = vpop.permute.xlu0 %392
    %396 = vrot.lane.b32.xlu0 %v350, 32
    %v397 = vpop.permute.xlu0 %396
    %398 = vrot.lane.b32.xlu0 %v352, 32
    %v399 = vpop.permute.xlu0 %398
    %v402 = vpack.c.bf16 %v350, %v350
    %v403 = vpack.c.bf16 %v352, %v352
    %v404 = vpack.c.bf16 %v385, %v385
    %v405 = vpack.c.bf16 %v387, %v387
    %v406 = vpack.c.bf16 %v391, %v391
    %v407 = vpack.c.bf16 %v393, %v393
    %v408 = vpack.c.bf16 %v397, %v397
    %v409 = vpack.c.bf16 %v399, %v399
    %412 = vrot.lane.b32.xlu0 %v364, 96
    %v413 = vpop.permute.xlu0 %412
    %414 = vrot.lane.b32.xlu0 %v366, 96
    %v415 = vpop.permute.xlu0 %414
    %418 = vrot.lane.b32.xlu0 %v364, 64
    %v419 = vpop.permute.xlu0 %418
    %420 = vrot.lane.b32.xlu0 %v366, 64
    %v421 = vpop.permute.xlu0 %420
    %424 = vrot.lane.b32.xlu0 %v364, 32
    %v425 = vpop.permute.xlu0 %424
    %426 = vrot.lane.b32.xlu0 %v366, 32
    %v427 = vpop.permute.xlu0 %426
    %v430 = vpack.c.bf16 %v364, %v364
    %v431 = vpack.c.bf16 %v366, %v366
    %v432 = vpack.c.bf16 %v413, %v413
    %v433 = vpack.c.bf16 %v415, %v415
    %v434 = vpack.c.bf16 %v419, %v419
    %v435 = vpack.c.bf16 %v421, %v421
    %v436 = vpack.c.bf16 %v425, %v425
    %v437 = vpack.c.bf16 %v427, %v427
    %440 = vrot.lane.b32.xlu0 %v378, 96
    %v441 = vpop.permute.xlu0 %440
    %442 = vrot.lane.b32.xlu0 %v380, 96
    %v443 = vpop.permute.xlu0 %442
    %446 = vrot.lane.b32.xlu0 %v378, 64
    %v447 = vpop.permute.xlu0 %446
    %448 = vrot.lane.b32.xlu0 %v380, 64
    %v449 = vpop.permute.xlu0 %448
    %452 = vrot.lane.b32.xlu0 %v378, 32
    %v453 = vpop.permute.xlu0 %452
    %454 = vrot.lane.b32.xlu0 %v380, 32
    %v455 = vpop.permute.xlu0 %454
    %v458 = vpack.c.bf16 %v378, %v378
    %v459 = vpack.c.bf16 %v380, %v380
    %v460 = vpack.c.bf16 %v441, %v441
    %v461 = vpack.c.bf16 %v443, %v443
    %v462 = vpack.c.bf16 %v447, %v447
    %v463 = vpack.c.bf16 %v449, %v449
    %v464 = vpack.c.bf16 %v453, %v453
    %v465 = vpack.c.bf16 %v455, %v455
    %vm466 = vcmask 261120
    %v468 = vsel %vm466, %v402, 0
    %v471 = vsel %vm466, %v430, 0
    %473 = vmatpush.bf16.xpose.msra.mxu0 0
    %474 = vmatpush.bf16.xpose.msra.mxu0 0
    %475 = vmatpush.bf16.xpose.msra.mxu0 0
    %476 = vmatpush.bf16.xpose.msra.mxu0 0
    %477 = vmatpush.bf16.xpose.msra.mxu0 0
    %478 = vmatpush.bf16.xpose.msra.mxu0 0
    %479 = vmatpush.bf16.xpose.msra.mxu0 0
    %480 = vmatpush.bf16.xpose.msra.mxu0 %v471
    %481 = vmatmul.bf16.gmra.mxu0 %v468
    %v482 = vpop.f32.mrf.mxu0
    %v483 = vadd.f32 0.0, %v482
    %v484 = vpop.f32.mrf.mxu0
    %485 = vdwg.mxu0
    %v487 = vsel %vm466, %v403, 0
    %v490 = vsel %vm466, %v431, 0
    %492 = vmatpush.bf16.xpose.msra.mxu0 0
    %493 = vmatpush.bf16.xpose.msra.mxu0 0
    %494 = vmatpush.bf16.xpose.msra.mxu0 0
    %495 = vmatpush.bf16.xpose.msra.mxu0 0
    %496 = vmatpush.bf16.xpose.msra.mxu0 0
    %497 = vmatpush.bf16.xpose.msra.mxu0 0
    %498 = vmatpush.bf16.xpose.msra.mxu0 0
    %499 = vmatpush.bf16.xpose.msra.mxu0 %v490
    %500 = vmatmul.bf16.gmra.mxu0 %v487
    %v501 = vpop.f32.mrf.mxu0
    %v502 = vadd.f32 0.0, %v501
    %v503 = vpop.f32.mrf.mxu0
    %504 = vdwg.mxu0
    %v506 = vsel %vm466, %v404, 0
    %v509 = vsel %vm466, %v432, 0
    %511 = vmatpush.bf16.xpose.msra.mxu0 0
    %512 = vmatpush.bf16.xpose.msra.mxu0 0
    %513 = vmatpush.bf16.xpose.msra.mxu0 0
    %514 = vmatpush.bf16.xpose.msra.mxu0 0
    %515 = vmatpush.bf16.xpose.msra.mxu0 0
    %516 = vmatpush.bf16.xpose.msra.mxu0 0
    %517 = vmatpush.bf16.xpose.msra.mxu0 0
    %518 = vmatpush.bf16.xpose.msra.mxu0 %v509
    %519 = vmatmul.bf16.gmra.mxu0 %v506
    %v520 = vpop.f32.mrf.mxu0
    %v521 = vadd.f32 0.0, %v520
    %v522 = vpop.f32.mrf.mxu0
    %523 = vdwg.mxu0
    %v525 = vsel %vm466, %v405, 0
    %v528 = vsel %vm466, %v433, 0
    %530 = vmatpush.bf16.xpose.msra.mxu0 0
    %531 = vmatpush.bf16.xpose.msra.mxu0 0
    %532 = vmatpush.bf16.xpose.msra.mxu0 0
    %533 = vmatpush.bf16.xpose.msra.mxu0 0
    %534 = vmatpush.bf16.xpose.msra.mxu0 0
    %535 = vmatpush.bf16.xpose.msra.mxu0 0
    %536 = vmatpush.bf16.xpose.msra.mxu0 0
    %537 = vmatpush.bf16.xpose.msra.mxu0 %v528
    %538 = vmatmul.bf16.gmra.mxu0 %v525
    %v539 = vpop.f32.mrf.mxu0
    %v540 = vadd.f32 0.0, %v539
    %v541 = vpop.f32.mrf.mxu0
    %542 = vdwg.mxu0
    %v544 = vsel %vm466, %v406, 0
    %v547 = vsel %vm466, %v434, 0
    %549 = vmatpush.bf16.xpose.msra.mxu0 0
    %550 = vmatpush.bf16.xpose.msra.mxu0 0
    %551 = vmatpush.bf16.xpose.msra.mxu0 0
    %552 = vmatpush.bf16.xpose.msra.mxu0 0
    %553 = vmatpush.bf16.xpose.msra.mxu0 0
    %554 = vmatpush.bf16.xpose.msra.mxu0 0
    %555 = vmatpush.bf16.xpose.msra.mxu0 0
    %556 = vmatpush.bf16.xpose.msra.mxu0 %v547
    %557 = vmatmul.bf16.gmra.mxu0 %v544
    %v558 = vpop.f32.mrf.mxu0
    %v559 = vadd.f32 0.0, %v558
    %v560 = vpop.f32.mrf.mxu0
    %561 = vdwg.mxu0
    %v563 = vsel %vm466, %v407, 0
    %v566 = vsel %vm466, %v435, 0
    %568 = vmatpush.bf16.xpose.msra.mxu0 0
    %569 = vmatpush.bf16.xpose.msra.mxu0 0
    %570 = vmatpush.bf16.xpose.msra.mxu0 0
    %571 = vmatpush.bf16.xpose.msra.mxu0 0
    %572 = vmatpush.bf16.xpose.msra.mxu0 0
    %573 = vmatpush.bf16.xpose.msra.mxu0 0
    %574 = vmatpush.bf16.xpose.msra.mxu0 0
    %575 = vmatpush.bf16.xpose.msra.mxu0 %v566
    %576 = vmatmul.bf16.gmra.mxu0 %v563
    %v577 = vpop.f32.mrf.mxu0
    %v578 = vadd.f32 0.0, %v577
    %v579 = vpop.f32.mrf.mxu0
    %580 = vdwg.mxu0
    %v582 = vsel %vm466, %v408, 0
    %v585 = vsel %vm466, %v436, 0
    %587 = vmatpush.bf16.xpose.msra.mxu0 0
    %588 = vmatpush.bf16.xpose.msra.mxu0 0
    %589 = vmatpush.bf16.xpose.msra.mxu0 0
    %590 = vmatpush.bf16.xpose.msra.mxu0 0
    %591 = vmatpush.bf16.xpose.msra.mxu0 0
    %592 = vmatpush.bf16.xpose.msra.mxu0 0
    %593 = vmatpush.bf16.xpose.msra.mxu0 0
    %594 = vmatpush.bf16.xpose.msra.mxu0 %v585
    %595 = vmatmul.bf16.gmra.mxu0 %v582
    %v596 = vpop.f32.mrf.mxu0
    %v597 = vadd.f32 0.0, %v596
    %v598 = vpop.f32.mrf.mxu0
    %599 = vdwg.mxu0
    %v601 = vsel %vm466, %v409, 0
    %v604 = vsel %vm466, %v437, 0
    %606 = vmatpush.bf16.xpose.msra.mxu0 0
    %607 = vmatpush.bf16.xpose.msra.mxu0 0
    %608 = vmatpush.bf16.xpose.msra.mxu0 0
    %609 = vmatpush.bf16.xpose.msra.mxu0 0
    %610 = vmatpush.bf16.xpose.msra.mxu0 0
    %611 = vmatpush.bf16.xpose.msra.mxu0 0
    %612 = vmatpush.bf16.xpose.msra.mxu0 0
    %613 = vmatpush.bf16.xpose.msra.mxu0 %v604
    %614 = vmatmul.bf16.gmra.mxu0 %v601
    %v615 = vpop.f32.mrf.mxu0
    %v616 = vadd.f32 0.0, %v615
    %v617 = vpop.f32.mrf.mxu0
    %618 = vdwg.mxu0
    %vm619 = vcmask 64512
    %v620 = vsel %vm619, %v483, -inf
    %621 = vmax.xlane.f32.xlu0 %v620
    %v622 = vpop.xlane.xlu0 %621
    %v623 = vsel %vm619, %v502, -inf
    %624 = vmax.xlane.f32.xlu0 %v623
    %v625 = vpop.xlane.xlu0 %624
    %v626 = vsel %vm619, %v521, -inf
    %627 = vmax.xlane.f32.xlu0 %v626
    %v628 = vpop.xlane.xlu0 %627
    %v629 = vsel %vm619, %v540, -inf
    %630 = vmax.xlane.f32.xlu0 %v629
    %v631 = vpop.xlane.xlu0 %630
    %v632 = vsel %vm619, %v559, -inf
    %633 = vmax.xlane.f32.xlu0 %v632
    %v634 = vpop.xlane.xlu0 %633
    %v635 = vsel %vm619, %v578, -inf
    %636 = vmax.xlane.f32.xlu0 %v635
    %v637 = vpop.xlane.xlu0 %636
    %v638 = vsel %vm619, %v597, -inf
    %639 = vmax.xlane.f32.xlu0 %v638
    %v640 = vpop.xlane.xlu0 %639
    %v641 = vsel %vm619, %v616, -inf
    %642 = vmax.xlane.f32.xlu0 %v641
    %v643 = vpop.xlane.xlu0 %642
    %v644 = vsub.f32 %v483, %v622
    %v645 = vsub.f32 %v502, %v625
    %v646 = vsub.f32 %v521, %v628
    %v647 = vsub.f32 %v540, %v631
    %v648 = vsub.f32 %v559, %v634
    %v649 = vsub.f32 %v578, %v637
    %v650 = vsub.f32 %v597, %v640
    %v651 = vsub.f32 %v616, %v643
    %v652 = vmul.f32 %v644, 1.442695
    %v653 = vpow.pop %v652
    %v654 = vmul.f32 %v645, 1.442695
    %v655 = vpow.pop %v654
    %v656 = vmul.f32 %v646, 1.442695
    %v657 = vpow.pop %v656
    %v658 = vmul.f32 %v647, 1.442695
    %v659 = vpow.pop %v658
    %v660 = vmul.f32 %v648, 1.442695
    %v661 = vpow.pop %v660
    %v662 = vmul.f32 %v649, 1.442695
    %v663 = vpow.pop %v662
    %v664 = vmul.f32 %v650, 1.442695
    %v665 = vpow.pop %v664
    %v666 = vmul.f32 %v651, 1.442695
    %v667 = vpow.pop %v666
    %v668 = vsel %vm619, %v653, 0.0
    %669 = vadd.xlane.f32.xlu0 %v668
    %v670 = vpop.xlane.xlu0 %669
    %v671 = vsel %vm619, %v655, 0.0
    %672 = vadd.xlane.f32.xlu0 %v671
    %v673 = vpop.xlane.xlu0 %672
    %v674 = vsel %vm619, %v657, 0.0
    %675 = vadd.xlane.f32.xlu0 %v674
    %v676 = vpop.xlane.xlu0 %675
    %v677 = vsel %vm619, %v659, 0.0
    %678 = vadd.xlane.f32.xlu0 %v677
    %v679 = vpop.xlane.xlu0 %678
    %v680 = vsel %vm619, %v661, 0.0
    %681 = vadd.xlane.f32.xlu0 %v680
    %v682 = vpop.xlane.xlu0 %681
    %v683 = vsel %vm619, %v663, 0.0
    %684 = vadd.xlane.f32.xlu0 %v683
    %v685 = vpop.xlane.xlu0 %684
    %v686 = vsel %vm619, %v665, 0.0
    %687 = vadd.xlane.f32.xlu0 %v686
    %v688 = vpop.xlane.xlu0 %687
    %v689 = vsel %vm619, %v667, 0.0
    %690 = vadd.xlane.f32.xlu0 %v689
    %v691 = vpop.xlane.xlu0 %690
    %v692 = vrcp.pop %v670
    %v693 = vmul.f32 %v670, %v692
    %v694 = vsub.f32 1.0, %v693
    %v695 = vmul.f32 %v692, %v694
    %v696 = vadd.f32 %v692, %v695
    %vm697 = vweird.f32 %v670
    %vm698 = vweird.f32 %v692
    %vm699 = vmor %vm697, %vm698
    %v700 = vsel %vm699, %v692, %v696
    %v701 = vand.u32 2147483647, %v670
    %vm702 = vcmp.eq.f32.partialorder %v701, 8.507059e+37
    %v703 = vand.u32 %v670, 2147483648
    %v704 = vor.u32 1.1754944e-38, %v703
    %v705 = vsel %vm702, %v704, %v700
    %v706 = vmul.f32 %v653, %v705
    %v707 = vrcp.pop %v673
    %v708 = vmul.f32 %v673, %v707
    %v709 = vsub.f32 1.0, %v708
    %v710 = vmul.f32 %v707, %v709
    %v711 = vadd.f32 %v707, %v710
    %vm712 = vweird.f32 %v673
    %vm713 = vweird.f32 %v707
    %vm714 = vmor %vm712, %vm713
    %v715 = vsel %vm714, %v707, %v711
    %v716 = vand.u32 2147483647, %v673
    %vm717 = vcmp.eq.f32.partialorder %v716, 8.507059e+37
    %v718 = vand.u32 %v673, 2147483648
    %v719 = vor.u32 1.1754944e-38, %v718
    %v720 = vsel %vm717, %v719, %v715
    %v721 = vmul.f32 %v655, %v720
    %v722 = vrcp.pop %v676
    %v723 = vmul.f32 %v676, %v722
    %v724 = vsub.f32 1.0, %v723
    %v725 = vmul.f32 %v722, %v724
    %v726 = vadd.f32 %v722, %v725
    %vm727 = vweird.f32 %v676
    %vm728 = vweird.f32 %v722
    %vm729 = vmor %vm727, %vm728
    %v730 = vsel %vm729, %v722, %v726
    %v731 = vand.u32 2147483647, %v676
    %vm732 = vcmp.eq.f32.partialorder %v731, 8.507059e+37
    %v733 = vand.u32 %v676, 2147483648
    %v734 = vor.u32 1.1754944e-38, %v733
    %v735 = vsel %vm732, %v734, %v730
    %v736 = vmul.f32 %v657, %v735
    %v737 = vrcp.pop %v679
    %v738 = vmul.f32 %v679, %v737
    %v739 = vsub.f32 1.0, %v738
    %v740 = vmul.f32 %v737, %v739
    %v741 = vadd.f32 %v737, %v740
    %vm742 = vweird.f32 %v679
    %vm743 = vweird.f32 %v737
    %vm744 = vmor %vm742, %vm743
    %v745 = vsel %vm744, %v737, %v741
    %v746 = vand.u32 2147483647, %v679
    %vm747 = vcmp.eq.f32.partialorder %v746, 8.507059e+37
    %v748 = vand.u32 %v679, 2147483648
    %v749 = vor.u32 1.1754944e-38, %v748
    %v750 = vsel %vm747, %v749, %v745
    %v751 = vmul.f32 %v659, %v750
    %v752 = vrcp.pop %v682
    %v753 = vmul.f32 %v682, %v752
    %v754 = vsub.f32 1.0, %v753
    %v755 = vmul.f32 %v752, %v754
    %v756 = vadd.f32 %v752, %v755
    %vm757 = vweird.f32 %v682
    %vm758 = vweird.f32 %v752
    %vm759 = vmor %vm757, %vm758
    %v760 = vsel %vm759, %v752, %v756
    %v761 = vand.u32 2147483647, %v682
    %vm762 = vcmp.eq.f32.partialorder %v761, 8.507059e+37
    %v763 = vand.u32 %v682, 2147483648
    %v764 = vor.u32 1.1754944e-38, %v763
    %v765 = vsel %vm762, %v764, %v760
    %v766 = vmul.f32 %v661, %v765
    %v767 = vrcp.pop %v685
    %v768 = vmul.f32 %v685, %v767
    %v769 = vsub.f32 1.0, %v768
    %v770 = vmul.f32 %v767, %v769
    %v771 = vadd.f32 %v767, %v770
    %vm772 = vweird.f32 %v685
    %vm773 = vweird.f32 %v767
    %vm774 = vmor %vm772, %vm773
    %v775 = vsel %vm774, %v767, %v771
    %v776 = vand.u32 2147483647, %v685
    %vm777 = vcmp.eq.f32.partialorder %v776, 8.507059e+37
    %v778 = vand.u32 %v685, 2147483648
    %v779 = vor.u32 1.1754944e-38, %v778
    %v780 = vsel %vm777, %v779, %v775
    %v781 = vmul.f32 %v663, %v780
    %v782 = vrcp.pop %v688
    %v783 = vmul.f32 %v688, %v782
    %v784 = vsub.f32 1.0, %v783
    %v785 = vmul.f32 %v782, %v784
    %v786 = vadd.f32 %v782, %v785
    %vm787 = vweird.f32 %v688
    %vm788 = vweird.f32 %v782
    %vm789 = vmor %vm787, %vm788
    %v790 = vsel %vm789, %v782, %v786
    %v791 = vand.u32 2147483647, %v688
    %vm792 = vcmp.eq.f32.partialorder %v791, 8.507059e+37
    %v793 = vand.u32 %v688, 2147483648
    %v794 = vor.u32 1.1754944e-38, %v793
    %v795 = vsel %vm792, %v794, %v790
    %v796 = vmul.f32 %v665, %v795
    %v797 = vrcp.pop %v691
    %v798 = vmul.f32 %v691, %v797
    %v799 = vsub.f32 1.0, %v798
    %v800 = vmul.f32 %v797, %v799
    %v801 = vadd.f32 %v797, %v800
    %vm802 = vweird.f32 %v691
    %vm803 = vweird.f32 %v797
    %vm804 = vmor %vm802, %vm803
    %v805 = vsel %vm804, %v797, %v801
    %v806 = vand.u32 2147483647, %v691
    %vm807 = vcmp.eq.f32.partialorder %v806, 8.507059e+37
    %v808 = vand.u32 %v691, 2147483648
    %v809 = vor.u32 1.1754944e-38, %v808
    %v810 = vsel %vm807, %v809, %v805
    %v811 = vmul.f32 %v667, %v810
    %v812 = vpack.c.bf16 %v706, %v706
    %v813 = vpack.c.bf16 %v721, %v721
    %v814 = vpack.c.bf16 %v736, %v736
    %v815 = vpack.c.bf16 %v751, %v751
    %v816 = vpack.c.bf16 %v766, %v766
    %v817 = vpack.c.bf16 %v781, %v781
    %v818 = vpack.c.bf16 %v796, %v796
    %v819 = vpack.c.bf16 %v811, %v811
    %v821 = vsel %vm619, %v812, 0
    %vm823 = vcmask 1043456
    %v825 = vsel %vm823, %v458, 0
    %827 = vmatpush.bf16.msra.mxu0 0
    %828 = vmatpush.bf16.msra.mxu0 0
    %829 = vmatpush.bf16.msra.mxu0 0
    %830 = vmatpush.bf16.msra.mxu0 0
    %831 = vmatpush.bf16.msra.mxu0 0
    %832 = vmatpush.bf16.msra.mxu0 0
    %833 = vmatpush.bf16.msra.mxu0 0
    %834 = vmatpush.bf16.msra.mxu0 %v825
    %835 = vmatmul.bf16.gmra.mxu0 %v821
    %v836 = vpop.f32.mrf.mxu0
    %v837 = vadd.f32 0.0, %v836
    %v838 = vpop.f32.mrf.mxu0
    %839 = vdwg.mxu0
    %v841 = vsel %vm619, %v813, 0
    %v844 = vsel %vm823, %v459, 0
    %846 = vmatpush.bf16.msra.mxu0 0
    %847 = vmatpush.bf16.msra.mxu0 0
    %848 = vmatpush.bf16.msra.mxu0 0
    %849 = vmatpush.bf16.msra.mxu0 0
    %850 = vmatpush.bf16.msra.mxu0 0
    %851 = vmatpush.bf16.msra.mxu0 0
    %852 = vmatpush.bf16.msra.mxu0 0
    %853 = vmatpush.bf16.msra.mxu0 %v844
    %854 = vmatmul.bf16.gmra.mxu0 %v841
    %v855 = vpop.f32.mrf.mxu0
    %v856 = vadd.f32 0.0, %v855
    %v857 = vpop.f32.mrf.mxu0
    %858 = vdwg.mxu0
    %v860 = vsel %vm619, %v814, 0
    %v863 = vsel %vm823, %v460, 0
    %865 = vmatpush.bf16.msra.mxu0 0
    %866 = vmatpush.bf16.msra.mxu0 0
    %867 = vmatpush.bf16.msra.mxu0 0
    %868 = vmatpush.bf16.msra.mxu0 0
    %869 = vmatpush.bf16.msra.mxu0 0
    %870 = vmatpush.bf16.msra.mxu0 0
    %871 = vmatpush.bf16.msra.mxu0 0
    %872 = vmatpush.bf16.msra.mxu0 %v863
    %873 = vmatmul.bf16.gmra.mxu0 %v860
    %v874 = vpop.f32.mrf.mxu0
    %v875 = vadd.f32 0.0, %v874
    %v876 = vpop.f32.mrf.mxu0
    %877 = vdwg.mxu0
    %v879 = vsel %vm619, %v815, 0
    %v882 = vsel %vm823, %v461, 0
    %884 = vmatpush.bf16.msra.mxu0 0
    %885 = vmatpush.bf16.msra.mxu0 0
    %886 = vmatpush.bf16.msra.mxu0 0
    %887 = vmatpush.bf16.msra.mxu0 0
    %888 = vmatpush.bf16.msra.mxu0 0
    %889 = vmatpush.bf16.msra.mxu0 0
    %890 = vmatpush.bf16.msra.mxu0 0
    %891 = vmatpush.bf16.msra.mxu0 %v882
    %892 = vmatmul.bf16.gmra.mxu0 %v879
    %v893 = vpop.f32.mrf.mxu0
    %v894 = vadd.f32 0.0, %v893
    %v895 = vpop.f32.mrf.mxu0
    %896 = vdwg.mxu0
    %v898 = vsel %vm619, %v816, 0
    %v901 = vsel %vm823, %v462, 0
    %903 = vmatpush.bf16.msra.mxu0 0
    %904 = vmatpush.bf16.msra.mxu0 0
    %905 = vmatpush.bf16.msra.mxu0 0
    %906 = vmatpush.bf16.msra.mxu0 0
    %907 = vmatpush.bf16.msra.mxu0 0
    %908 = vmatpush.bf16.msra.mxu0 0
    %909 = vmatpush.bf16.msra.mxu0 0
    %910 = vmatpush.bf16.msra.mxu0 %v901
    %911 = vmatmul.bf16.gmra.mxu0 %v898
    %v912 = vpop.f32.mrf.mxu0
    %v913 = vadd.f32 0.0, %v912
    %v914 = vpop.f32.mrf.mxu0
    %915 = vdwg.mxu0
    %v917 = vsel %vm619, %v817, 0
    %v920 = vsel %vm823, %v463, 0
    %922 = vmatpush.bf16.msra.mxu0 0
    %923 = vmatpush.bf16.msra.mxu0 0
    %924 = vmatpush.bf16.msra.mxu0 0
    %925 = vmatpush.bf16.msra.mxu0 0
    %926 = vmatpush.bf16.msra.mxu0 0
    %927 = vmatpush.bf16.msra.mxu0 0
    %928 = vmatpush.bf16.msra.mxu0 0
    %929 = vmatpush.bf16.msra.mxu0 %v920
    %930 = vmatmul.bf16.gmra.mxu0 %v917
    %v931 = vpop.f32.mrf.mxu0
    %v932 = vadd.f32 0.0, %v931
    %v933 = vpop.f32.mrf.mxu0
    %934 = vdwg.mxu0
    %v936 = vsel %vm619, %v818, 0
    %v939 = vsel %vm823, %v464, 0
    %941 = vmatpush.bf16.msra.mxu0 0
    %942 = vmatpush.bf16.msra.mxu0 0
    %943 = vmatpush.bf16.msra.mxu0 0
    %944 = vmatpush.bf16.msra.mxu0 0
    %945 = vmatpush.bf16.msra.mxu0 0
    %946 = vmatpush.bf16.msra.mxu0 0
    %947 = vmatpush.bf16.msra.mxu0 0
    %948 = vmatpush.bf16.msra.mxu0 %v939
    %949 = vmatmul.bf16.gmra.mxu0 %v936
    %v950 = vpop.f32.mrf.mxu0
    %v951 = vadd.f32 0.0, %v950
    %v952 = vpop.f32.mrf.mxu0
    %953 = vdwg.mxu0
    %v955 = vsel %vm619, %v819, 0
    %v958 = vsel %vm823, %v465, 0
    %960 = vmatpush.bf16.msra.mxu0 0
    %961 = vmatpush.bf16.msra.mxu0 0
    %962 = vmatpush.bf16.msra.mxu0 0
    %963 = vmatpush.bf16.msra.mxu0 0
    %964 = vmatpush.bf16.msra.mxu0 0
    %965 = vmatpush.bf16.msra.mxu0 0
    %966 = vmatpush.bf16.msra.mxu0 0
    %967 = vmatpush.bf16.msra.mxu0 %v958
    %968 = vmatmul.bf16.gmra.mxu0 %v955
    %v969 = vpop.f32.mrf.mxu0
    %v970 = vadd.f32 0.0, %v969
    %v971 = vpop.f32.mrf.mxu0
    %972 = vdwg.mxu0
    %v973 = vpack.c.bf16 %v837, %v837
    %v974 = vpack.c.bf16 %v856, %v856
    %v975 = vpack.c.bf16 %v875, %v875
    %v976 = vpack.c.bf16 %v894, %v894
    %v977 = vpack.c.bf16 %v913, %v913
    %v978 = vpack.c.bf16 %v932, %v932
    %v979 = vpack.c.bf16 %v951, %v951
    %v980 = vpack.c.bf16 %v970, %v970
    %v981 = vld [vmem:[%s5] sm:$0xf]
    %v982 = vld [vmem:[%s5 + $0x4] sm:$0xf]
    %v983 = vld [vmem:[%s5 + $0x8] sm:$0xf]
    %v984 = vld [vmem:[%s5 + $0xc] sm:$0xf]
    %v985 = vld [vmem:[%s5 + $0x10] sm:$0xf]
    %v986 = vld [vmem:[%s5 + $0x14] sm:$0xf]
    %v987 = vld [vmem:[%s5 + $0x18] sm:$0xf]
    %v988 = vld [vmem:[%s5 + $0x1c] sm:$0xf]
    %v989 = vld [vmem:[%s5 + $0x20] sm:$0xf]
    %v990 = vld [vmem:[%s5 + $0x24] sm:$0xf]
    %v991 = vld [vmem:[%s5 + $0x28] sm:$0xf]
    %v992 = vld [vmem:[%s5 + $0x2c] sm:$0xf]
    %v993 = vld [vmem:[%s5 + $0x30] sm:$0xf]
    %v994 = vld [vmem:[%s5 + $0x34] sm:$0xf]
    %v995 = vld [vmem:[%s5 + $0x38] sm:$0xf]
    %v996 = vld [vmem:[%s5 + $0x3c] sm:$0xf]
    %s997 = scalar_lea.vmem %s5, 64
    %v998 = vld [vmem:[%s997] sm:$0xf]
    %v999 = vld [vmem:[%s997 + $0x4] sm:$0xf]
    %v1000 = vld [vmem:[%s997 + $0x8] sm:$0xf]
    %v1001 = vld [vmem:[%s997 + $0xc] sm:$0xf]
    %v1002 = vld [vmem:[%s997 + $0x10] sm:$0xf]
    %v1003 = vld [vmem:[%s997 + $0x14] sm:$0xf]
    %v1004 = vld [vmem:[%s997 + $0x18] sm:$0xf]
    %v1005 = vld [vmem:[%s997 + $0x1c] sm:$0xf]
    %v1006 = vld [vmem:[%s997 + $0x20] sm:$0xf]
    %v1007 = vld [vmem:[%s997 + $0x24] sm:$0xf]
    %v1008 = vld [vmem:[%s997 + $0x28] sm:$0xf]
    %v1009 = vld [vmem:[%s997 + $0x2c] sm:$0xf]
    %v1010 = vld [vmem:[%s997 + $0x30] sm:$0xf]
    %v1011 = vld [vmem:[%s997 + $0x34] sm:$0xf]
    %v1012 = vld [vmem:[%s997 + $0x38] sm:$0xf]
    %v1013 = vld [vmem:[%s997 + $0x3c] sm:$0xf]
    %v1016 = vunpack.c.l.b16 %v975
    %v1017 = vunpack.c.l.b16 %v976
    %v1018 = vpack.c.b16 %v1017, %v1016
    %v1035 = vunpack.c.l.b16 %v998
    %v1036 = vunpack.c.l.b16 %v999
    %v1037 = vunpack.c.l.b16 %v1000
    %v1038 = vunpack.c.l.b16 %v1001
    %v1039 = vunpack.c.l.b16 %v1002
    %v1040 = vunpack.c.l.b16 %v1003
    %v1041 = vunpack.c.l.b16 %v1004
    %v1042 = vunpack.c.l.b16 %v1005
    %v1043 = vunpack.c.l.b16 %v1006
    %v1044 = vunpack.c.l.b16 %v1007
    %v1045 = vunpack.c.l.b16 %v1008
    %v1046 = vunpack.c.l.b16 %v1009
    %v1047 = vunpack.c.l.b16 %v1010
    %v1048 = vunpack.c.l.b16 %v1011
    %v1049 = vunpack.c.l.b16 %v1012
    %v1050 = vunpack.c.l.b16 %v1013
    %v1051 = vpack.c.b16 %v1036, %v1035
    %v1052 = vpack.c.b16 %v1038, %v1037
    %v1053 = vpack.c.b16 %v1040, %v1039
    %v1054 = vpack.c.b16 %v1042, %v1041
    %v1055 = vpack.c.b16 %v1044, %v1043
    %v1056 = vpack.c.b16 %v1046, %v1045
    %v1057 = vpack.c.b16 %v1048, %v1047
    %v1058 = vpack.c.b16 %v1050, %v1049
    %v1060 = vsel %vm466, %v1018, 0
    %v1063 = vsel %vm466, %v1051, 0
    %v1066 = vsel %vm466, %v1052, 0
    %v1069 = vsel %vm466, %v1053, 0
    %v1072 = vsel %vm466, %v1054, 0
    %v1075 = vsel %vm466, %v1055, 0
    %v1078 = vsel %vm466, %v1056, 0
    %v1081 = vsel %vm466, %v1057, 0
    %v1084 = vsel %vm466, %v1058, 0
    %1086 = vmatpush.bf16.xpose.msra.mxu0 %v1084
    %1087 = vmatpush.bf16.xpose.msra.mxu0 %v1081
    %1088 = vmatpush.bf16.xpose.msra.mxu0 %v1078
    %1089 = vmatpush.bf16.xpose.msra.mxu0 %v1075
    %1090 = vmatpush.bf16.xpose.msra.mxu0 %v1072
    %1091 = vmatpush.bf16.xpose.msra.mxu0 %v1069
    %1092 = vmatpush.bf16.xpose.msra.mxu0 %v1066
    %1093 = vmatpush.bf16.xpose.msra.mxu0 %v1063
    %1094 = vmatmul.bf16.gmra.mxu0 %v1060
    %v1095 = vpop.f32.mrf.mxu0
    %v1096 = vadd.f32 0.0, %v1095
    %v1097 = vpop.f32.mrf.mxu0
    %v1098 = vadd.f32 0.0, %v1097
    %1099 = vdwg.mxu0
    %v1102 = vunpack.c.l.b16 %v973
    %v1103 = vunpack.c.l.b16 %v974
    %v1104 = vpack.c.b16 %v1103, %v1102
    %v1121 = vunpack.c.l.b16 %v981
    %v1122 = vunpack.c.l.b16 %v982
    %v1123 = vunpack.c.l.b16 %v983
    %v1124 = vunpack.c.l.b16 %v984
    %v1125 = vunpack.c.l.b16 %v985
    %v1126 = vunpack.c.l.b16 %v986
    %v1127 = vunpack.c.l.b16 %v987
    %v1128 = vunpack.c.l.b16 %v988
    %v1129 = vunpack.c.l.b16 %v989
    %v1130 = vunpack.c.l.b16 %v990
    %v1131 = vunpack.c.l.b16 %v991
    %v1132 = vunpack.c.l.b16 %v992
    %v1133 = vunpack.c.l.b16 %v993
    %v1134 = vunpack.c.l.b16 %v994
    %v1135 = vunpack.c.l.b16 %v995
    %v1136 = vunpack.c.l.b16 %v996
    %v1137 = vpack.c.b16 %v1122, %v1121
    %v1138 = vpack.c.b16 %v1124, %v1123
    %v1139 = vpack.c.b16 %v1126, %v1125
    %v1140 = vpack.c.b16 %v1128, %v1127
    %v1141 = vpack.c.b16 %v1130, %v1129
    %v1142 = vpack.c.b16 %v1132, %v1131
    %v1143 = vpack.c.b16 %v1134, %v1133
    %v1144 = vpack.c.b16 %v1136, %v1135
    %v1146 = vsel %vm466, %v1104, 0
    %v1149 = vsel %vm466, %v1137, 0
    %v1152 = vsel %vm466, %v1138, 0
    %v1155 = vsel %vm466, %v1139, 0
    %v1158 = vsel %vm466, %v1140, 0
    %v1161 = vsel %vm466, %v1141, 0
    %v1164 = vsel %vm466, %v1142, 0
    %v1167 = vsel %vm466, %v1143, 0
    %v1170 = vsel %vm466, %v1144, 0
    %1172 = vmatpush.bf16.xpose.msra.mxu0 %v1170
    %1173 = vmatpush.bf16.xpose.msra.mxu0 %v1167
    %1174 = vmatpush.bf16.xpose.msra.mxu0 %v1164
    %1175 = vmatpush.bf16.xpose.msra.mxu0 %v1161
    %1176 = vmatpush.bf16.xpose.msra.mxu0 %v1158
    %1177 = vmatpush.bf16.xpose.msra.mxu0 %v1155
    %1178 = vmatpush.bf16.xpose.msra.mxu0 %v1152
    %1179 = vmatpush.bf16.xpose.msra.mxu0 %v1149
    %1180 = vmatmul.bf16.gmra.mxu0 %v1146
    %v1181 = vpop.f32.mrf.mxu0
    %v1182 = vadd.f32 %v1096, %v1181
    %v1183 = vpop.f32.mrf.mxu0
    %v1184 = vadd.f32 %v1098, %v1183
    %1185 = vdwg.mxu0
    %s1186 = scalar_lea.vmem %s5, 128
    %v1187 = vld [vmem:[%s1186] sm:$0xf]
    %v1188 = vld [vmem:[%s1186 + $0x4] sm:$0xf]
    %v1189 = vld [vmem:[%s1186 + $0x8] sm:$0xf]
    %v1190 = vld [vmem:[%s1186 + $0xc] sm:$0xf]
    %v1191 = vld [vmem:[%s1186 + $0x10] sm:$0xf]
    %v1192 = vld [vmem:[%s1186 + $0x14] sm:$0xf]
    %v1193 = vld [vmem:[%s1186 + $0x18] sm:$0xf]
    %v1194 = vld [vmem:[%s1186 + $0x1c] sm:$0xf]
    %v1195 = vld [vmem:[%s1186 + $0x20] sm:$0xf]
    %v1196 = vld [vmem:[%s1186 + $0x24] sm:$0xf]
    %v1197 = vld [vmem:[%s1186 + $0x28] sm:$0xf]
    %v1198 = vld [vmem:[%s1186 + $0x2c] sm:$0xf]
    %v1199 = vld [vmem:[%s1186 + $0x30] sm:$0xf]
    %v1200 = vld [vmem:[%s1186 + $0x34] sm:$0xf]
    %v1201 = vld [vmem:[%s1186 + $0x38] sm:$0xf]
    %v1202 = vld [vmem:[%s1186 + $0x3c] sm:$0xf]
    %v1205 = vunpack.c.l.b16 %v977
    %v1206 = vunpack.c.l.b16 %v978
    %v1207 = vpack.c.b16 %v1206, %v1205
    %v1224 = vunpack.c.l.b16 %v1187
    %v1225 = vunpack.c.l.b16 %v1188
    %v1226 = vunpack.c.l.b16 %v1189
    %v1227 = vunpack.c.l.b16 %v1190
    %v1228 = vunpack.c.l.b16 %v1191
    %v1229 = vunpack.c.l.b16 %v1192
    %v1230 = vunpack.c.l.b16 %v1193
    %v1231 = vunpack.c.l.b16 %v1194
    %v1232 = vunpack.c.l.b16 %v1195
    %v1233 = vunpack.c.l.b16 %v1196
    %v1234 = vunpack.c.l.b16 %v1197
    %v1235 = vunpack.c.l.b16 %v1198
    %v1236 = vunpack.c.l.b16 %v1199
    %v1237 = vunpack.c.l.b16 %v1200
    %v1238 = vunpack.c.l.b16 %v1201
    %v1239 = vunpack.c.l.b16 %v1202
    %v1240 = vpack.c.b16 %v1225, %v1224
    %v1241 = vpack.c.b16 %v1227, %v1226
    %v1242 = vpack.c.b16 %v1229, %v1228
    %v1243 = vpack.c.b16 %v1231, %v1230
    %v1244 = vpack.c.b16 %v1233, %v1232
    %v1245 = vpack.c.b16 %v1235, %v1234
    %v1246 = vpack.c.b16 %v1237, %v1236
    %v1247 = vpack.c.b16 %v1239, %v1238
    %v1249 = vsel %vm466, %v1207, 0
    %v1252 = vsel %vm466, %v1240, 0
    %v1255 = vsel %vm466, %v1241, 0
    %v1258 = vsel %vm466, %v1242, 0
    %v1261 = vsel %vm466, %v1243, 0
    %v1264 = vsel %vm466, %v1244, 0
    %v1267 = vsel %vm466, %v1245, 0
    %v1270 = vsel %vm466, %v1246, 0
    %v1273 = vsel %vm466, %v1247, 0
    %1275 = vmatpush.bf16.xpose.msra.mxu0 %v1273
    %1276 = vmatpush.bf16.xpose.msra.mxu0 %v1270
    %1277 = vmatpush.bf16.xpose.msra.mxu0 %v1267
    %1278 = vmatpush.bf16.xpose.msra.mxu0 %v1264
    %1279 = vmatpush.bf16.xpose.msra.mxu0 %v1261
    %1280 = vmatpush.bf16.xpose.msra.mxu0 %v1258
    %1281 = vmatpush.bf16.xpose.msra.mxu0 %v1255
    %1282 = vmatpush.bf16.xpose.msra.mxu0 %v1252
    %1283 = vmatmul.bf16.gmra.mxu0 %v1249
    %v1284 = vpop.f32.mrf.mxu0
    %v1285 = vadd.f32 0.0, %v1284
    %v1286 = vpop.f32.mrf.mxu0
    %v1287 = vadd.f32 0.0, %v1286
    %1288 = vdwg.mxu0
    %v1289 = vadd.f32 %v1182, %v1285
    %v1290 = vadd.f32 %v1184, %v1287
    %s1291 = scalar_lea.vmem %s5, 192
    %v1292 = vld [vmem:[%s1291] sm:$0xf]
    %v1293 = vld [vmem:[%s1291 + $0x4] sm:$0xf]
    %v1294 = vld [vmem:[%s1291 + $0x8] sm:$0xf]
    %v1295 = vld [vmem:[%s1291 + $0xc] sm:$0xf]
    %v1296 = vld [vmem:[%s1291 + $0x10] sm:$0xf]
    %v1297 = vld [vmem:[%s1291 + $0x14] sm:$0xf]
    %v1298 = vld [vmem:[%s1291 + $0x18] sm:$0xf]
    %v1299 = vld [vmem:[%s1291 + $0x1c] sm:$0xf]
    %v1300 = vld [vmem:[%s1291 + $0x20] sm:$0xf]
    %v1301 = vld [vmem:[%s1291 + $0x24] sm:$0xf]
    %v1302 = vld [vmem:[%s1291 + $0x28] sm:$0xf]
    %v1303 = vld [vmem:[%s1291 + $0x2c] sm:$0xf]
    %v1304 = vld [vmem:[%s1291 + $0x30] sm:$0xf]
    %v1305 = vld [vmem:[%s1291 + $0x34] sm:$0xf]
    %v1306 = vld [vmem:[%s1291 + $0x38] sm:$0xf]
    %v1307 = vld [vmem:[%s1291 + $0x3c] sm:$0xf]
    %v1310 = vunpack.c.l.b16 %v979
    %v1311 = vunpack.c.l.b16 %v980
    %v1312 = vpack.c.b16 %v1311, %v1310
    %v1329 = vunpack.c.l.b16 %v1292
    %v1330 = vunpack.c.l.b16 %v1293
    %v1331 = vunpack.c.l.b16 %v1294
    %v1332 = vunpack.c.l.b16 %v1295
    %v1333 = vunpack.c.l.b16 %v1296
    %v1334 = vunpack.c.l.b16 %v1297
    %v1335 = vunpack.c.l.b16 %v1298
    %v1336 = vunpack.c.l.b16 %v1299
    %v1337 = vunpack.c.l.b16 %v1300
    %v1338 = vunpack.c.l.b16 %v1301
    %v1339 = vunpack.c.l.b16 %v1302
    %v1340 = vunpack.c.l.b16 %v1303
    %v1341 = vunpack.c.l.b16 %v1304
    %v1342 = vunpack.c.l.b16 %v1305
    %v1343 = vunpack.c.l.b16 %v1306
    %v1344 = vunpack.c.l.b16 %v1307
    %v1345 = vpack.c.b16 %v1330, %v1329
    %v1346 = vpack.c.b16 %v1332, %v1331
    %v1347 = vpack.c.b16 %v1334, %v1333
    %v1348 = vpack.c.b16 %v1336, %v1335
    %v1349 = vpack.c.b16 %v1338, %v1337
    %v1350 = vpack.c.b16 %v1340, %v1339
    %v1351 = vpack.c.b16 %v1342, %v1341
    %v1352 = vpack.c.b16 %v1344, %v1343
    %v1354 = vsel %vm466, %v1312, 0
    %v1357 = vsel %vm466, %v1345, 0
    %v1360 = vsel %vm466, %v1346, 0
    %v1363 = vsel %vm466, %v1347, 0
    %v1366 = vsel %vm466, %v1348, 0
    %v1369 = vsel %vm466, %v1349, 0
    %v1372 = vsel %vm466, %v1350, 0
    %v1375 = vsel %vm466, %v1351, 0
    %v1378 = vsel %vm466, %v1352, 0
    %1380 = vmatpush.bf16.xpose.msra.mxu0 %v1378
    %1381 = vmatpush.bf16.xpose.msra.mxu0 %v1375
    %1382 = vmatpush.bf16.xpose.msra.mxu0 %v1372
    %1383 = vmatpush.bf16.xpose.msra.mxu0 %v1369
    %1384 = vmatpush.bf16.xpose.msra.mxu0 %v1366
    %1385 = vmatpush.bf16.xpose.msra.mxu0 %v1363
    %1386 = vmatpush.bf16.xpose.msra.mxu0 %v1360
    %1387 = vmatpush.bf16.xpose.msra.mxu0 %v1357
    %1388 = vmatmul.bf16.gmra.mxu0 %v1354
    %v1389 = vpop.f32.mrf.mxu0
    %v1390 = vadd.f32 0.0, %v1389
    %v1391 = vpop.f32.mrf.mxu0
    %v1392 = vadd.f32 0.0, %v1391
    %1393 = vdwg.mxu0
    %v1394 = vadd.f32 %v1289, %v1390
    %v1395 = vadd.f32 %v1290, %v1392
    %v1396 = vadd.f32 %v78, %v1394
    %v1397 = vadd.f32 %v79, %v1395
    %v1398 = vld [vmem:[%s6] sm:$0x1]
    %v1400 = vperm.slane %v1398, 0
    %v1402 = vadd.f32 %v1396, %v1400
    %v1403 = vadd.f32 %v1397, %v1400
    %1404 = vadd.xlane.f32.xlu0 %v1402
    %v1405 = vpop.xlane.xlu0 %1404
    %1406 = vadd.xlane.f32.xlu0 %v1403
    %v1407 = vpop.xlane.xlu0 %1406
    %v1408 = vmul.f32 %v1405, %v90
    %v1409 = vmul.f32 %v1407, %v90
    %v1410 = vsub.f32 %v1402, %v1408
    %v1411 = vsub.f32 %v1403, %v1409
    %v1412 = vmul.f32 %v1410, %v1410
    %v1413 = vmul.f32 %v1411, %v1411
    %1414 = vadd.xlane.f32.xlu0 %v1412
    %v1415 = vpop.xlane.xlu0 %1414
    %1416 = vadd.xlane.f32.xlu0 %v1413
    %v1417 = vpop.xlane.xlu0 %1416
    %v1418 = vmul.f32 %v1415, %v90
    %v1419 = vmul.f32 %v1417, %v90
    %v1420 = vadd.f32 %v1418, 1e-05
    %v1421 = vadd.f32 %v1419, 1e-05
    %v1422 = vrsqrt.pop %v1420
    %v1423 = vmul.f32 %v1422, %v1420
    %v1424 = vmul.f32 %v1423, %v1422
    %v1425 = vmul.f32 0.5, %v1424
    %v1426 = vsub.f32 1.5, %v1425
    %v1427 = vmul.f32 %v1422, %v1426
    %vm1428 = vweird.f32 %v1420
    %vm1429 = vweird.f32 %v1422
    %vm1430 = vmor %vm1428, %vm1429
    %v1431 = vsel %vm1430, %v1422, %v1427
    %v1432 = vrsqrt.pop %v1421
    %v1433 = vmul.f32 %v1432, %v1421
    %v1434 = vmul.f32 %v1433, %v1432
    %v1435 = vmul.f32 0.5, %v1434
    %v1436 = vsub.f32 1.5, %v1435
    %v1437 = vmul.f32 %v1432, %v1436
    %vm1438 = vweird.f32 %v1421
    %vm1439 = vweird.f32 %v1432
    %vm1440 = vmor %vm1438, %vm1439
    %v1441 = vsel %vm1440, %v1432, %v1437
    %v1442 = vmul.f32 %v1410, %v1431
    %v1443 = vmul.f32 %v1411, %v1441
    %v1444 = vld [vmem:[%s7] sm:$0x1]
    %v1446 = vperm.slane %v1444, 0
    %v1448 = vmul.f32 %v1442, %v1446
    %v1449 = vmul.f32 %v1443, %v1446
    %v1450 = vld [vmem:[%s8] sm:$0x1]
    %v1452 = vperm.slane %v1450, 0
    %v1454 = vadd.f32 %v1448, %v1452
    %v1455 = vadd.f32 %v1449, %v1452
    %v1456 = vpack.c.bf16 %v1455, %v1454
    %v1457 = vld [vmem:[%s9] sm:$0xf]
    %v1458 = vld [vmem:[%s9 + $0x4] sm:$0xf]
    %v1459 = vld [vmem:[%s9 + $0x8] sm:$0xf]
    %v1460 = vld [vmem:[%s9 + $0xc] sm:$0xf]
    %v1461 = vld [vmem:[%s9 + $0x10] sm:$0xf]
    %v1462 = vld [vmem:[%s9 + $0x14] sm:$0xf]
    %v1463 = vld [vmem:[%s9 + $0x18] sm:$0xf]
    %v1464 = vld [vmem:[%s9 + $0x1c] sm:$0xf]
    %v1465 = vld [vmem:[%s9 + $0x20] sm:$0xf]
    %v1466 = vld [vmem:[%s9 + $0x24] sm:$0xf]
    %v1467 = vld [vmem:[%s9 + $0x28] sm:$0xf]
    %v1468 = vld [vmem:[%s9 + $0x2c] sm:$0xf]
    %v1469 = vld [vmem:[%s9 + $0x30] sm:$0xf]
    %v1470 = vld [vmem:[%s9 + $0x34] sm:$0xf]
    %v1471 = vld [vmem:[%s9 + $0x38] sm:$0xf]
    %v1472 = vld [vmem:[%s9 + $0x3c] sm:$0xf]
    %v1473 = vld [vmem:[%s9 + $0x40] sm:$0xf]
    %v1474 = vld [vmem:[%s9 + $0x44] sm:$0xf]
    %v1475 = vld [vmem:[%s9 + $0x48] sm:$0xf]
    %v1476 = vld [vmem:[%s9 + $0x4c] sm:$0xf]
    %v1477 = vld [vmem:[%s9 + $0x50] sm:$0xf]
    %v1478 = vld [vmem:[%s9 + $0x54] sm:$0xf]
    %v1479 = vld [vmem:[%s9 + $0x58] sm:$0xf]
    %v1480 = vld [vmem:[%s9 + $0x5c] sm:$0xf]
    %v1481 = vld [vmem:[%s9 + $0x60] sm:$0xf]
    %v1482 = vld [vmem:[%s9 + $0x64] sm:$0xf]
    %v1483 = vld [vmem:[%s9 + $0x68] sm:$0xf]
    %v1484 = vld [vmem:[%s9 + $0x6c] sm:$0xf]
    %v1485 = vld [vmem:[%s9 + $0x70] sm:$0xf]
    %v1486 = vld [vmem:[%s9 + $0x74] sm:$0xf]
    %v1487 = vld [vmem:[%s9 + $0x78] sm:$0xf]
    %v1488 = vld [vmem:[%s9 + $0x7c] sm:$0xf]
    %v1489 = vld [vmem:[%s9 + $0x80] sm:$0xf]
    %v1490 = vld [vmem:[%s9 + $0x84] sm:$0xf]
    %v1491 = vld [vmem:[%s9 + $0x88] sm:$0xf]
    %v1492 = vld [vmem:[%s9 + $0x8c] sm:$0xf]
    %v1493 = vld [vmem:[%s9 + $0x90] sm:$0xf]
    %v1494 = vld [vmem:[%s9 + $0x94] sm:$0xf]
    %v1495 = vld [vmem:[%s9 + $0x98] sm:$0xf]
    %v1496 = vld [vmem:[%s9 + $0x9c] sm:$0xf]
    %v1497 = vld [vmem:[%s9 + $0xa0] sm:$0xf]
    %v1498 = vld [vmem:[%s9 + $0xa4] sm:$0xf]
    %v1499 = vld [vmem:[%s9 + $0xa8] sm:$0xf]
    %v1500 = vld [vmem:[%s9 + $0xac] sm:$0xf]
    %v1501 = vld [vmem:[%s9 + $0xb0] sm:$0xf]
    %v1502 = vld [vmem:[%s9 + $0xb4] sm:$0xf]
    %v1503 = vld [vmem:[%s9 + $0xb8] sm:$0xf]
    %v1504 = vld [vmem:[%s9 + $0xbc] sm:$0xf]
    %v1505 = vld [vmem:[%s9 + $0xc0] sm:$0xf]
    %v1506 = vld [vmem:[%s9 + $0xc4] sm:$0xf]
    %v1507 = vld [vmem:[%s9 + $0xc8] sm:$0xf]
    %v1508 = vld [vmem:[%s9 + $0xcc] sm:$0xf]
    %v1509 = vld [vmem:[%s9 + $0xd0] sm:$0xf]
    %v1510 = vld [vmem:[%s9 + $0xd4] sm:$0xf]
    %v1511 = vld [vmem:[%s9 + $0xd8] sm:$0xf]
    %v1512 = vld [vmem:[%s9 + $0xdc] sm:$0xf]
    %v1513 = vld [vmem:[%s9 + $0xe0] sm:$0xf]
    %v1514 = vld [vmem:[%s9 + $0xe4] sm:$0xf]
    %v1515 = vld [vmem:[%s9 + $0xe8] sm:$0xf]
    %v1516 = vld [vmem:[%s9 + $0xec] sm:$0xf]
    %v1517 = vld [vmem:[%s9 + $0xf0] sm:$0xf]
    %v1518 = vld [vmem:[%s9 + $0xf4] sm:$0xf]
    %v1519 = vld [vmem:[%s9 + $0xf8] sm:$0xf]
    %v1520 = vld [vmem:[%s9 + $0xfc] sm:$0xf]
    %v1521 = vld [vmem:[%s10] sm:$0xf]
    %v1523 = vperm.slane %v1521, 0
    %v1524 = vperm.slane %v1521, 1
    %v1525 = vperm.slane %v1521, 2
    %v1526 = vperm.slane %v1521, 3
    %v1595 = vunpack.c.l.b16 %v1457
    %v1596 = vunpack.c.l.b16 %v1458
    %v1597 = vunpack.c.l.b16 %v1459
    %v1598 = vunpack.c.l.b16 %v1460
    %v1599 = vunpack.c.l.b16 %v1461
    %v1600 = vunpack.c.l.b16 %v1462
    %v1601 = vunpack.c.l.b16 %v1463
    %v1602 = vunpack.c.l.b16 %v1464
    %v1603 = vunpack.c.l.b16 %v1465
    %v1604 = vunpack.c.l.b16 %v1466
    %v1605 = vunpack.c.l.b16 %v1467
    %v1606 = vunpack.c.l.b16 %v1468
    %v1607 = vunpack.c.l.b16 %v1469
    %v1608 = vunpack.c.l.b16 %v1470
    %v1609 = vunpack.c.l.b16 %v1471
    %v1610 = vunpack.c.l.b16 %v1472
    %v1611 = vunpack.c.l.b16 %v1473
    %v1612 = vunpack.c.l.b16 %v1474
    %v1613 = vunpack.c.l.b16 %v1475
    %v1614 = vunpack.c.l.b16 %v1476
    %v1615 = vunpack.c.l.b16 %v1477
    %v1616 = vunpack.c.l.b16 %v1478
    %v1617 = vunpack.c.l.b16 %v1479
    %v1618 = vunpack.c.l.b16 %v1480
    %v1619 = vunpack.c.l.b16 %v1481
    %v1620 = vunpack.c.l.b16 %v1482
    %v1621 = vunpack.c.l.b16 %v1483
    %v1622 = vunpack.c.l.b16 %v1484
    %v1623 = vunpack.c.l.b16 %v1485
    %v1624 = vunpack.c.l.b16 %v1486
    %v1625 = vunpack.c.l.b16 %v1487
    %v1626 = vunpack.c.l.b16 %v1488
    %v1627 = vunpack.c.l.b16 %v1489
    %v1628 = vunpack.c.l.b16 %v1490
    %v1629 = vunpack.c.l.b16 %v1491
    %v1630 = vunpack.c.l.b16 %v1492
    %v1631 = vunpack.c.l.b16 %v1493
    %v1632 = vunpack.c.l.b16 %v1494
    %v1633 = vunpack.c.l.b16 %v1495
    %v1634 = vunpack.c.l.b16 %v1496
    %v1635 = vunpack.c.l.b16 %v1497
    %v1636 = vunpack.c.l.b16 %v1498
    %v1637 = vunpack.c.l.b16 %v1499
    %v1638 = vunpack.c.l.b16 %v1500
    %v1639 = vunpack.c.l.b16 %v1501
    %v1640 = vunpack.c.l.b16 %v1502
    %v1641 = vunpack.c.l.b16 %v1503
    %v1642 = vunpack.c.l.b16 %v1504
    %v1643 = vunpack.c.l.b16 %v1505
    %v1644 = vunpack.c.l.b16 %v1506
    %v1645 = vunpack.c.l.b16 %v1507
    %v1646 = vunpack.c.l.b16 %v1508
    %v1647 = vunpack.c.l.b16 %v1509
    %v1648 = vunpack.c.l.b16 %v1510
    %v1649 = vunpack.c.l.b16 %v1511
    %v1650 = vunpack.c.l.b16 %v1512
    %v1651 = vunpack.c.l.b16 %v1513
    %v1652 = vunpack.c.l.b16 %v1514
    %v1653 = vunpack.c.l.b16 %v1515
    %v1654 = vunpack.c.l.b16 %v1516
    %v1655 = vunpack.c.l.b16 %v1517
    %v1656 = vunpack.c.l.b16 %v1518
    %v1657 = vunpack.c.l.b16 %v1519
    %v1658 = vunpack.c.l.b16 %v1520
    %v1659 = vpack.c.b16 %v1596, %v1595
    %v1660 = vpack.c.b16 %v1598, %v1597
    %v1661 = vpack.c.b16 %v1600, %v1599
    %v1662 = vpack.c.b16 %v1602, %v1601
    %v1663 = vpack.c.b16 %v1604, %v1603
    %v1664 = vpack.c.b16 %v1606, %v1605
    %v1665 = vpack.c.b16 %v1608, %v1607
    %v1666 = vpack.c.b16 %v1610, %v1609
    %v1667 = vpack.c.b16 %v1612, %v1611
    %v1668 = vpack.c.b16 %v1614, %v1613
    %v1669 = vpack.c.b16 %v1616, %v1615
    %v1670 = vpack.c.b16 %v1618, %v1617
    %v1671 = vpack.c.b16 %v1620, %v1619
    %v1672 = vpack.c.b16 %v1622, %v1621
    %v1673 = vpack.c.b16 %v1624, %v1623
    %v1674 = vpack.c.b16 %v1626, %v1625
    %v1675 = vpack.c.b16 %v1628, %v1627
    %v1676 = vpack.c.b16 %v1630, %v1629
    %v1677 = vpack.c.b16 %v1632, %v1631
    %v1678 = vpack.c.b16 %v1634, %v1633
    %v1679 = vpack.c.b16 %v1636, %v1635
    %v1680 = vpack.c.b16 %v1638, %v1637
    %v1681 = vpack.c.b16 %v1640, %v1639
    %v1682 = vpack.c.b16 %v1642, %v1641
    %v1683 = vpack.c.b16 %v1644, %v1643
    %v1684 = vpack.c.b16 %v1646, %v1645
    %v1685 = vpack.c.b16 %v1648, %v1647
    %v1686 = vpack.c.b16 %v1650, %v1649
    %v1687 = vpack.c.b16 %v1652, %v1651
    %v1688 = vpack.c.b16 %v1654, %v1653
    %v1689 = vpack.c.b16 %v1656, %v1655
    %v1690 = vpack.c.b16 %v1658, %v1657
    %1723 = vmatpush.bf16.xpose.msra.mxu0 %v1666
    %1724 = vmatpush.bf16.xpose.msra.mxu0 %v1665
    %1725 = vmatpush.bf16.xpose.msra.mxu0 %v1664
    %1726 = vmatpush.bf16.xpose.msra.mxu0 %v1663
    %1727 = vmatpush.bf16.xpose.msra.mxu0 %v1662
    %1728 = vmatpush.bf16.xpose.msra.mxu0 %v1661
    %1729 = vmatpush.bf16.xpose.msra.mxu0 %v1660
    %1730 = vmatpush.bf16.xpose.msra.mxu0 %v1659
    %1731 = vmatmul.bf16.gmra.mxu0 %v1456
    %v1732 = vpop.f32.mrf.mxu0
    %v1733 = vadd.f32 %v1523, %v1732
    %v1734 = vpop.f32.mrf.mxu0
    %v1735 = vadd.f32 %v1523, %v1734
    %1736 = vdwg.mxu0
    %1737 = vmatpush.bf16.xpose.msra.mxu0 %v1674
    %1738 = vmatpush.bf16.xpose.msra.mxu0 %v1673
    %1739 = vmatpush.bf16.xpose.msra.mxu0 %v1672
    %1740 = vmatpush.bf16.xpose.msra.mxu0 %v1671
    %1741 = vmatpush.bf16.xpose.msra.mxu0 %v1670
    %1742 = vmatpush.bf16.xpose.msra.mxu0 %v1669
    %1743 = vmatpush.bf16.xpose.msra.mxu0 %v1668
    %1744 = vmatpush.bf16.xpose.msra.mxu0 %v1667
    %1745 = vmatmul.bf16.gmra.mxu0 %v1456
    %v1746 = vpop.f32.mrf.mxu0
    %v1747 = vadd.f32 %v1524, %v1746
    %v1748 = vpop.f32.mrf.mxu0
    %v1749 = vadd.f32 %v1524, %v1748
    %1750 = vdwg.mxu0
    %1751 = vmatpush.bf16.xpose.msra.mxu0 %v1682
    %1752 = vmatpush.bf16.xpose.msra.mxu0 %v1681
    %1753 = vmatpush.bf16.xpose.msra.mxu0 %v1680
    %1754 = vmatpush.bf16.xpose.msra.mxu0 %v1679
    %1755 = vmatpush.bf16.xpose.msra.mxu0 %v1678
    %1756 = vmatpush.bf16.xpose.msra.mxu0 %v1677
    %1757 = vmatpush.bf16.xpose.msra.mxu0 %v1676
    %1758 = vmatpush.bf16.xpose.msra.mxu0 %v1675
    %1759 = vmatmul.bf16.gmra.mxu0 %v1456
    %v1760 = vpop.f32.mrf.mxu0
    %v1761 = vadd.f32 %v1525, %v1760
    %v1762 = vpop.f32.mrf.mxu0
    %v1763 = vadd.f32 %v1525, %v1762
    %1764 = vdwg.mxu0
    %1765 = vmatpush.bf16.xpose.msra.mxu0 %v1690
    %1766 = vmatpush.bf16.xpose.msra.mxu0 %v1689
    %1767 = vmatpush.bf16.xpose.msra.mxu0 %v1688
    %1768 = vmatpush.bf16.xpose.msra.mxu0 %v1687
    %1769 = vmatpush.bf16.xpose.msra.mxu0 %v1686
    %1770 = vmatpush.bf16.xpose.msra.mxu0 %v1685
    %1771 = vmatpush.bf16.xpose.msra.mxu0 %v1684
    %1772 = vmatpush.bf16.xpose.msra.mxu0 %v1683
    %1773 = vmatmul.bf16.gmra.mxu0 %v1456
    %v1774 = vpop.f32.mrf.mxu0
    %v1775 = vadd.f32 %v1526, %v1774
    %v1776 = vpop.f32.mrf.mxu0
    %v1777 = vadd.f32 %v1526, %v1776
    %1778 = vdwg.mxu0
    %v1779 = vmul.f32 %v1733, 1.702
    %v1780 = vmul.f32 %v1747, 1.702
    %v1781 = vmul.f32 %v1761, 1.702
    %v1782 = vmul.f32 %v1775, 1.702
    %v1783 = vmul.f32 %v1735, 1.702
    %v1784 = vmul.f32 %v1749, 1.702
    %v1785 = vmul.f32 %v1763, 1.702
    %v1786 = vmul.f32 %v1777, 1.702
    %v1787 = vxor.u32 %v1779, 2147483648
    %v1788 = vxor.u32 %v1780, 2147483648
    %v1789 = vxor.u32 %v1781, 2147483648
    %v1790 = vxor.u32 %v1782, 2147483648
    %v1791 = vxor.u32 %v1783, 2147483648
    %v1792 = vxor.u32 %v1784, 2147483648
    %v1793 = vxor.u32 %v1785, 2147483648
    %v1794 = vxor.u32 %v1786, 2147483648
    %v1795 = vmul.f32 %v1787, 1.442695
    %v1796 = vpow.pop %v1795
    %v1797 = vmul.f32 %v1788, 1.442695
    %v1798 = vpow.pop %v1797
    %v1799 = vmul.f32 %v1789, 1.442695
    %v1800 = vpow.pop %v1799
    %v1801 = vmul.f32 %v1790, 1.442695
    %v1802 = vpow.pop %v1801
    %v1803 = vmul.f32 %v1791, 1.442695
    %v1804 = vpow.pop %v1803
    %v1805 = vmul.f32 %v1792, 1.442695
    %v1806 = vpow.pop %v1805
    %v1807 = vmul.f32 %v1793, 1.442695
    %v1808 = vpow.pop %v1807
    %v1809 = vmul.f32 %v1794, 1.442695
    %v1810 = vpow.pop %v1809
    %v1811 = vadd.f32 %v1796, 1.0
    %v1812 = vadd.f32 %v1798, 1.0
    %v1813 = vadd.f32 %v1800, 1.0
    %v1814 = vadd.f32 %v1802, 1.0
    %v1815 = vadd.f32 %v1804, 1.0
    %v1816 = vadd.f32 %v1806, 1.0
    %v1817 = vadd.f32 %v1808, 1.0
    %v1818 = vadd.f32 %v1810, 1.0
    %v1819 = vrcp.pop %v1811
    %v1820 = vmul.f32 %v1811, %v1819
    %v1821 = vsub.f32 1.0, %v1820
    %v1822 = vmul.f32 %v1819, %v1821
    %v1823 = vadd.f32 %v1819, %v1822
    %vm1824 = vweird.f32 %v1811
    %vm1825 = vweird.f32 %v1819
    %vm1826 = vmor %vm1824, %vm1825
    %v1827 = vsel %vm1826, %v1819, %v1823
    %v1828 = vand.u32 2147483647, %v1811
    %vm1829 = vcmp.eq.f32.partialorder %v1828, 8.507059e+37
    %v1830 = vand.u32 %v1811, 2147483648
    %v1831 = vor.u32 1.1754944e-38, %v1830
    %v1832 = vsel %vm1829, %v1831, %v1827
    %v1833 = vmul.f32 1.0, %v1832
    %v1834 = vrcp.pop %v1812
    %v1835 = vmul.f32 %v1812, %v1834
    %v1836 = vsub.f32 1.0, %v1835
    %v1837 = vmul.f32 %v1834, %v1836
    %v1838 = vadd.f32 %v1834, %v1837
    %vm1839 = vweird.f32 %v1812
    %vm1840 = vweird.f32 %v1834
    %vm1841 = vmor %vm1839, %vm1840
    %v1842 = vsel %vm1841, %v1834, %v1838
    %v1843 = vand.u32 2147483647, %v1812
    %vm1844 = vcmp.eq.f32.partialorder %v1843, 8.507059e+37
    %v1845 = vand.u32 %v1812, 2147483648
    %v1846 = vor.u32 1.1754944e-38, %v1845
    %v1847 = vsel %vm1844, %v1846, %v1842
    %v1848 = vmul.f32 1.0, %v1847
    %v1849 = vrcp.pop %v1813
    %v1850 = vmul.f32 %v1813, %v1849
    %v1851 = vsub.f32 1.0, %v1850
    %v1852 = vmul.f32 %v1849, %v1851
    %v1853 = vadd.f32 %v1849, %v1852
    %vm1854 = vweird.f32 %v1813
    %vm1855 = vweird.f32 %v1849
    %vm1856 = vmor %vm1854, %vm1855
    %v1857 = vsel %vm1856, %v1849, %v1853
    %v1858 = vand.u32 2147483647, %v1813
    %vm1859 = vcmp.eq.f32.partialorder %v1858, 8.507059e+37
    %v1860 = vand.u32 %v1813, 2147483648
    %v1861 = vor.u32 1.1754944e-38, %v1860
    %v1862 = vsel %vm1859, %v1861, %v1857
    %v1863 = vmul.f32 1.0, %v1862
    %v1864 = vrcp.pop %v1814
    %v1865 = vmul.f32 %v1814, %v1864
    %v1866 = vsub.f32 1.0, %v1865
    %v1867 = vmul.f32 %v1864, %v1866
    %v1868 = vadd.f32 %v1864, %v1867
    %vm1869 = vweird.f32 %v1814
    %vm1870 = vweird.f32 %v1864
    %vm1871 = vmor %vm1869, %vm1870
    %v1872 = vsel %vm1871, %v1864, %v1868
    %v1873 = vand.u32 2147483647, %v1814
    %vm1874 = vcmp.eq.f32.partialorder %v1873, 8.507059e+37
    %v1875 = vand.u32 %v1814, 2147483648
    %v1876 = vor.u32 1.1754944e-38, %v1875
    %v1877 = vsel %vm1874, %v1876, %v1872
    %v1878 = vmul.f32 1.0, %v1877
    %v1879 = vrcp.pop %v1815
    %v1880 = vmul.f32 %v1815, %v1879
    %v1881 = vsub.f32 1.0, %v1880
    %v1882 = vmul.f32 %v1879, %v1881
    %v1883 = vadd.f32 %v1879, %v1882
    %vm1884 = vweird.f32 %v1815
    %vm1885 = vweird.f32 %v1879
    %vm1886 = vmor %vm1884, %vm1885
    %v1887 = vsel %vm1886, %v1879, %v1883
    %v1888 = vand.u32 2147483647, %v1815
    %vm1889 = vcmp.eq.f32.partialorder %v1888, 8.507059e+37
    %v1890 = vand.u32 %v1815, 2147483648
    %v1891 = vor.u32 1.1754944e-38, %v1890
    %v1892 = vsel %vm1889, %v1891, %v1887
    %v1893 = vmul.f32 1.0, %v1892
    %v1894 = vrcp.pop %v1816
    %v1895 = vmul.f32 %v1816, %v1894
    %v1896 = vsub.f32 1.0, %v1895
    %v1897 = vmul.f32 %v1894, %v1896
    %v1898 = vadd.f32 %v1894, %v1897
    %vm1899 = vweird.f32 %v1816
    %vm1900 = vweird.f32 %v1894
    %vm1901 = vmor %vm1899, %vm1900
    %v1902 = vsel %vm1901, %v1894, %v1898
    %v1903 = vand.u32 2147483647, %v1816
    %vm1904 = vcmp.eq.f32.partialorder %v1903, 8.507059e+37
    %v1905 = vand.u32 %v1816, 2147483648
    %v1906 = vor.u32 1.1754944e-38, %v1905
    %v1907 = vsel %vm1904, %v1906, %v1902
    %v1908 = vmul.f32 1.0, %v1907
    %v1909 = vrcp.pop %v1817
    %v1910 = vmul.f32 %v1817, %v1909
    %v1911 = vsub.f32 1.0, %v1910
    %v1912 = vmul.f32 %v1909, %v1911
    %v1913 = vadd.f32 %v1909, %v1912
    %vm1914 = vweird.f32 %v1817
    %vm1915 = vweird.f32 %v1909
    %vm1916 = vmor %vm1914, %vm1915
    %v1917 = vsel %vm1916, %v1909, %v1913
    %v1918 = vand.u32 2147483647, %v1817
    %vm1919 = vcmp.eq.f32.partialorder %v1918, 8.507059e+37
    %v1920 = vand.u32 %v1817, 2147483648
    %v1921 = vor.u32 1.1754944e-38, %v1920
    %v1922 = vsel %vm1919, %v1921, %v1917
    %v1923 = vmul.f32 1.0, %v1922
    %v1924 = vrcp.pop %v1818
    %v1925 = vmul.f32 %v1818, %v1924
    %v1926 = vsub.f32 1.0, %v1925
    %v1927 = vmul.f32 %v1924, %v1926
    %v1928 = vadd.f32 %v1924, %v1927
    %vm1929 = vweird.f32 %v1818
    %vm1930 = vweird.f32 %v1924
    %vm1931 = vmor %vm1929, %vm1930
    %v1932 = vsel %vm1931, %v1924, %v1928
    %v1933 = vand.u32 2147483647, %v1818
    %vm1934 = vcmp.eq.f32.partialorder %v1933, 8.507059e+37
    %v1935 = vand.u32 %v1818, 2147483648
    %v1936 = vor.u32 1.1754944e-38, %v1935
    %v1937 = vsel %vm1934, %v1936, %v1932
    %v1938 = vmul.f32 1.0, %v1937
    %v1939 = vmul.f32 %v1733, %v1833
    %v1940 = vmul.f32 %v1747, %v1848
    %v1941 = vmul.f32 %v1761, %v1863
    %v1942 = vmul.f32 %v1775, %v1878
    %v1943 = vmul.f32 %v1735, %v1893
    %v1944 = vmul.f32 %v1749, %v1908
    %v1945 = vmul.f32 %v1763, %v1923
    %v1946 = vmul.f32 %v1777, %v1938
    %v1947 = vpack.c.bf16 %v1943, %v1939
    %v1948 = vpack.c.bf16 %v1944, %v1940
    %v1949 = vpack.c.bf16 %v1945, %v1941
    %v1950 = vpack.c.bf16 %v1946, %v1942
    %v1951 = vld [vmem:[#allocation5] sm:$0xff]
    %v1952 = vld [vmem:[#allocation5 + $0x8] sm:$0xff]
    %v1953 = vld [vmem:[#allocation5 + $0x10] sm:$0xff]
    %v1954 = vld [vmem:[#allocation5 + $0x18] sm:$0xff]
    %v1955 = vld [vmem:[#allocation5 + $0x20] sm:$0xff]
    %v1956 = vld [vmem:[#allocation5 + $0x28] sm:$0xff]
    %v1957 = vld [vmem:[#allocation5 + $0x30] sm:$0xff]
    %v1958 = vld [vmem:[#allocation5 + $0x38] sm:$0xff]
    %v1959 = vld [vmem:[#allocation5 + $0x40] sm:$0xff]
    %v1960 = vld [vmem:[#allocation5 + $0x48] sm:$0xff]
    %v1961 = vld [vmem:[#allocation5 + $0x50] sm:$0xff]
    %v1962 = vld [vmem:[#allocation5 + $0x58] sm:$0xff]
    %v1963 = vld [vmem:[#allocation5 + $0x60] sm:$0xff]
    %v1964 = vld [vmem:[#allocation5 + $0x68] sm:$0xff]
    %v1965 = vld [vmem:[#allocation5 + $0x70] sm:$0xff]
    %v1966 = vld [vmem:[#allocation5 + $0x78] sm:$0xff]
    %v1967 = vld [vmem:[#allocation5 + $0x80] sm:$0xff]
    %v1968 = vld [vmem:[#allocation5 + $0x88] sm:$0xff]
    %v1969 = vld [vmem:[#allocation5 + $0x90] sm:$0xff]
    %v1970 = vld [vmem:[#allocation5 + $0x98] sm:$0xff]
    %v1971 = vld [vmem:[#allocation5 + $0xa0] sm:$0xff]
    %v1972 = vld [vmem:[#allocation5 + $0xa8] sm:$0xff]
    %v1973 = vld [vmem:[#allocation5 + $0xb0] sm:$0xff]
    %v1974 = vld [vmem:[#allocation5 + $0xb8] sm:$0xff]
    %v1975 = vld [vmem:[#allocation5 + $0xc0] sm:$0xff]
    %v1976 = vld [vmem:[#allocation5 + $0xc8] sm:$0xff]
    %v1977 = vld [vmem:[#allocation5 + $0xd0] sm:$0xff]
    %v1978 = vld [vmem:[#allocation5 + $0xd8] sm:$0xff]
    %v1979 = vld [vmem:[#allocation5 + $0xe0] sm:$0xff]
    %v1980 = vld [vmem:[#allocation5 + $0xe8] sm:$0xff]
    %v1981 = vld [vmem:[#allocation5 + $0xf0] sm:$0xff]
    %v1982 = vld [vmem:[#allocation5 + $0xf8] sm:$0xff]
    %v1983 = vld [vmem:[%s12] sm:$0x1]
    %v1985 = vperm.slane %v1983, 0
    %v2019 = vunpack.c.l.b16 %v1951
    %v2020 = vunpack.c.h.b16 %v1951
    %v2021 = vunpack.c.l.b16 %v1952
    %v2022 = vunpack.c.h.b16 %v1952
    %v2023 = vunpack.c.l.b16 %v1953
    %v2024 = vunpack.c.h.b16 %v1953
    %v2025 = vunpack.c.l.b16 %v1954
    %v2026 = vunpack.c.h.b16 %v1954
    %v2027 = vunpack.c.l.b16 %v1955
    %v2028 = vunpack.c.h.b16 %v1955
    %v2029 = vunpack.c.l.b16 %v1956
    %v2030 = vunpack.c.h.b16 %v1956
    %v2031 = vunpack.c.l.b16 %v1957
    %v2032 = vunpack.c.h.b16 %v1957
    %v2033 = vunpack.c.l.b16 %v1958
    %v2034 = vunpack.c.h.b16 %v1958
    %v2035 = vunpack.c.l.b16 %v1959
    %v2036 = vunpack.c.h.b16 %v1959
    %v2037 = vunpack.c.l.b16 %v1960
    %v2038 = vunpack.c.h.b16 %v1960
    %v2039 = vunpack.c.l.b16 %v1961
    %v2040 = vunpack.c.h.b16 %v1961
    %v2041 = vunpack.c.l.b16 %v1962
    %v2042 = vunpack.c.h.b16 %v1962
    %v2043 = vunpack.c.l.b16 %v1963
    %v2044 = vunpack.c.h.b16 %v1963
    %v2045 = vunpack.c.l.b16 %v1964
    %v2046 = vunpack.c.h.b16 %v1964
    %v2047 = vunpack.c.l.b16 %v1965
    %v2048 = vunpack.c.h.b16 %v1965
    %v2049 = vunpack.c.l.b16 %v1966
    %v2050 = vunpack.c.h.b16 %v1966
    %v2051 = vunpack.c.l.b16 %v1967
    %v2052 = vunpack.c.h.b16 %v1967
    %v2053 = vunpack.c.l.b16 %v1968
    %v2054 = vunpack.c.h.b16 %v1968
    %v2055 = vunpack.c.l.b16 %v1969
    %v2056 = vunpack.c.h.b16 %v1969
    %v2057 = vunpack.c.l.b16 %v1970
    %v2058 = vunpack.c.h.b16 %v1970
    %v2059 = vunpack.c.l.b16 %v1971
    %v2060 = vunpack.c.h.b16 %v1971
    %v2061 = vunpack.c.l.b16 %v1972
    %v2062 = vunpack.c.h.b16 %v1972
    %v2063 = vunpack.c.l.b16 %v1973
    %v2064 = vunpack.c.h.b16 %v1973
    %v2065 = vunpack.c.l.b16 %v1974
    %v2066 = vunpack.c.h.b16 %v1974
    %v2067 = vunpack.c.l.b16 %v1975
    %v2068 = vunpack.c.h.b16 %v1975
    %v2069 = vunpack.c.l.b16 %v1976
    %v2070 = vunpack.c.h.b16 %v1976
    %v2071 = vunpack.c.l.b16 %v1977
    %v2072 = vunpack.c.h.b16 %v1977
    %v2073 = vunpack.c.l.b16 %v1978
    %v2074 = vunpack.c.h.b16 %v1978
    %v2075 = vunpack.c.l.b16 %v1979
    %v2076 = vunpack.c.h.b16 %v1979
    %v2077 = vunpack.c.l.b16 %v1980
    %v2078 = vunpack.c.h.b16 %v1980
    %v2079 = vunpack.c.l.b16 %v1981
    %v2080 = vunpack.c.h.b16 %v1981
    %v2081 = vunpack.c.l.b16 %v1982
    %v2082 = vunpack.c.h.b16 %v1982
    %v2083 = vpack.c.b16 %v2023, %v2019
    %v2084 = vpack.c.b16 %v2024, %v2020
    %v2085 = vpack.c.b16 %v2025, %v2021
    %v2086 = vpack.c.b16 %v2026, %v2022
    %v2087 = vpack.c.b16 %v2031, %v2027
    %v2088 = vpack.c.b16 %v2032, %v2028
    %v2089 = vpack.c.b16 %v2033, %v2029
    %v2090 = vpack.c.b16 %v2034, %v2030
    %v2091 = vpack.c.b16 %v2039, %v2035
    %v2092 = vpack.c.b16 %v2040, %v2036
    %v2093 = vpack.c.b16 %v2041, %v2037
    %v2094 = vpack.c.b16 %v2042, %v2038
    %v2095 = vpack.c.b16 %v2047, %v2043
    %v2096 = vpack.c.b16 %v2048, %v2044
    %v2097 = vpack.c.b16 %v2049, %v2045
    %v2098 = vpack.c.b16 %v2050, %v2046
    %v2099 = vpack.c.b16 %v2055, %v2051
    %v2100 = vpack.c.b16 %v2056, %v2052
    %v2101 = vpack.c.b16 %v2057, %v2053
    %v2102 = vpack.c.b16 %v2058, %v2054
    %v2103 = vpack.c.b16 %v2063, %v2059
    %v2104 = vpack.c.b16 %v2064, %v2060
    %v2105 = vpack.c.b16 %v2065, %v2061
    %v2106 = vpack.c.b16 %v2066, %v2062
    %v2107 = vpack.c.b16 %v2071, %v2067
    %v2108 = vpack.c.b16 %v2072, %v2068
    %v2109 = vpack.c.b16 %v2073, %v2069
    %v2110 = vpack.c.b16 %v2074, %v2070
    %v2111 = vpack.c.b16 %v2079, %v2075
    %v2112 = vpack.c.b16 %v2080, %v2076
    %v2113 = vpack.c.b16 %v2081, %v2077
    %v2114 = vpack.c.b16 %v2082, %v2078
    %2147 = vmatpush.bf16.xpose.msra.mxu0 %v2111
    %2148 = vmatpush.bf16.xpose.msra.mxu0 %v2107
    %2149 = vmatpush.bf16.xpose.msra.mxu0 %v2103
    %2150 = vmatpush.bf16.xpose.msra.mxu0 %v2099
    %2151 = vmatpush.bf16.xpose.msra.mxu0 %v2095
    %2152 = vmatpush.bf16.xpose.msra.mxu0 %v2091
    %2153 = vmatpush.bf16.xpose.msra.mxu0 %v2087
    %2154 = vmatpush.bf16.xpose.msra.mxu0 %v2083
    %2155 = vmatmul.bf16.gmra.mxu0 %v1947
    %v2156 = vpop.f32.mrf.mxu0
    %v2157 = vadd.f32 %v1985, %v2156
    %v2158 = vpop.f32.mrf.mxu0
    %v2159 = vadd.f32 %v1985, %v2158
    %2160 = vdwg.mxu0
    %2161 = vmatpush.bf16.xpose.msra.mxu0 %v2112
    %2162 = vmatpush.bf16.xpose.msra.mxu0 %v2108
    %2163 = vmatpush.bf16.xpose.msra.mxu0 %v2104
    %2164 = vmatpush.bf16.xpose.msra.mxu0 %v2100
    %2165 = vmatpush.bf16.xpose.msra.mxu0 %v2096
    %2166 = vmatpush.bf16.xpose.msra.mxu0 %v2092
    %2167 = vmatpush.bf16.xpose.msra.mxu0 %v2088
    %2168 = vmatpush.bf16.xpose.msra.mxu0 %v2084
    %2169 = vmatmul.bf16.gmra.mxu0 %v1948
    %v2170 = vpop.f32.mrf.mxu0
    %v2171 = vadd.f32 %v2157, %v2170
    %v2172 = vpop.f32.mrf.mxu0
    %v2173 = vadd.f32 %v2159, %v2172
    %2174 = vdwg.mxu0
    %2175 = vmatpush.bf16.xpose.msra.mxu0 %v2113
    %2176 = vmatpush.bf16.xpose.msra.mxu0 %v2109
    %2177 = vmatpush.bf16.xpose.msra.mxu0 %v2105
    %2178 = vmatpush.bf16.xpose.msra.mxu0 %v2101
    %2179 = vmatpush.bf16.xpose.msra.mxu0 %v2097
    %2180 = vmatpush.bf16.xpose.msra.mxu0 %v2093
    %2181 = vmatpush.bf16.xpose.msra.mxu0 %v2089
    %2182 = vmatpush.bf16.xpose.msra.mxu0 %v2085
    %2183 = vmatmul.bf16.gmra.mxu0 %v1949
    %v2184 = vpop.f32.mrf.mxu0
    %v2185 = vadd.f32 %v2171, %v2184
    %v2186 = vpop.f32.mrf.mxu0
    %v2187 = vadd.f32 %v2173, %v2186
    %2188 = vdwg.mxu0
    %2189 = vmatpush.bf16.xpose.msra.mxu0 %v2114
    %2190 = vmatpush.bf16.xpose.msra.mxu0 %v2110
    %2191 = vmatpush.bf16.xpose.msra.mxu0 %v2106
    %2192 = vmatpush.bf16.xpose.msra.mxu0 %v2102
    %2193 = vmatpush.bf16.xpose.msra.mxu0 %v2098
    %2194 = vmatpush.bf16.xpose.msra.mxu0 %v2094
    %2195 = vmatpush.bf16.xpose.msra.mxu0 %v2090
    %2196 = vmatpush.bf16.xpose.msra.mxu0 %v2086
    %2197 = vmatmul.bf16.gmra.mxu0 %v1950
    %v2198 = vpop.f32.mrf.mxu0
    %v2199 = vadd.f32 %v2185, %v2198
    %v2200 = vpop.f32.mrf.mxu0
    %v2201 = vadd.f32 %v2187, %v2200
    %2202 = vdwg.mxu0
    %v2203 = vadd.f32 %v1402, %v2199
    %v2204 = vadd.f32 %v1403, %v2201
    %2205 = vst [vmem:[#allocation7] sm:$0xff] %v2203
    %2206 = vst [vmem:[#allocation7 + $0x8] sm:$0xff] %v2204
    // Predicated region
    $region62: #{tpu_custom_call.1} parent=1 // pred_check
      _
    $region63: #{tpu_custom_call.1} parent=1 // pred_check_branch
      %2208 = sbr.rel (0) target = $region65
    $region64: #{tpu_custom_call.1} parent=1 // pred_region
      %2210 = vsyncadd [#allocation4], 0
      %s2211 = sshll.u32 [#allocation7], 4
      %s2212 = int_to_ptr.vmem [resolvable:$true] %s2211
      %s2213 = sshll.u32 %s13, 4
      %s2214 = int_to_ptr.hbm [resolvable:$true] %s2213
      %2219 = dma.vmem_to_hbm [thread:$0]  %s2212, 256, %s2214, [#allocation4], 128, 128, 8
    $region65: #{tpu_custom_call.1} parent=1 // pred_fallthru
      _
    // Predicated region
    $region66: #{tpu_custom_call.1} parent=1 // pred_check
      _
    $region67: #{tpu_custom_call.1} parent=1 // pred_check_branch
      %2221 = sbr.rel (0) target = $region69
    $region68: #{tpu_custom_call.1} parent=1 // pred_region
      %2223 = dma.done [#allocation4], 256
    $region69: #{tpu_custom_call.1} parent=1 // pred_fallthru
      _
    %2224 = vsyncpa [#allocation3], 1
    %2225 = vsyncpa [#allocation6], 1
    %2226 = vsyncpa [#allocation4], 1

</llo_original>
